<compile_context>
chip_gen: v6e
topology: v6e:2x2x1
jax: 0.10.0
libtpu: 0.0.40
codegen_flags: <defaults>
</compile_context>

<pallas_src>
import functools

import jax
import jax.numpy as jnp
from jax import lax
from jax.experimental import pallas as pl
from jax.experimental.pallas import tpu as pltpu

LANE = 128  # TPU lane width; every matmul N dim is padded to this.


def _round_up(x, m):
    return ((x + m - 1) // m) * m


# ----------------------------------------------------------------------------
# Pallas kernel 1: fused  Y = [relu](X @ W + b), M-tiled over row blocks.
# ----------------------------------------------------------------------------
def _matmul_bias_kernel(x_ref, w_ref, b_ref, o_ref, *, apply_relu: bool):
    acc = jnp.dot(x_ref[...], w_ref[...], preferred_element_type=jnp.float32)
    acc = acc + b_ref[...]                     # (1, N) broadcasts over rows
    if apply_relu:
        acc = jnp.maximum(acc, 0.0)
    o_ref[...] = acc.astype(o_ref.dtype)


def fused_matmul_bias(x, w, b, *, apply_relu: bool, tm_cap: int = 1024):
    """x: (M, K), w: (K, N), b: (1, N) -> (M_pad, N). Rows >= M are padding."""
    M, K = x.shape
    K2, N = w.shape
    assert K == K2 and b.shape == (1, N)
    tm = _round_up(M, 8) if M <= tm_cap else tm_cap
    m_pad = _round_up(M, tm)
    if m_pad != M:
        x = jnp.pad(x, ((0, m_pad - M), (0, 0)))
    kernel = functools.partial(_matmul_bias_kernel, apply_relu=apply_relu)
    cost = pl.CostEstimate(
        flops=2 * m_pad * K * N,
        transcendentals=0,
        bytes_accessed=4 * (m_pad * K + K * N + N + m_pad * N))
    return pl.pallas_call(
        kernel,
        out_shape=jax.ShapeDtypeStruct((m_pad, N), jnp.float32),
        grid_spec=pltpu.PrefetchScalarGridSpec(
            num_scalar_prefetch=0,
            grid=(m_pad // tm,),
            in_specs=[
                pl.BlockSpec((tm, K), lambda i: (i, 0)),
                pl.BlockSpec((K, N), lambda i: (0, 0)),   # weight stays resident
                pl.BlockSpec((1, N), lambda i: (0, 0)),
            ],
            out_specs=pl.BlockSpec((tm, N), lambda i: (i, 0)),
        ),
        compiler_params=pltpu.CompilerParams(
            dimension_semantics=("parallel",)),
        cost_estimate=cost,
    )(x, w, b)


# ----------------------------------------------------------------------------
# Pallas kernel 2: fused MLP head  logits = (relu(X @ W1 + b1)) @ W2 + b2.
# ----------------------------------------------------------------------------
def _mlp_head_kernel(x_ref, w1_ref, b1_ref, w2_ref, b2_ref, o_ref):
    h = jnp.dot(x_ref[...], w1_ref[...], preferred_element_type=jnp.float32)
    h = jnp.maximum(h + b1_ref[...], 0.0)
    o = jnp.dot(h, w2_ref[...], preferred_element_type=jnp.float32)
    o_ref[...] = (o + b2_ref[...]).astype(o_ref.dtype)


def fused_mlp_head(x, w1, b1, w2, b2, *, tm_cap: int = 256):
    """x: (M, K) -> (M_pad, 128). K is large (6272) so tm is capped lower."""
    M, K = x.shape
    K1, N1 = w1.shape
    N1b, N2 = w2.shape
    assert K == K1 and N1 == N1b and b1.shape == (1, N1) and b2.shape == (1, N2)
    tm = _round_up(M, 8) if M <= tm_cap else tm_cap
    m_pad = _round_up(M, tm)
    if m_pad != M:
        x = jnp.pad(x, ((0, m_pad - M), (0, 0)))
    cost = pl.CostEstimate(
        flops=2 * m_pad * (K * N1 + N1 * N2),
        transcendentals=0,
        bytes_accessed=4 * (m_pad * K + K * N1 + N1 * N2 + m_pad * N2))
    return pl.pallas_call(
        _mlp_head_kernel,
        out_shape=jax.ShapeDtypeStruct((m_pad, N2), jnp.float32),
        grid_spec=pltpu.PrefetchScalarGridSpec(
            num_scalar_prefetch=0,
            grid=(m_pad // tm,),
            in_specs=[
                pl.BlockSpec((tm, K), lambda i: (i, 0)),
                pl.BlockSpec((K, N1), lambda i: (0, 0)),
                pl.BlockSpec((1, N1), lambda i: (0, 0)),
                pl.BlockSpec((N1, N2), lambda i: (0, 0)),
                pl.BlockSpec((1, N2), lambda i: (0, 0)),
            ],
            out_specs=pl.BlockSpec((tm, N2), lambda i: (i, 0)),
        ),
        compiler_params=pltpu.CompilerParams(
            dimension_semantics=("parallel",)),
        cost_estimate=cost,
    )(x, w1, b1, w2, b2)


# ----------------------------------------------------------------------------
# Glue: NHWC im2col (stride-2, pad-1, 4x4). Column order is (ki, kj, c),
# matched by the weight flattening in prepare_params(); the final reshape is a
# free row-major view (no transpose after the matmul).
# ----------------------------------------------------------------------------
def im2col_nhwc(x, kh, kw, stride, pad):
    x = jnp.pad(x, ((0, 0), (pad, pad), (pad, pad), (0, 0)))
    B, H, W, C = x.shape
    oh = (H - kh) // stride + 1
    ow = (W - kw) // stride + 1
    cols = []
    for i in range(kh):
        for j in range(kw):
            cols.append(x[:, i:i + stride * oh:stride, j:j + stride * ow:stride, :])
    p = jnp.concatenate(cols, axis=-1)                  # (B, OH, OW, KH*KW*C)
    return p.reshape(B * oh * ow, kh * kw * C), oh, ow


# ----------------------------------------------------------------------------
# Parameters: stored in PyTorch-native layouts, then folded/padded ONCE.
# ----------------------------------------------------------------------------
def init_params(key):
    def uniform(key, shape, fan_in):
        bound = 1.0 / jnp.sqrt(float(fan_in))
        return jax.random.uniform(key, shape, jnp.float32, -bound, bound)

    ks = jax.random.split(key, 8)
    return {
        "conv1_w": uniform(ks[0], (10, 3, 4, 4), 3 * 4 * 4),   # OIHW
        "conv1_b": uniform(ks[1], (10,), 3 * 4 * 4),
        "conv2_w": uniform(ks[2], (20, 10, 4, 4), 10 * 4 * 4),
        "conv2_b": uniform(ks[3], (20,), 10 * 4 * 4),
        "fc1_w": uniform(ks[4], (980, 128), 980),   # (in, out); in = torch CHW order
        "fc1_b": uniform(ks[5], (128,), 980),
        "fc2_w": uniform(ks[6], (128, 10), 128),    # (in, out)
        "fc2_b": uniform(ks[7], (10,), 128),
    }


def _pad_cols(a, n):
    return jnp.pad(a, ((0, 0), (0, n - a.shape[1])))


def prepare_params(params):
    """Fold all layout permutations and lane padding into the weights (once)."""
    # Conv weights: OIHW -> (KH, KW, C, O) flat = im2col_nhwc column order;
    # output channels zero-padded to LANE for lane-dense stores.
    w1 = jnp.transpose(params["conv1_w"], (2, 3, 1, 0)).reshape(4 * 4 * 3, 10)
    w2 = jnp.transpose(params["conv2_w"], (2, 3, 1, 0)).reshape(4 * 4 * 10, 20)
    # fc1: rows are torch CHW flatten (c*49 + h*7 + w). Re-order to the NHWC
    # flatten of the LANE-padded conv2 output ((h*7 + w)*LANE + c); rows that
    # hit padded channels are zero.
    wf1 = params["fc1_w"].reshape(20, 7, 7, 128)            # [c, h, w, out]
    wf1 = jnp.transpose(wf1, (1, 2, 0, 3))                  # [h, w, c, out]
    wf1 = jnp.pad(wf1, ((0, 0), (0, 0), (0, LANE - 20), (0, 0)))
    wf1 = wf1.reshape(7 * 7 * LANE, 128)
    return {
        "w1": _pad_cols(w1, LANE),
        "b1": jnp.pad(params["conv1_b"], (0, LANE - 10)).reshape(1, LANE),
        "w2": _pad_cols(w2, LANE),
        "b2": jnp.pad(params["conv2_b"], (0, LANE - 20)).reshape(1, LANE),
        "wf1": wf1,
        "bf1": params["fc1_b"].reshape(1, 128),
        "wf2": _pad_cols(params["fc2_w"], LANE),
        "bf2": jnp.pad(params["fc2_b"], (0, LANE - 10)).reshape(1, LANE),
    }


# ----------------------------------------------------------------------------
# Forward
# ----------------------------------------------------------------------------
@jax.jit
def clf_img_forward(prep, x):
    """x: (B, 3, 28, 28) float32 NCHW -> logits (B, 10)."""
    B = x.shape[0]
    xh = jnp.transpose(x, (0, 2, 3, 1))                     # only input-side transpose
    # Conv1 (+Dropout2d == identity) + ReLU; output channels padded to 128.
    p1, oh1, ow1 = im2col_nhwc(xh, 4, 4, 2, 1)              # (B*196, 48)
    y1 = fused_matmul_bias(p1, prep["w1"], prep["b1"], apply_relu=True)
    y1 = y1[:B * oh1 * ow1].reshape(B, oh1, ow1, LANE)      # (B, 14, 14, 128)
    # Conv2 (+Dropout2d == identity) + ReLU (slice back to the 10 real channels
    # for the im2col; the slice fuses into the patch-building XLA fusion).
    p2, oh2, ow2 = im2col_nhwc(y1[..., :10], 4, 4, 2, 1)    # (B*49, 160)
    y2 = fused_matmul_bias(p2, prep["w2"], prep["b2"], apply_relu=True)
    # Flatten: keep the LANE padding (folded into wf1); reshape is a free view.
    h = y2[:B * oh2 * ow2].reshape(B, oh2 * ow2 * LANE)     # (B, 6272)
    # Linear(980,128) (+Dropout == identity) + ReLU + Linear(128,10), fused.
    logits = fused_mlp_head(h, prep["wf1"], prep["bf1"], prep["wf2"], prep["bf2"])
    return logits[:B, :10]


def reference_forward(params, x):
    """Pure-JAX NCHW reference matching the PyTorch module at eval time."""
    hp = lax.Precision.HIGHEST

    def conv(x, w, b):
        y = lax.conv_general_dilated(
            x, w, window_strides=(2, 2), padding=((1, 1), (1, 1)),
            dimension_numbers=("NCHW", "OIHW", "NCHW"), precision=hp)
        return y + b.reshape(1, -1, 1, 1)

    h = jnp.maximum(conv(x, params["conv1_w"], params["conv1_b"]), 0.0)
    h = jnp.maximum(conv(h, params["conv2_w"], params["conv2_b"]), 0.0)
    h = h.reshape(x.shape[0], -1)
    h = jnp.maximum(jnp.dot(h, params["fc1_w"], precision=hp) + params["fc1_b"], 0.0)
    return jnp.dot(h, params["fc2_w"], precision=hp) + params["fc2_b"]


if __name__ == "__main__":
    key = jax.random.PRNGKey(0)
    pkey, xkey = jax.random.split(key)
    params = init_params(pkey)
    prep = prepare_params(params)                 # layout folding done once
    x = jax.random.normal(xkey, (2, 3, 28, 28), dtype=jnp.float32)

    out = clf_img_forward(prep, x)
    jax.block_until_ready(out)
    assert out.shape == (2, 10) and out.dtype == jnp.float32

    ref = reference_forward(params, x)
    max_err = float(jnp.max(jnp.abs(out - ref)))
    assert max_err < 3e-2, f"mismatch vs reference: max_abs_err={max_err}"

    print("KERNEL_OK")
</pallas_src>

<mosaic_0001>
module attributes {stable_mosaic.version = 11 : i64} {
  func.func @_matmul_bias_kernel(%arg0: i32, %arg1: memref<392x48xf32, #tpu.memory_space<vmem>>, %arg2: memref<48x128xf32, #tpu.memory_space<vmem>>, %arg3: memref<1x128xf32, #tpu.memory_space<vmem>>, %arg4: memref<392x128xf32, #tpu.memory_space<vmem>>) attributes {dimension_semantics = [#tpu.dimension_semantics<parallel>], iteration_bounds = array<i64: 1>, scalar_prefetch = 0 : i64, scratch_operands = 0 : i64, tpu.core_type = #tpu.core_type<tc>, window_params = [{transform_indices = @transform_0, window_bounds = array<i64: 392, 48>}, {pipeline_mode = #tpu.pipeline_mode<synchronous>, transform_indices = @transform_1, window_bounds = array<i64: 48, 128>}, {pipeline_mode = #tpu.pipeline_mode<synchronous>, transform_indices = @transform_2, window_bounds = array<i64: 1, 128>}, {transform_indices = @transform_3, window_bounds = array<i64: 392, 128>}]} {
    %c0 = arith.constant 0 : index
    %c0_0 = arith.constant 0 : index
    %0 = vector.load %arg1[%c0, %c0_0] : memref<392x48xf32, #tpu.memory_space<vmem>>, vector<392x48xf32>
    %c0_1 = arith.constant 0 : index
    %c0_2 = arith.constant 0 : index
    %1 = vector.load %arg2[%c0_1, %c0_2] : memref<48x128xf32, #tpu.memory_space<vmem>>, vector<48x128xf32>
    %cst = arith.constant dense<0.000000e+00> : vector<392x128xf32>
    %2 = tpu.matmul %0, %1, %cst {dimension_numbers = #tpu.dot_dimension_numbers<[1], [0], [0], [1], [0, 0, 1, 1], [], []>} : vector<392x48xf32>, vector<48x128xf32>, vector<392x128xf32> -> vector<392x128xf32>
    %c0_3 = arith.constant 0 : index
    %c0_4 = arith.constant 0 : index
    %3 = vector.load %arg3[%c0_3, %c0_4] : memref<1x128xf32, #tpu.memory_space<vmem>>, vector<1x128xf32>
    %4 = vector.broadcast %3 : vector<1x128xf32> to vector<392x128xf32>
    %5 = arith.addf %2, %4 : vector<392x128xf32>
    %cst_5 = arith.constant 0.000000e+00 : f32
    %6 = vector.broadcast %cst_5 : f32 to vector<392x128xf32>
    %7 = arith.maximumf %5, %6 : vector<392x128xf32>
    %c0_6 = arith.constant 0 : index
    %c0_7 = arith.constant 0 : index
    %8 = vector.load %arg4[%c0_6, %c0_7] : memref<392x128xf32, #tpu.memory_space<vmem>>, vector<392x128xf32>
    tpu.vector_store %arg4[%c0_6, %c0_7], %7 {strides = array<i32>} : memref<392x128xf32, #tpu.memory_space<vmem>>, vector<392x128xf32>,
    return
  }
  func.func @transform_0(%arg0: i32) -> (i32, i32) {
    %c0_i32 = arith.constant 0 : i32
    %c0_i32_0 = arith.constant 0 : i32
    return %arg0, %c0_i32 : i32, i32
  }
  func.func @transform_1(%arg0: i32) -> (i32, i32) {
    %c0_i32 = arith.constant 0 : i32
    %c0_i32_0 = arith.constant 0 : i32
    %c0_i32_1 = arith.constant 0 : i32
    return %c0_i32, %c0_i32_0 : i32, i32
  }
  func.func @transform_2(%arg0: i32) -> (i32, i32) {
    %c0_i32 = arith.constant 0 : i32
    %c0_i32_0 = arith.constant 0 : i32
    %c0_i32_1 = arith.constant 0 : i32
    return %c0_i32, %c0_i32_0 : i32, i32
  }
  func.func @transform_3(%arg0: i32) -> (i32, i32) {
    %c0_i32 = arith.constant 0 : i32
    %c0_i32_0 = arith.constant 0 : i32
    return %arg0, %c0_i32 : i32, i32
  }
}

module attributes {stable_mosaic.version = 11 : i64} {
  func.func @_matmul_bias_kernel(%arg0: i32, %arg1: memref<104x160xf32, #tpu.memory_space<vmem>>, %arg2: memref<160x128xf32, #tpu.memory_space<vmem>>, %arg3: memref<1x128xf32, #tpu.memory_space<vmem>>, %arg4: memref<104x128xf32, #tpu.memory_space<vmem>>) attributes {dimension_semantics = [#tpu.dimension_semantics<parallel>], iteration_bounds = array<i64: 1>, scalar_prefetch = 0 : i64, scratch_operands = 0 : i64, tpu.core_type = #tpu.core_type<tc>, window_params = [{transform_indices = @transform_0, window_bounds = array<i64: 104, 160>}, {pipeline_mode = #tpu.pipeline_mode<synchronous>, transform_indices = @transform_1, window_bounds = array<i64: 160, 128>}, {pipeline_mode = #tpu.pipeline_mode<synchronous>, transform_indices = @transform_2, window_bounds = array<i64: 1, 128>}, {transform_indices = @transform_3, window_bounds = array<i64: 104, 128>}]} {
    %c0 = arith.constant 0 : index
    %c0_0 = arith.constant 0 : index
    %0 = vector.load %arg1[%c0, %c0_0] : memref<104x160xf32, #tpu.memory_space<vmem>>, vector<104x160xf32>
    %c0_1 = arith.constant 0 : index
    %c0_2 = arith.constant 0 : index
    %1 = vector.load %arg2[%c0_1, %c0_2] : memref<160x128xf32, #tpu.memory_space<vmem>>, vector<160x128xf32>
    %cst = arith.constant dense<0.000000e+00> : vector<104x128xf32>
    %2 = tpu.matmul %0, %1, %cst {dimension_numbers = #tpu.dot_dimension_numbers<[1], [0], [0], [1], [0, 0, 1, 1], [], []>} : vector<104x160xf32>, vector<160x128xf32>, vector<104x128xf32> -> vector<104x128xf32>
    %c0_3 = arith.constant 0 : index
    %c0_4 = arith.constant 0 : index
    %3 = vector.load %arg3[%c0_3, %c0_4] : memref<1x128xf32, #tpu.memory_space<vmem>>, vector<1x128xf32>
    %4 = vector.broadcast %3 : vector<1x128xf32> to vector<104x128xf32>
    %5 = arith.addf %2, %4 : vector<104x128xf32>
    %cst_5 = arith.constant 0.000000e+00 : f32
    %6 = vector.broadcast %cst_5 : f32 to vector<104x128xf32>
    %7 = arith.maximumf %5, %6 : vector<104x128xf32>
    %c0_6 = arith.constant 0 : index
    %c0_7 = arith.constant 0 : index
    %8 = vector.load %arg4[%c0_6, %c0_7] : memref<104x128xf32, #tpu.memory_space<vmem>>, vector<104x128xf32>
    tpu.vector_store %arg4[%c0_6, %c0_7], %7 {strides = array<i32>} : memref<104x128xf32, #tpu.memory_space<vmem>>, vector<104x128xf32>,
    return
  }
  func.func @transform_0(%arg0: i32) -> (i32, i32) {
    %c0_i32 = arith.constant 0 : i32
    %c0_i32_0 = arith.constant 0 : i32
    return %arg0, %c0_i32 : i32, i32
  }
  func.func @transform_1(%arg0: i32) -> (i32, i32) {
    %c0_i32 = arith.constant 0 : i32
    %c0_i32_0 = arith.constant 0 : i32
    %c0_i32_1 = arith.constant 0 : i32
    return %c0_i32, %c0_i32_0 : i32, i32
  }
  func.func @transform_2(%arg0: i32) -> (i32, i32) {
    %c0_i32 = arith.constant 0 : i32
    %c0_i32_0 = arith.constant 0 : i32
    %c0_i32_1 = arith.constant 0 : i32
    return %c0_i32, %c0_i32_0 : i32, i32
  }
  func.func @transform_3(%arg0: i32) -> (i32, i32) {
    %c0_i32 = arith.constant 0 : i32
    %c0_i32_0 = arith.constant 0 : i32
    return %arg0, %c0_i32 : i32, i32
  }
}

module attributes {stable_mosaic.version = 11 : i64} {
  func.func @_mlp_head_kernel(%arg0: i32, %arg1: memref<8x6272xf32, #tpu.memory_space<vmem>>, %arg2: memref<6272x128xf32, #tpu.memory_space<vmem>>, %arg3: memref<1x128xf32, #tpu.memory_space<vmem>>, %arg4: memref<128x128xf32, #tpu.memory_space<vmem>>, %arg5: memref<1x128xf32, #tpu.memory_space<vmem>>, %arg6: memref<8x128xf32, #tpu.memory_space<vmem>>) attributes {dimension_semantics = [#tpu.dimension_semantics<parallel>], iteration_bounds = array<i64: 1>, scalar_prefetch = 0 : i64, scratch_operands = 0 : i64, tpu.core_type = #tpu.core_type<tc>, window_params = [{transform_indices = @transform_0, window_bounds = array<i64: 8, 6272>}, {pipeline_mode = #tpu.pipeline_mode<synchronous>, transform_indices = @transform_1, window_bounds = array<i64: 6272, 128>}, {pipeline_mode = #tpu.pipeline_mode<synchronous>, transform_indices = @transform_2, window_bounds = array<i64: 1, 128>}, {pipeline_mode = #tpu.pipeline_mode<synchronous>, transform_indices = @transform_3, window_bounds = array<i64: 128, 128>}, {pipeline_mode = #tpu.pipeline_mode<synchronous>, transform_indices = @transform_4, window_bounds = array<i64: 1, 128>}, {transform_indices = @transform_5, window_bounds = array<i64: 8, 128>}]} {
    %c0 = arith.constant 0 : index
    %c0_0 = arith.constant 0 : index
    %0 = vector.load %arg1[%c0, %c0_0] : memref<8x6272xf32, #tpu.memory_space<vmem>>, vector<8x6272xf32>
    %c0_1 = arith.constant 0 : index
    %c0_2 = arith.constant 0 : index
    %1 = vector.load %arg2[%c0_1, %c0_2] : memref<6272x128xf32, #tpu.memory_space<vmem>>, vector<6272x128xf32>
    %cst = arith.constant dense<0.000000e+00> : vector<8x128xf32>
    %2 = tpu.matmul %0, %1, %cst {dimension_numbers = #tpu.dot_dimension_numbers<[1], [0], [0], [1], [0, 0, 1, 1], [], []>} : vector<8x6272xf32>, vector<6272x128xf32>, vector<8x128xf32> -> vector<8x128xf32>
    %c0_3 = arith.constant 0 : index
    %c0_4 = arith.constant 0 : index
    %3 = vector.load %arg3[%c0_3, %c0_4] : memref<1x128xf32, #tpu.memory_space<vmem>>, vector<1x128xf32>
    %4 = vector.broadcast %3 : vector<1x128xf32> to vector<8x128xf32>
    %5 = arith.addf %2, %4 : vector<8x128xf32>
    %cst_5 = arith.constant 0.000000e+00 : f32
    %6 = vector.broadcast %cst_5 : f32 to vector<8x128xf32>
    %7 = arith.maximumf %5, %6 : vector<8x128xf32>
    %c0_6 = arith.constant 0 : index
    %c0_7 = arith.constant 0 : index
    %8 = vector.load %arg4[%c0_6, %c0_7] : memref<128x128xf32, #tpu.memory_space<vmem>>, vector<128x128xf32>
    %cst_8 = arith.constant dense<0.000000e+00> : vector<8x128xf32>
    %9 = tpu.matmul %7, %8, %cst_8 {dimension_numbers = #tpu.dot_dimension_numbers<[1], [0], [0], [1], [0, 0, 1, 1], [], []>} : vector<8x128xf32>, vector<128x128xf32>, vector<8x128xf32> -> vector<8x128xf32>
    %c0_9 = arith.constant 0 : index
    %c0_10 = arith.constant 0 : index
    %10 = vector.load %arg5[%c0_9, %c0_10] : memref<1x128xf32, #tpu.memory_space<vmem>>, vector<1x128xf32>
    %11 = vector.broadcast %10 : vector<1x128xf32> to vector<8x128xf32>
    %12 = arith.addf %9, %11 : vector<8x128xf32>
    %c0_11 = arith.constant 0 : index
    %c0_12 = arith.constant 0 : index
    %13 = vector.load %arg6[%c0_11, %c0_12] : memref<8x128xf32, #tpu.memory_space<vmem>>, vector<8x128xf32>
    tpu.vector_store %arg6[%c0_11, %c0_12], %12 {strides = array<i32>} : memref<8x128xf32, #tpu.memory_space<vmem>>, vector<8x128xf32>,
    return
  }
  func.func @transform_0(%arg0: i32) -> (i32, i32) {
    %c0_i32 = arith.constant 0 : i32
    %c0_i32_0 = arith.constant 0 : i32
    return %arg0, %c0_i32 : i32, i32
  }
  func.func @transform_1(%arg0: i32) -> (i32, i32) {
    %c0_i32 = arith.constant 0 : i32
    %c0_i32_0 = arith.constant 0 : i32
    %c0_i32_1 = arith.constant 0 : i32
    return %c0_i32, %c0_i32_0 : i32, i32
  }
  func.func @transform_2(%arg0: i32) -> (i32, i32) {
    %c0_i32 = arith.constant 0 : i32
    %c0_i32_0 = arith.constant 0 : i32
    %c0_i32_1 = arith.constant 0 : i32
    return %c0_i32, %c0_i32_0 : i32, i32
  }
  func.func @transform_3(%arg0: i32) -> (i32, i32) {
    %c0_i32 = arith.constant 0 : i32
    %c0_i32_0 = arith.constant 0 : i32
    %c0_i32_1 = arith.constant 0 : i32
    return %c0_i32, %c0_i32_0 : i32, i32
  }
  func.func @transform_4(%arg0: i32) -> (i32, i32) {
    %c0_i32 = arith.constant 0 : i32
    %c0_i32_0 = arith.constant 0 : i32
    %c0_i32_1 = arith.constant 0 : i32
    return %c0_i32, %c0_i32_0 : i32, i32
  }
  func.func @transform_5(%arg0: i32) -> (i32, i32) {
    %c0_i32 = arith.constant 0 : i32
    %c0_i32_0 = arith.constant 0 : i32
    return %arg0, %c0_i32 : i32, i32
  }
}

</mosaic_0001>

<llo_original>
// kernel: clf_img_forward.3
$region0: #{clf_img_forward.3}
  #allocation0 [shape = 'u32[]', space=smem, size = 0x4, offset = 0x4, fixed_abs, tag = 'smem constant byte address 0x4 - core index']
  #allocation1 [shape = 'u32[144,128]{1,0:T(1,128)}', space=vmem, size = 0x12000, scoped, tag = 'internal scratch']
  %s0 = inlined_call_operand.vmem [shape: f32[392,48], index: 0, kind: input, shape index: {}]
  %s1 = inlined_call_operand.vmem [shape: f32[48,128], index: 1, kind: input, shape index: {}]
  %s2 = inlined_call_operand.vmem [shape: f32[1,128], index: 2, kind: input, shape index: {}]
  %s3 = inlined_call_operand.vmem [shape: f32[392,128], index: 3, kind: output, shape index: {}]
  %s4 = sld [smem:[#allocation0]]
  $region22: #{clf_img_forward.3} parent=0
    _
  %s6 = ssub.s32 1, %s4
  %s7 = scalar_select 0, %s6, %s4
  // Predicated region
  $region2: #{clf_img_forward.3} parent=0 // pred_check
    _
  $region3: #{clf_img_forward.3} parent=0 // pred_check_branch
    %9 = sbr.rel (0) target = $region5
  $region4: #{clf_img_forward.3} parent=0 // pred_region
    _
  $region5: #{clf_img_forward.3} parent=0 // pred_fallthru
    _
  // Predicated region
  $region6: #{clf_img_forward.3} parent=0 // pred_check
    _
  $region7: #{clf_img_forward.3} parent=0 // pred_check_branch
    %11 = sbr.rel (0) target = $region9
  $region8: #{clf_img_forward.3} parent=0 // pred_region
    _
  $region9: #{clf_img_forward.3} parent=0 // pred_fallthru
    _
  // Predicated region
  $region10: #{clf_img_forward.3} parent=0 // pred_check
    _
  $region11: #{clf_img_forward.3} parent=0 // pred_check_branch
    %13 = sbr.rel (0) target = $region13
  $region12: #{clf_img_forward.3} parent=0 // pred_region
    _
  $region13: #{clf_img_forward.3} parent=0 // pred_fallthru
    _
  %v14 = vld [vmem:[%s0] sm:$0xff]
  %v15 = vld [vmem:[%s0 + $0x8] sm:$0xff]
  %v16 = vld [vmem:[%s0 + $0x10] sm:$0xff]
  %v17 = vld [vmem:[%s0 + $0x18] sm:$0xff]
  %v18 = vld [vmem:[%s0 + $0x20] sm:$0xff]
  %v19 = vld [vmem:[%s0 + $0x28] sm:$0xff]
  %v20 = vld [vmem:[%s0 + $0x30] sm:$0xff]
  %v21 = vld [vmem:[%s0 + $0x38] sm:$0xff]
  %v22 = vld [vmem:[%s0 + $0x40] sm:$0xff]
  %v23 = vld [vmem:[%s0 + $0x48] sm:$0xff]
  %v24 = vld [vmem:[%s0 + $0x50] sm:$0xff]
  %v25 = vld [vmem:[%s0 + $0x58] sm:$0xff]
  %v26 = vld [vmem:[%s0 + $0x60] sm:$0xff]
  %v27 = vld [vmem:[%s0 + $0x68] sm:$0xff]
  %v28 = vld [vmem:[%s0 + $0x70] sm:$0xff]
  %v29 = vld [vmem:[%s0 + $0x78] sm:$0xff]
  %v30 = vld [vmem:[%s0 + $0x80] sm:$0xff]
  %v31 = vld [vmem:[%s0 + $0x88] sm:$0xff]
  %v32 = vld [vmem:[%s0 + $0x90] sm:$0xff]
  %v33 = vld [vmem:[%s0 + $0x98] sm:$0xff]
  %v34 = vld [vmem:[%s0 + $0xa0] sm:$0xff]
  %v35 = vld [vmem:[%s0 + $0xa8] sm:$0xff]
  %v36 = vld [vmem:[%s0 + $0xb0] sm:$0xff]
  %v37 = vld [vmem:[%s0 + $0xb8] sm:$0xff]
  %v38 = vld [vmem:[%s0 + $0xc0] sm:$0xff]
  %v39 = vld [vmem:[%s0 + $0xc8] sm:$0xff]
  %v40 = vld [vmem:[%s0 + $0xd0] sm:$0xff]
  %v41 = vld [vmem:[%s0 + $0xd8] sm:$0xff]
  %v42 = vld [vmem:[%s0 + $0xe0] sm:$0xff]
  %v43 = vld [vmem:[%s0 + $0xe8] sm:$0xff]
  %v44 = vld [vmem:[%s0 + $0xf0] sm:$0xff]
  %v45 = vld [vmem:[%s0 + $0xf8] sm:$0xff]
  %v46 = vld [vmem:[%s0 + $0x100] sm:$0xff]
  %v47 = vld [vmem:[%s0 + $0x108] sm:$0xff]
  %v48 = vld [vmem:[%s0 + $0x110] sm:$0xff]
  %v49 = vld [vmem:[%s0 + $0x118] sm:$0xff]
  %v50 = vld [vmem:[%s0 + $0x120] sm:$0xff]
  %v51 = vld [vmem:[%s0 + $0x128] sm:$0xff]
  %v52 = vld [vmem:[%s0 + $0x130] sm:$0xff]
  %v53 = vld [vmem:[%s0 + $0x138] sm:$0xff]
  %v54 = vld [vmem:[%s0 + $0x140] sm:$0xff]
  %v55 = vld [vmem:[%s0 + $0x148] sm:$0xff]
  %v56 = vld [vmem:[%s0 + $0x150] sm:$0xff]
  %v57 = vld [vmem:[%s0 + $0x158] sm:$0xff]
  %v58 = vld [vmem:[%s0 + $0x160] sm:$0xff]
  %v59 = vld [vmem:[%s0 + $0x168] sm:$0xff]
  %v60 = vld [vmem:[%s0 + $0x170] sm:$0xff]
  %v61 = vld [vmem:[%s0 + $0x178] sm:$0xff]
  %v62 = vld [vmem:[%s0 + $0x180] sm:$0xff]
  %v63 = vld [vmem:[%s1] sm:$0xff]
  %v64 = vld [vmem:[%s1 + $0x8] sm:$0xff]
  %v65 = vld [vmem:[%s1 + $0x10] sm:$0xff]
  %v66 = vld [vmem:[%s1 + $0x18] sm:$0xff]
  %v67 = vld [vmem:[%s1 + $0x20] sm:$0xff]
  %v68 = vld [vmem:[%s1 + $0x28] sm:$0xff]
  %v69 = vld [vmem:[%s2] sm:$0x1]
  %v71 = vlaneseq
  %v72 = vshrl.u32 %v71, 7
  %v73 = vsub.s32 0, %v72
  %v74 = vrot.slane %v69, %v73
  %vm76 = vcmask 392192
  %v78 = vsel %vm76, %v14, 0
  %v81 = vsel %vm76, %v15, 0
  %v84 = vsel %vm76, %v16, 0
  %v87 = vsel %vm76, %v17, 0
  %v90 = vsel %vm76, %v18, 0
  %v93 = vsel %vm76, %v19, 0
  %v96 = vsel %vm76, %v20, 0
  %v99 = vsel %vm76, %v21, 0
  %v102 = vsel %vm76, %v22, 0
  %v105 = vsel %vm76, %v23, 0
  %v108 = vsel %vm76, %v24, 0
  %v111 = vsel %vm76, %v25, 0
  %v114 = vsel %vm76, %v26, 0
  %v117 = vsel %vm76, %v27, 0
  %v120 = vsel %vm76, %v28, 0
  %v123 = vsel %vm76, %v29, 0
  %v126 = vsel %vm76, %v30, 0
  %v129 = vsel %vm76, %v31, 0
  %v132 = vsel %vm76, %v32, 0
  %v135 = vsel %vm76, %v33, 0
  %v138 = vsel %vm76, %v34, 0
  %v141 = vsel %vm76, %v35, 0
  %v144 = vsel %vm76, %v36, 0
  %v147 = vsel %vm76, %v37, 0
  %v150 = vsel %vm76, %v38, 0
  %v153 = vsel %vm76, %v39, 0
  %v156 = vsel %vm76, %v40, 0
  %v159 = vsel %vm76, %v41, 0
  %v162 = vsel %vm76, %v42, 0
  %v165 = vsel %vm76, %v43, 0
  %v168 = vsel %vm76, %v44, 0
  %v171 = vsel %vm76, %v45, 0
  %v174 = vsel %vm76, %v46, 0
  %v177 = vsel %vm76, %v47, 0
  %v180 = vsel %vm76, %v48, 0
  %v183 = vsel %vm76, %v49, 0
  %v186 = vsel %vm76, %v50, 0
  %v189 = vsel %vm76, %v51, 0
  %v192 = vsel %vm76, %v52, 0
  %v195 = vsel %vm76, %v53, 0
  %v198 = vsel %vm76, %v54, 0
  %v201 = vsel %vm76, %v55, 0
  %v204 = vsel %vm76, %v56, 0
  %v207 = vsel %vm76, %v57, 0
  %v210 = vsel %vm76, %v58, 0
  %v213 = vsel %vm76, %v59, 0
  %v216 = vsel %vm76, %v60, 0
  %v219 = vsel %vm76, %v61, 0
  %v222 = vsel %vm76, %v62, 0
  %224 = vmatprep.subr.mxu0 0.0
  %225 = vmatpush1.msra.mxu0 0.0
  %226 = vmatprep.subr.mxu0 0.0
  %227 = vmatpush1.msra.mxu0 0.0
  %228 = vmatprep.subr.mxu0 0.0
  %229 = vmatpush1.msra.mxu0 0.0
  %230 = vmatprep.subr.mxu0 0.0
  %231 = vmatpush1.msra.mxu0 0.0
  %232 = vmatprep.subr.mxu0 0.0
  %233 = vmatpush1.msra.mxu0 0.0
  %234 = vmatprep.subr.mxu0 0.0
  %235 = vmatpush1.msra.mxu0 0.0
  %236 = vmatprep.subr.mxu0 0.0
  %237 = vmatpush1.msra.mxu0 0.0
  %238 = vmatprep.subr.mxu0 0.0
  %239 = vmatpush1.msra.mxu0 0.0
  %240 = vmatprep.subr.mxu0 0.0
  %241 = vmatpush1.msra.mxu0 0.0
  %242 = vmatprep.subr.mxu0 0.0
  %243 = vmatpush1.msra.mxu0 0.0
  %244 = vmatprep.subr.mxu0 0.0
  %245 = vmatpush1.msra.mxu0 %v68
  %246 = vmatprep.subr.mxu0 0.0
  %247 = vmatpush1.msra.mxu0 %v67
  %248 = vmatprep.subr.mxu0 0.0
  %249 = vmatpush1.msra.mxu0 %v66
  %250 = vmatprep.subr.mxu0 0.0
  %251 = vmatpush1.msra.mxu0 %v65
  %252 = vmatprep.subr.mxu0 0.0
  %253 = vmatpush1.msra.mxu0 %v64
  %254 = vmatprep.subr.mxu0 0.0
  %255 = vmatpush1.msra.mxu0 %v63
  %256 = vmatprep.subr.mxu0 0.0
  %257 = vmatpush2.msra.mxu0 0.0
  %258 = vmatprep.subr.mxu0 0.0
  %259 = vmatpush2.msra.mxu0 0.0
  %260 = vmatprep.subr.mxu0 0.0
  %261 = vmatpush2.msra.mxu0 0.0
  %262 = vmatprep.subr.mxu0 0.0
  %263 = vmatpush2.msra.mxu0 0.0
  %264 = vmatprep.subr.mxu0 0.0
  %265 = vmatpush2.msra.mxu0 0.0
  %266 = vmatprep.subr.mxu0 0.0
  %267 = vmatpush2.msra.mxu0 0.0
  %268 = vmatprep.subr.mxu0 0.0
  %269 = vmatpush2.msra.mxu0 0.0
  %270 = vmatprep.subr.mxu0 0.0
  %271 = vmatpush2.msra.mxu0 0.0
  %272 = vmatprep.subr.mxu0 0.0
  %273 = vmatpush2.msra.mxu0 0.0
  %274 = vmatprep.subr.mxu0 0.0
  %275 = vmatpush2.msra.mxu0 0.0
  %276 = vmatprep.subr.mxu0 0.0
  %277 = vmatpush2.msra.mxu0 0.0
  %278 = vmatprep.subr.mxu0 0.0
  %279 = vmatpush2.msra.mxu0 0.0
  %280 = vmatprep.subr.mxu0 0.0
  %281 = vmatpush2.msra.mxu0 0.0
  %282 = vmatprep.subr.mxu0 0.0
  %283 = vmatpush2.msra.mxu0 0.0
  %284 = vmatprep.subr.mxu0 0.0
  %285 = vmatpush2.msra.mxu0 0.0
  %286 = vmatprep.subr.mxu0 0.0
  %287 = vmatpush2.msra.mxu0 0.0
  %288 = vmatprep.mubr.f32.mxu0 0.0
  %289 = vmatmul.mubr.f32.gmra.mxu0 %v78
  %v290 = vpop.f32.mrf.mxu0
  %v291 = vadd.f32 %v74, %v290
  %v292 = vpop.f32.mrf.mxu0
  %293 = vmatprep.mubr.f32.mxu0 0.0
  %294 = vmatmul.mubr.f32.gmra.mxu0 %v81
  %v295 = vpop.f32.mrf.mxu0
  %v296 = vadd.f32 %v74, %v295
  %v297 = vpop.f32.mrf.mxu0
  %298 = vmatprep.mubr.f32.mxu0 0.0
  %299 = vmatmul.mubr.f32.gmra.mxu0 %v84
  %v300 = vpop.f32.mrf.mxu0
  %v301 = vadd.f32 %v74, %v300
  %v302 = vpop.f32.mrf.mxu0
  %303 = vmatprep.mubr.f32.mxu0 0.0
  %304 = vmatmul.mubr.f32.gmra.mxu0 %v87
  %v305 = vpop.f32.mrf.mxu0
  %v306 = vadd.f32 %v74, %v305
  %v307 = vpop.f32.mrf.mxu0
  %308 = vmatprep.mubr.f32.mxu0 0.0
  %309 = vmatmul.mubr.f32.gmra.mxu0 %v90
  %v310 = vpop.f32.mrf.mxu0
  %v311 = vadd.f32 %v74, %v310
  %v312 = vpop.f32.mrf.mxu0
  %313 = vmatprep.mubr.f32.mxu0 0.0
  %314 = vmatmul.mubr.f32.gmra.mxu0 %v93
  %v315 = vpop.f32.mrf.mxu0
  %v316 = vadd.f32 %v74, %v315
  %v317 = vpop.f32.mrf.mxu0
  %318 = vmatprep.mubr.f32.mxu0 0.0
  %319 = vmatmul.mubr.f32.gmra.mxu0 %v96
  %v320 = vpop.f32.mrf.mxu0
  %v321 = vadd.f32 %v74, %v320
  %v322 = vpop.f32.mrf.mxu0
  %323 = vmatprep.mubr.f32.mxu0 0.0
  %324 = vmatmul.mubr.f32.gmra.mxu0 %v99
  %v325 = vpop.f32.mrf.mxu0
  %v326 = vadd.f32 %v74, %v325
  %v327 = vpop.f32.mrf.mxu0
  %328 = vmatprep.mubr.f32.mxu0 0.0
  %329 = vmatmul.mubr.f32.gmra.mxu0 %v102
  %v330 = vpop.f32.mrf.mxu0
  %v331 = vadd.f32 %v74, %v330
  %v332 = vpop.f32.mrf.mxu0
  %333 = vmatprep.mubr.f32.mxu0 0.0
  %334 = vmatmul.mubr.f32.gmra.mxu0 %v105
  %v335 = vpop.f32.mrf.mxu0
  %v336 = vadd.f32 %v74, %v335
  %v337 = vpop.f32.mrf.mxu0
  %338 = vmatprep.mubr.f32.mxu0 0.0
  %339 = vmatmul.mubr.f32.gmra.mxu0 %v108
  %v340 = vpop.f32.mrf.mxu0
  %v341 = vadd.f32 %v74, %v340
  %v342 = vpop.f32.mrf.mxu0
  %343 = vmatprep.mubr.f32.mxu0 0.0
  %344 = vmatmul.mubr.f32.gmra.mxu0 %v111
  %v345 = vpop.f32.mrf.mxu0
  %v346 = vadd.f32 %v74, %v345
  %v347 = vpop.f32.mrf.mxu0
  %348 = vmatprep.mubr.f32.mxu0 0.0
  %349 = vmatmul.mubr.f32.gmra.mxu0 %v114
  %v350 = vpop.f32.mrf.mxu0
  %v351 = vadd.f32 %v74, %v350
  %v352 = vpop.f32.mrf.mxu0
  %353 = vmatprep.mubr.f32.mxu0 0.0
  %354 = vmatmul.mubr.f32.gmra.mxu0 %v117
  %v355 = vpop.f32.mrf.mxu0
  %v356 = vadd.f32 %v74, %v355
  %v357 = vpop.f32.mrf.mxu0
  %358 = vmatprep.mubr.f32.mxu0 0.0
  %359 = vmatmul.mubr.f32.gmra.mxu0 %v120
  %v360 = vpop.f32.mrf.mxu0
  %v361 = vadd.f32 %v74, %v360
  %v362 = vpop.f32.mrf.mxu0
  %363 = vmatprep.mubr.f32.mxu0 0.0
  %364 = vmatmul.mubr.f32.gmra.mxu0 %v123
  %v365 = vpop.f32.mrf.mxu0
  %v366 = vadd.f32 %v74, %v365
  %v367 = vpop.f32.mrf.mxu0
  %368 = vmatprep.mubr.f32.mxu0 0.0
  %369 = vmatmul.mubr.f32.gmra.mxu0 %v126
  %v370 = vpop.f32.mrf.mxu0
  %v371 = vadd.f32 %v74, %v370
  %v372 = vpop.f32.mrf.mxu0
  %373 = vmatprep.mubr.f32.mxu0 0.0
  %374 = vmatmul.mubr.f32.gmra.mxu0 %v129
  %v375 = vpop.f32.mrf.mxu0
  %v376 = vadd.f32 %v74, %v375
  %v377 = vpop.f32.mrf.mxu0
  %378 = vmatprep.mubr.f32.mxu0 0.0
  %379 = vmatmul.mubr.f32.gmra.mxu0 %v132
  %v380 = vpop.f32.mrf.mxu0
  %v381 = vadd.f32 %v74, %v380
  %v382 = vpop.f32.mrf.mxu0
  %383 = vmatprep.mubr.f32.mxu0 0.0
  %384 = vmatmul.mubr.f32.gmra.mxu0 %v135
  %v385 = vpop.f32.mrf.mxu0
  %v386 = vadd.f32 %v74, %v385
  %v387 = vpop.f32.mrf.mxu0
  %388 = vmatprep.mubr.f32.mxu0 0.0
  %389 = vmatmul.mubr.f32.gmra.mxu0 %v138
  %v390 = vpop.f32.mrf.mxu0
  %v391 = vadd.f32 %v74, %v390
  %v392 = vpop.f32.mrf.mxu0
  %393 = vmatprep.mubr.f32.mxu0 0.0
  %394 = vmatmul.mubr.f32.gmra.mxu0 %v141
  %v395 = vpop.f32.mrf.mxu0
  %v396 = vadd.f32 %v74, %v395
  %v397 = vpop.f32.mrf.mxu0
  %398 = vmatprep.mubr.f32.mxu0 0.0
  %399 = vmatmul.mubr.f32.gmra.mxu0 %v144
  %v400 = vpop.f32.mrf.mxu0
  %v401 = vadd.f32 %v74, %v400
  %v402 = vpop.f32.mrf.mxu0
  %403 = vmatprep.mubr.f32.mxu0 0.0
  %404 = vmatmul.mubr.f32.gmra.mxu0 %v147
  %v405 = vpop.f32.mrf.mxu0
  %v406 = vadd.f32 %v74, %v405
  %v407 = vpop.f32.mrf.mxu0
  %408 = vmatprep.mubr.f32.mxu0 0.0
  %409 = vmatmul.mubr.f32.gmra.mxu0 %v150
  %v410 = vpop.f32.mrf.mxu0
  %v411 = vadd.f32 %v74, %v410
  %v412 = vpop.f32.mrf.mxu0
  %413 = vmatprep.mubr.f32.mxu0 0.0
  %414 = vmatmul.mubr.f32.gmra.mxu0 %v153
  %v415 = vpop.f32.mrf.mxu0
  %v416 = vadd.f32 %v74, %v415
  %v417 = vpop.f32.mrf.mxu0
  %418 = vmatprep.mubr.f32.mxu0 0.0
  %419 = vmatmul.mubr.f32.gmra.mxu0 %v156
  %v420 = vpop.f32.mrf.mxu0
  %v421 = vadd.f32 %v74, %v420
  %v422 = vpop.f32.mrf.mxu0
  %423 = vmatprep.mubr.f32.mxu0 0.0
  %424 = vmatmul.mubr.f32.gmra.mxu0 %v159
  %v425 = vpop.f32.mrf.mxu0
  %v426 = vadd.f32 %v74, %v425
  %v427 = vpop.f32.mrf.mxu0
  %428 = vmatprep.mubr.f32.mxu0 0.0
  %429 = vmatmul.mubr.f32.gmra.mxu0 %v162
  %v430 = vpop.f32.mrf.mxu0
  %v431 = vadd.f32 %v74, %v430
  %v432 = vpop.f32.mrf.mxu0
  %433 = vmatprep.mubr.f32.mxu0 0.0
  %434 = vmatmul.mubr.f32.gmra.mxu0 %v165
  %v435 = vpop.f32.mrf.mxu0
  %v436 = vadd.f32 %v74, %v435
  %v437 = vpop.f32.mrf.mxu0
  %438 = vmatprep.mubr.f32.mxu0 0.0
  %439 = vmatmul.mubr.f32.gmra.mxu0 %v168
  %v440 = vpop.f32.mrf.mxu0
  %v441 = vadd.f32 %v74, %v440
  %v442 = vpop.f32.mrf.mxu0
  %443 = vmatprep.mubr.f32.mxu0 0.0
  %444 = vmatmul.mubr.f32.gmra.mxu0 %v171
  %v445 = vpop.f32.mrf.mxu0
  %v446 = vadd.f32 %v74, %v445
  %v447 = vpop.f32.mrf.mxu0
  %448 = vmatprep.mubr.f32.mxu0 0.0
  %449 = vmatmul.mubr.f32.gmra.mxu0 %v174
  %v450 = vpop.f32.mrf.mxu0
  %v451 = vadd.f32 %v74, %v450
  %v452 = vpop.f32.mrf.mxu0
  %453 = vmatprep.mubr.f32.mxu0 0.0
  %454 = vmatmul.mubr.f32.gmra.mxu0 %v177
  %v455 = vpop.f32.mrf.mxu0
  %v456 = vadd.f32 %v74, %v455
  %v457 = vpop.f32.mrf.mxu0
  %458 = vmatprep.mubr.f32.mxu0 0.0
  %459 = vmatmul.mubr.f32.gmra.mxu0 %v180
  %v460 = vpop.f32.mrf.mxu0
  %v461 = vadd.f32 %v74, %v460
  %v462 = vpop.f32.mrf.mxu0
  %463 = vmatprep.mubr.f32.mxu0 0.0
  %464 = vmatmul.mubr.f32.gmra.mxu0 %v183
  %v465 = vpop.f32.mrf.mxu0
  %v466 = vadd.f32 %v74, %v465
  %v467 = vpop.f32.mrf.mxu0
  %468 = vmatprep.mubr.f32.mxu0 0.0
  %469 = vmatmul.mubr.f32.gmra.mxu0 %v186
  %v470 = vpop.f32.mrf.mxu0
  %v471 = vadd.f32 %v74, %v470
  %v472 = vpop.f32.mrf.mxu0
  %473 = vmatprep.mubr.f32.mxu0 0.0
  %474 = vmatmul.mubr.f32.gmra.mxu0 %v189
  %v475 = vpop.f32.mrf.mxu0
  %v476 = vadd.f32 %v74, %v475
  %v477 = vpop.f32.mrf.mxu0
  %478 = vmatprep.mubr.f32.mxu0 0.0
  %479 = vmatmul.mubr.f32.gmra.mxu0 %v192
  %v480 = vpop.f32.mrf.mxu0
  %v481 = vadd.f32 %v74, %v480
  %v482 = vpop.f32.mrf.mxu0
  %483 = vmatprep.mubr.f32.mxu0 0.0
  %484 = vmatmul.mubr.f32.gmra.mxu0 %v195
  %v485 = vpop.f32.mrf.mxu0
  %v486 = vadd.f32 %v74, %v485
  %v487 = vpop.f32.mrf.mxu0
  %488 = vmatprep.mubr.f32.mxu0 0.0
  %489 = vmatmul.mubr.f32.gmra.mxu0 %v198
  %v490 = vpop.f32.mrf.mxu0
  %v491 = vadd.f32 %v74, %v490
  %v492 = vpop.f32.mrf.mxu0
  %493 = vmatprep.mubr.f32.mxu0 0.0
  %494 = vmatmul.mubr.f32.gmra.mxu0 %v201
  %v495 = vpop.f32.mrf.mxu0
  %v496 = vadd.f32 %v74, %v495
  %v497 = vpop.f32.mrf.mxu0
  %498 = vmatprep.mubr.f32.mxu0 0.0
  %499 = vmatmul.mubr.f32.gmra.mxu0 %v204
  %v500 = vpop.f32.mrf.mxu0
  %v501 = vadd.f32 %v74, %v500
  %v502 = vpop.f32.mrf.mxu0
  %503 = vmatprep.mubr.f32.mxu0 0.0
  %504 = vmatmul.mubr.f32.gmra.mxu0 %v207
  %v505 = vpop.f32.mrf.mxu0
  %v506 = vadd.f32 %v74, %v505
  %v507 = vpop.f32.mrf.mxu0
  %508 = vmatprep.mubr.f32.mxu0 0.0
  %509 = vmatmul.mubr.f32.gmra.mxu0 %v210
  %v510 = vpop.f32.mrf.mxu0
  %v511 = vadd.f32 %v74, %v510
  %v512 = vpop.f32.mrf.mxu0
  %513 = vmatprep.mubr.f32.mxu0 0.0
  %514 = vmatmul.mubr.f32.gmra.mxu0 %v213
  %v515 = vpop.f32.mrf.mxu0
  %v516 = vadd.f32 %v74, %v515
  %v517 = vpop.f32.mrf.mxu0
  %518 = vmatprep.mubr.f32.mxu0 0.0
  %519 = vmatmul.mubr.f32.gmra.mxu0 %v216
  %v520 = vpop.f32.mrf.mxu0
  %v521 = vadd.f32 %v74, %v520
  %v522 = vpop.f32.mrf.mxu0
  %523 = vmatprep.mubr.f32.mxu0 0.0
  %524 = vmatmul.mubr.f32.gmra.mxu0 %v219
  %v525 = vpop.f32.mrf.mxu0
  %v526 = vadd.f32 %v74, %v525
  %v527 = vpop.f32.mrf.mxu0
  %528 = vmatprep.mubr.f32.mxu0 0.0
  %529 = vmatmul.mubr.f32.gmra.mxu0 %v222
  %v530 = vpop.f32.mrf.mxu0
  %v531 = vadd.f32 %v74, %v530
  %v532 = vpop.f32.mrf.mxu0
  %533 = vdwg.mxu0
  %v534 = vmax.f32 %v291, 0.0
  %v535 = vmax.f32 %v296, 0.0
  %v536 = vmax.f32 %v301, 0.0
  %v537 = vmax.f32 %v306, 0.0
  %v538 = vmax.f32 %v311, 0.0
  %v539 = vmax.f32 %v316, 0.0
  %v540 = vmax.f32 %v321, 0.0
  %v541 = vmax.f32 %v326, 0.0
  %v542 = vmax.f32 %v331, 0.0
  %v543 = vmax.f32 %v336, 0.0
  %v544 = vmax.f32 %v341, 0.0
  %v545 = vmax.f32 %v346, 0.0
  %v546 = vmax.f32 %v351, 0.0
  %v547 = vmax.f32 %v356, 0.0
  %v548 = vmax.f32 %v361, 0.0
  %v549 = vmax.f32 %v366, 0.0
  %v550 = vmax.f32 %v371, 0.0
  %v551 = vmax.f32 %v376, 0.0
  %v552 = vmax.f32 %v381, 0.0
  %v553 = vmax.f32 %v386, 0.0
  %v554 = vmax.f32 %v391, 0.0
  %v555 = vmax.f32 %v396, 0.0
  %v556 = vmax.f32 %v401, 0.0
  %v557 = vmax.f32 %v406, 0.0
  %v558 = vmax.f32 %v411, 0.0
  %v559 = vmax.f32 %v416, 0.0
  %v560 = vmax.f32 %v421, 0.0
  %v561 = vmax.f32 %v426, 0.0
  %v562 = vmax.f32 %v431, 0.0
  %v563 = vmax.f32 %v436, 0.0
  %v564 = vmax.f32 %v441, 0.0
  %v565 = vmax.f32 %v446, 0.0
  %v566 = vmax.f32 %v451, 0.0
  %v567 = vmax.f32 %v456, 0.0
  %v568 = vmax.f32 %v461, 0.0
  %v569 = vmax.f32 %v466, 0.0
  %v570 = vmax.f32 %v471, 0.0
  %v571 = vmax.f32 %v476, 0.0
  %v572 = vmax.f32 %v481, 0.0
  %v573 = vmax.f32 %v486, 0.0
  %v574 = vmax.f32 %v491, 0.0
  %v575 = vmax.f32 %v496, 0.0
  %v576 = vmax.f32 %v501, 0.0
  %v577 = vmax.f32 %v506, 0.0
  %v578 = vmax.f32 %v511, 0.0
  %v579 = vmax.f32 %v516, 0.0
  %v580 = vmax.f32 %v521, 0.0
  %v581 = vmax.f32 %v526, 0.0
  %v582 = vmax.f32 %v531, 0.0
  %583 = vst [vmem:[%s3] sm:$0xff] %v534
  %584 = vst [vmem:[%s3 + $0x8] sm:$0xff] %v535
  %585 = vst [vmem:[%s3 + $0x10] sm:$0xff] %v536
  %586 = vst [vmem:[%s3 + $0x18] sm:$0xff] %v537
  %587 = vst [vmem:[%s3 + $0x20] sm:$0xff] %v538
  %588 = vst [vmem:[%s3 + $0x28] sm:$0xff] %v539
  %589 = vst [vmem:[%s3 + $0x30] sm:$0xff] %v540
  %590 = vst [vmem:[%s3 + $0x38] sm:$0xff] %v541
  %591 = vst [vmem:[%s3 + $0x40] sm:$0xff] %v542
  %592 = vst [vmem:[%s3 + $0x48] sm:$0xff] %v543
  %593 = vst [vmem:[%s3 + $0x50] sm:$0xff] %v544
  %594 = vst [vmem:[%s3 + $0x58] sm:$0xff] %v545
  %595 = vst [vmem:[%s3 + $0x60] sm:$0xff] %v546
  %596 = vst [vmem:[%s3 + $0x68] sm:$0xff] %v547
  %597 = vst [vmem:[%s3 + $0x70] sm:$0xff] %v548
  %598 = vst [vmem:[%s3 + $0x78] sm:$0xff] %v549
  %599 = vst [vmem:[%s3 + $0x80] sm:$0xff] %v550
  %600 = vst [vmem:[%s3 + $0x88] sm:$0xff] %v551
  %601 = vst [vmem:[%s3 + $0x90] sm:$0xff] %v552
  %602 = vst [vmem:[%s3 + $0x98] sm:$0xff] %v553
  %603 = vst [vmem:[%s3 + $0xa0] sm:$0xff] %v554
  %604 = vst [vmem:[%s3 + $0xa8] sm:$0xff] %v555
  %605 = vst [vmem:[%s3 + $0xb0] sm:$0xff] %v556
  %606 = vst [vmem:[%s3 + $0xb8] sm:$0xff] %v557
  %607 = vst [vmem:[%s3 + $0xc0] sm:$0xff] %v558
  %608 = vst [vmem:[%s3 + $0xc8] sm:$0xff] %v559
  %609 = vst [vmem:[%s3 + $0xd0] sm:$0xff] %v560
  %610 = vst [vmem:[%s3 + $0xd8] sm:$0xff] %v561
  %611 = vst [vmem:[%s3 + $0xe0] sm:$0xff] %v562
  %612 = vst [vmem:[%s3 + $0xe8] sm:$0xff] %v563
  %613 = vst [vmem:[%s3 + $0xf0] sm:$0xff] %v564
  %614 = vst [vmem:[%s3 + $0xf8] sm:$0xff] %v565
  %615 = vst [vmem:[%s3 + $0x100] sm:$0xff] %v566
  %616 = vst [vmem:[%s3 + $0x108] sm:$0xff] %v567
  %617 = vst [vmem:[%s3 + $0x110] sm:$0xff] %v568
  %618 = vst [vmem:[%s3 + $0x118] sm:$0xff] %v569
  %619 = vst [vmem:[%s3 + $0x120] sm:$0xff] %v570
  %620 = vst [vmem:[%s3 + $0x128] sm:$0xff] %v571
  %621 = vst [vmem:[%s3 + $0x130] sm:$0xff] %v572
  %622 = vst [vmem:[%s3 + $0x138] sm:$0xff] %v573
  %623 = vst [vmem:[%s3 + $0x140] sm:$0xff] %v574
  %624 = vst [vmem:[%s3 + $0x148] sm:$0xff] %v575
  %625 = vst [vmem:[%s3 + $0x150] sm:$0xff] %v576
  %626 = vst [vmem:[%s3 + $0x158] sm:$0xff] %v577
  %627 = vst [vmem:[%s3 + $0x160] sm:$0xff] %v578
  %628 = vst [vmem:[%s3 + $0x168] sm:$0xff] %v579
  %629 = vst [vmem:[%s3 + $0x170] sm:$0xff] %v580
  %630 = vst [vmem:[%s3 + $0x178] sm:$0xff] %v581
  %631 = vst [vmem:[%s3 + $0x180] sm:$0xff] %v582
  // Predicated region
  $region14: #{clf_img_forward.3} parent=0 // pred_check
    _
  $region15: #{clf_img_forward.3} parent=0 // pred_check_branch
    %633 = sbr.rel (0) target = $region17
  $region16: #{clf_img_forward.3} parent=0 // pred_region
    _
  $region17: #{clf_img_forward.3} parent=0 // pred_fallthru
    _
  // Predicated region
  $region18: #{clf_img_forward.3} parent=0 // pred_check
    _
  $region19: #{clf_img_forward.3} parent=0 // pred_check_branch
    %635 = sbr.rel (0) target = $region21
  $region20: #{clf_img_forward.3} parent=0 // pred_region
    _
  $region21: #{clf_img_forward.3} parent=0 // pred_fallthru
    _

// kernel: clf_img_forward.4
$region0: #{clf_img_forward.4}
  #allocation0 [shape = 'u32[]', space=smem, size = 0x4, offset = 0x4, fixed_abs, tag = 'smem constant byte address 0x4 - core index']
  #allocation1 [shape = 'u32[144,128]{1,0:T(1,128)}', space=vmem, size = 0x12000, scoped, tag = 'internal scratch']
  %s0 = inlined_call_operand.vmem [shape: f32[104,160], index: 0, kind: input, shape index: {}]
  %s1 = inlined_call_operand.vmem [shape: f32[160,128], index: 1, kind: input, shape index: {}]
  %s2 = inlined_call_operand.vmem [shape: f32[1,128], index: 2, kind: input, shape index: {}]
  %s3 = inlined_call_operand.vmem [shape: f32[104,128], index: 3, kind: output, shape index: {}]
  %s4 = sld [smem:[#allocation0]]
  $region22: #{clf_img_forward.4} parent=0
    _
  %s6 = ssub.s32 1, %s4
  %s7 = scalar_select 0, %s6, %s4
  // Predicated region
  $region2: #{clf_img_forward.4} parent=0 // pred_check
    _
  $region3: #{clf_img_forward.4} parent=0 // pred_check_branch
    %9 = sbr.rel (0) target = $region5
  $region4: #{clf_img_forward.4} parent=0 // pred_region
    _
  $region5: #{clf_img_forward.4} parent=0 // pred_fallthru
    _
  // Predicated region
  $region6: #{clf_img_forward.4} parent=0 // pred_check
    _
  $region7: #{clf_img_forward.4} parent=0 // pred_check_branch
    %11 = sbr.rel (0) target = $region9
  $region8: #{clf_img_forward.4} parent=0 // pred_region
    _
  $region9: #{clf_img_forward.4} parent=0 // pred_fallthru
    _
  // Predicated region
  $region10: #{clf_img_forward.4} parent=0 // pred_check
    _
  $region11: #{clf_img_forward.4} parent=0 // pred_check_branch
    %13 = sbr.rel (0) target = $region13
  $region12: #{clf_img_forward.4} parent=0 // pred_region
    _
  $region13: #{clf_img_forward.4} parent=0 // pred_fallthru
    _
  %v14 = vld [vmem:[%s0] sm:$0xff]
  %v15 = vld [vmem:[%s0 + $0x8] sm:$0xff]
  %v16 = vld [vmem:[%s0 + $0x10] sm:$0xff]
  %v17 = vld [vmem:[%s0 + $0x18] sm:$0xff]
  %v18 = vld [vmem:[%s0 + $0x20] sm:$0xff]
  %v19 = vld [vmem:[%s0 + $0x28] sm:$0xff]
  %v20 = vld [vmem:[%s0 + $0x30] sm:$0xff]
  %v21 = vld [vmem:[%s0 + $0x38] sm:$0xff]
  %v22 = vld [vmem:[%s0 + $0x40] sm:$0xff]
  %v23 = vld [vmem:[%s0 + $0x48] sm:$0xff]
  %v24 = vld [vmem:[%s0 + $0x50] sm:$0xff]
  %v25 = vld [vmem:[%s0 + $0x58] sm:$0xff]
  %v26 = vld [vmem:[%s0 + $0x60] sm:$0xff]
  %v27 = vld [vmem:[%s0 + $0x68] sm:$0xff]
  %v28 = vld [vmem:[%s0 + $0x70] sm:$0xff]
  %v29 = vld [vmem:[%s0 + $0x78] sm:$0xff]
  %v30 = vld [vmem:[%s0 + $0x80] sm:$0xff]
  %v31 = vld [vmem:[%s0 + $0x88] sm:$0xff]
  %v32 = vld [vmem:[%s0 + $0x90] sm:$0xff]
  %v33 = vld [vmem:[%s0 + $0x98] sm:$0xff]
  %v34 = vld [vmem:[%s0 + $0xa0] sm:$0xff]
  %v35 = vld [vmem:[%s0 + $0xa8] sm:$0xff]
  %v36 = vld [vmem:[%s0 + $0xb0] sm:$0xff]
  %v37 = vld [vmem:[%s0 + $0xb8] sm:$0xff]
  %v38 = vld [vmem:[%s0 + $0xc0] sm:$0xff]
  %v39 = vld [vmem:[%s0 + $0xc8] sm:$0xff]
  %v40 = vld [vmem:[%s1] sm:$0xff]
  %v41 = vld [vmem:[%s1 + $0x8] sm:$0xff]
  %v42 = vld [vmem:[%s1 + $0x10] sm:$0xff]
  %v43 = vld [vmem:[%s1 + $0x18] sm:$0xff]
  %v44 = vld [vmem:[%s1 + $0x20] sm:$0xff]
  %v45 = vld [vmem:[%s1 + $0x28] sm:$0xff]
  %v46 = vld [vmem:[%s1 + $0x30] sm:$0xff]
  %v47 = vld [vmem:[%s1 + $0x38] sm:$0xff]
  %v48 = vld [vmem:[%s1 + $0x40] sm:$0xff]
  %v49 = vld [vmem:[%s1 + $0x48] sm:$0xff]
  %v50 = vld [vmem:[%s1 + $0x50] sm:$0xff]
  %v51 = vld [vmem:[%s1 + $0x58] sm:$0xff]
  %v52 = vld [vmem:[%s1 + $0x60] sm:$0xff]
  %v53 = vld [vmem:[%s1 + $0x68] sm:$0xff]
  %v54 = vld [vmem:[%s1 + $0x70] sm:$0xff]
  %v55 = vld [vmem:[%s1 + $0x78] sm:$0xff]
  %v56 = vld [vmem:[%s1 + $0x80] sm:$0xff]
  %v57 = vld [vmem:[%s1 + $0x88] sm:$0xff]
  %v58 = vld [vmem:[%s1 + $0x90] sm:$0xff]
  %v59 = vld [vmem:[%s1 + $0x98] sm:$0xff]
  %v60 = vld [vmem:[%s2] sm:$0x1]
  %v62 = vlaneseq
  %v63 = vshrl.u32 %v62, 7
  %v64 = vsub.s32 0, %v63
  %v65 = vrot.slane %v60, %v64
  %vm67 = vcmask 261120
  %v69 = vsel %vm67, %v15, 0
  %v72 = vsel %vm67, %v17, 0
  %v75 = vsel %vm67, %v19, 0
  %v78 = vsel %vm67, %v21, 0
  %v81 = vsel %vm67, %v23, 0
  %v84 = vsel %vm67, %v25, 0
  %v87 = vsel %vm67, %v27, 0
  %v90 = vsel %vm67, %v29, 0
  %v93 = vsel %vm67, %v31, 0
  %v96 = vsel %vm67, %v33, 0
  %v99 = vsel %vm67, %v35, 0
  %v102 = vsel %vm67, %v37, 0
  %v105 = vsel %vm67, %v39, 0
  %107 = vmatprep.subr.mxu0 0.0
  %108 = vmatpush1.msra.mxu0 %v55
  %109 = vmatprep.subr.mxu0 0.0
  %110 = vmatpush1.msra.mxu0 %v54
  %111 = vmatprep.subr.mxu0 0.0
  %112 = vmatpush1.msra.mxu0 %v53
  %113 = vmatprep.subr.mxu0 0.0
  %114 = vmatpush1.msra.mxu0 %v52
  %115 = vmatprep.subr.mxu0 0.0
  %116 = vmatpush1.msra.mxu0 %v51
  %117 = vmatprep.subr.mxu0 0.0
  %118 = vmatpush1.msra.mxu0 %v50
  %119 = vmatprep.subr.mxu0 0.0
  %120 = vmatpush1.msra.mxu0 %v49
  %121 = vmatprep.subr.mxu0 0.0
  %122 = vmatpush1.msra.mxu0 %v48
  %123 = vmatprep.subr.mxu0 0.0
  %124 = vmatpush1.msra.mxu0 %v47
  %125 = vmatprep.subr.mxu0 0.0
  %126 = vmatpush1.msra.mxu0 %v46
  %127 = vmatprep.subr.mxu0 0.0
  %128 = vmatpush1.msra.mxu0 %v45
  %129 = vmatprep.subr.mxu0 0.0
  %130 = vmatpush1.msra.mxu0 %v44
  %131 = vmatprep.subr.mxu0 0.0
  %132 = vmatpush1.msra.mxu0 %v43
  %133 = vmatprep.subr.mxu0 0.0
  %134 = vmatpush1.msra.mxu0 %v42
  %135 = vmatprep.subr.mxu0 0.0
  %136 = vmatpush1.msra.mxu0 %v41
  %137 = vmatprep.subr.mxu0 0.0
  %138 = vmatpush1.msra.mxu0 %v40
  %139 = vmatprep.subr.mxu0 0.0
  %140 = vmatpush2.msra.mxu0 0.0
  %141 = vmatprep.subr.mxu0 0.0
  %142 = vmatpush2.msra.mxu0 0.0
  %143 = vmatprep.subr.mxu0 0.0
  %144 = vmatpush2.msra.mxu0 0.0
  %145 = vmatprep.subr.mxu0 0.0
  %146 = vmatpush2.msra.mxu0 0.0
  %147 = vmatprep.subr.mxu0 0.0
  %148 = vmatpush2.msra.mxu0 0.0
  %149 = vmatprep.subr.mxu0 0.0
  %150 = vmatpush2.msra.mxu0 0.0
  %151 = vmatprep.subr.mxu0 0.0
  %152 = vmatpush2.msra.mxu0 0.0
  %153 = vmatprep.subr.mxu0 0.0
  %154 = vmatpush2.msra.mxu0 0.0
  %155 = vmatprep.subr.mxu0 0.0
  %156 = vmatpush2.msra.mxu0 0.0
  %157 = vmatprep.subr.mxu0 0.0
  %158 = vmatpush2.msra.mxu0 0.0
  %159 = vmatprep.subr.mxu0 0.0
  %160 = vmatpush2.msra.mxu0 0.0
  %161 = vmatprep.subr.mxu0 0.0
  %162 = vmatpush2.msra.mxu0 0.0
  %163 = vmatprep.subr.mxu0 0.0
  %164 = vmatpush2.msra.mxu0 %v59
  %165 = vmatprep.subr.mxu0 0.0
  %166 = vmatpush2.msra.mxu0 %v58
  %167 = vmatprep.subr.mxu0 0.0
  %168 = vmatpush2.msra.mxu0 %v57
  %169 = vmatprep.subr.mxu0 0.0
  %170 = vmatpush2.msra.mxu0 %v56
  %171 = vmatprep.mubr.f32.mxu0 %v69
  %172 = vmatmul.mubr.f32.gmra.mxu0 %v14
  %v173 = vpop.f32.mrf.mxu0
  %v174 = vadd.f32 %v65, %v173
  %v175 = vpop.f32.mrf.mxu0
  %176 = vmatprep.mubr.f32.mxu0 %v72
  %177 = vmatmul.mubr.f32.gmra.mxu0 %v16
  %v178 = vpop.f32.mrf.mxu0
  %v179 = vadd.f32 %v65, %v178
  %v180 = vpop.f32.mrf.mxu0
  %181 = vmatprep.mubr.f32.mxu0 %v75
  %182 = vmatmul.mubr.f32.gmra.mxu0 %v18
  %v183 = vpop.f32.mrf.mxu0
  %v184 = vadd.f32 %v65, %v183
  %v185 = vpop.f32.mrf.mxu0
  %186 = vmatprep.mubr.f32.mxu0 %v78
  %187 = vmatmul.mubr.f32.gmra.mxu0 %v20
  %v188 = vpop.f32.mrf.mxu0
  %v189 = vadd.f32 %v65, %v188
  %v190 = vpop.f32.mrf.mxu0
  %191 = vmatprep.mubr.f32.mxu0 %v81
  %192 = vmatmul.mubr.f32.gmra.mxu0 %v22
  %v193 = vpop.f32.mrf.mxu0
  %v194 = vadd.f32 %v65, %v193
  %v195 = vpop.f32.mrf.mxu0
  %196 = vmatprep.mubr.f32.mxu0 %v84
  %197 = vmatmul.mubr.f32.gmra.mxu0 %v24
  %v198 = vpop.f32.mrf.mxu0
  %v199 = vadd.f32 %v65, %v198
  %v200 = vpop.f32.mrf.mxu0
  %201 = vmatprep.mubr.f32.mxu0 %v87
  %202 = vmatmul.mubr.f32.gmra.mxu0 %v26
  %v203 = vpop.f32.mrf.mxu0
  %v204 = vadd.f32 %v65, %v203
  %v205 = vpop.f32.mrf.mxu0
  %206 = vmatprep.mubr.f32.mxu0 %v90
  %207 = vmatmul.mubr.f32.gmra.mxu0 %v28
  %v208 = vpop.f32.mrf.mxu0
  %v209 = vadd.f32 %v65, %v208
  %v210 = vpop.f32.mrf.mxu0
  %211 = vmatprep.mubr.f32.mxu0 %v93
  %212 = vmatmul.mubr.f32.gmra.mxu0 %v30
  %v213 = vpop.f32.mrf.mxu0
  %v214 = vadd.f32 %v65, %v213
  %v215 = vpop.f32.mrf.mxu0
  %216 = vmatprep.mubr.f32.mxu0 %v96
  %217 = vmatmul.mubr.f32.gmra.mxu0 %v32
  %v218 = vpop.f32.mrf.mxu0
  %v219 = vadd.f32 %v65, %v218
  %v220 = vpop.f32.mrf.mxu0
  %221 = vmatprep.mubr.f32.mxu0 %v99
  %222 = vmatmul.mubr.f32.gmra.mxu0 %v34
  %v223 = vpop.f32.mrf.mxu0
  %v224 = vadd.f32 %v65, %v223
  %v225 = vpop.f32.mrf.mxu0
  %226 = vmatprep.mubr.f32.mxu0 %v102
  %227 = vmatmul.mubr.f32.gmra.mxu0 %v36
  %v228 = vpop.f32.mrf.mxu0
  %v229 = vadd.f32 %v65, %v228
  %v230 = vpop.f32.mrf.mxu0
  %231 = vmatprep.mubr.f32.mxu0 %v105
  %232 = vmatmul.mubr.f32.gmra.mxu0 %v38
  %v233 = vpop.f32.mrf.mxu0
  %v234 = vadd.f32 %v65, %v233
  %v235 = vpop.f32.mrf.mxu0
  %236 = vdwg.mxu0
  %v237 = vmax.f32 %v174, 0.0
  %v238 = vmax.f32 %v179, 0.0
  %v239 = vmax.f32 %v184, 0.0
  %v240 = vmax.f32 %v189, 0.0
  %v241 = vmax.f32 %v194, 0.0
  %v242 = vmax.f32 %v199, 0.0
  %v243 = vmax.f32 %v204, 0.0
  %v244 = vmax.f32 %v209, 0.0
  %v245 = vmax.f32 %v214, 0.0
  %v246 = vmax.f32 %v219, 0.0
  %v247 = vmax.f32 %v224, 0.0
  %v248 = vmax.f32 %v229, 0.0
  %v249 = vmax.f32 %v234, 0.0
  %250 = vst [vmem:[%s3] sm:$0xff] %v237
  %251 = vst [vmem:[%s3 + $0x8] sm:$0xff] %v238
  %252 = vst [vmem:[%s3 + $0x10] sm:$0xff] %v239
  %253 = vst [vmem:[%s3 + $0x18] sm:$0xff] %v240
  %254 = vst [vmem:[%s3 + $0x20] sm:$0xff] %v241
  %255 = vst [vmem:[%s3 + $0x28] sm:$0xff] %v242
  %256 = vst [vmem:[%s3 + $0x30] sm:$0xff] %v243
  %257 = vst [vmem:[%s3 + $0x38] sm:$0xff] %v244
  %258 = vst [vmem:[%s3 + $0x40] sm:$0xff] %v245
  %259 = vst [vmem:[%s3 + $0x48] sm:$0xff] %v246
  %260 = vst [vmem:[%s3 + $0x50] sm:$0xff] %v247
  %261 = vst [vmem:[%s3 + $0x58] sm:$0xff] %v248
  %262 = vst [vmem:[%s3 + $0x60] sm:$0xff] %v249
  // Predicated region
  $region14: #{clf_img_forward.4} parent=0 // pred_check
    _
  $region15: #{clf_img_forward.4} parent=0 // pred_check_branch
    %264 = sbr.rel (0) target = $region17
  $region16: #{clf_img_forward.4} parent=0 // pred_region
    _
  $region17: #{clf_img_forward.4} parent=0 // pred_fallthru
    _
  // Predicated region
  $region18: #{clf_img_forward.4} parent=0 // pred_check
    _
  $region19: #{clf_img_forward.4} parent=0 // pred_check_branch
    %266 = sbr.rel (0) target = $region21
  $region20: #{clf_img_forward.4} parent=0 // pred_region
    _
  $region21: #{clf_img_forward.4} parent=0 // pred_fallthru
    _

// kernel: clf_img_forward.5
$region0: #{clf_img_forward.5}
  #allocation0 [shape = 'u32[]', space=smem, size = 0x4, offset = 0x4, fixed_abs, tag = 'smem constant byte address 0x4 - core index']
  #allocation1 [shape = 'u32[144,128]{1,0:T(1,128)}', space=vmem, size = 0x12000, scoped, tag = 'internal scratch']
  %s0 = inlined_call_operand.vmem [shape: f32[8,6272], index: 0, kind: input, shape index: {}]
  %s1 = inlined_call_operand.vmem [shape: f32[6272,128], index: 1, kind: input, shape index: {}]
  %s2 = inlined_call_operand.vmem [shape: f32[1,128], index: 2, kind: input, shape index: {}]
  %s3 = inlined_call_operand.vmem [shape: f32[128,128], index: 3, kind: input, shape index: {}]
  %s4 = inlined_call_operand.vmem [shape: f32[1,128], index: 4, kind: input, shape index: {}]
  %s5 = inlined_call_operand.vmem [shape: f32[8,128], index: 5, kind: output, shape index: {}]
  %s6 = sld [smem:[#allocation0]]
  $region30: #{clf_img_forward.5} parent=0
    _
  %s8 = ssub.s32 1, %s6
  %s9 = scalar_select 0, %s8, %s6
  // Predicated region
  $region2: #{clf_img_forward.5} parent=0 // pred_check
    _
  $region3: #{clf_img_forward.5} parent=0 // pred_check_branch
    %11 = sbr.rel (0) target = $region5
  $region4: #{clf_img_forward.5} parent=0 // pred_region
    _
  $region5: #{clf_img_forward.5} parent=0 // pred_fallthru
    _
  // Predicated region
  $region6: #{clf_img_forward.5} parent=0 // pred_check
    _
  $region7: #{clf_img_forward.5} parent=0 // pred_check_branch
    %13 = sbr.rel (0) target = $region9
  $region8: #{clf_img_forward.5} parent=0 // pred_region
    _
  $region9: #{clf_img_forward.5} parent=0 // pred_fallthru
    _
  // Predicated region
  $region10: #{clf_img_forward.5} parent=0 // pred_check
    _
  $region11: #{clf_img_forward.5} parent=0 // pred_check_branch
    %15 = sbr.rel (0) target = $region13
  $region12: #{clf_img_forward.5} parent=0 // pred_region
    _
  $region13: #{clf_img_forward.5} parent=0 // pred_fallthru
    _
  // Predicated region
  $region14: #{clf_img_forward.5} parent=0 // pred_check
    _
  $region15: #{clf_img_forward.5} parent=0 // pred_check_branch
    %17 = sbr.rel (0) target = $region17
  $region16: #{clf_img_forward.5} parent=0 // pred_region
    _
  $region17: #{clf_img_forward.5} parent=0 // pred_fallthru
    _
  // Predicated region
  $region18: #{clf_img_forward.5} parent=0 // pred_check
    _
  $region19: #{clf_img_forward.5} parent=0 // pred_check_branch
    %19 = sbr.rel (0) target = $region21
  $region20: #{clf_img_forward.5} parent=0 // pred_region
    _
  $region21: #{clf_img_forward.5} parent=0 // pred_fallthru
    _
  %v20 = vld [vmem:[%s0] sm:$0xff]
  %v21 = vld [vmem:[%s0 + $0x8] sm:$0xff]
  %v22 = vld [vmem:[%s0 + $0x10] sm:$0xff]
  %v23 = vld [vmem:[%s0 + $0x18] sm:$0xff]
  %v24 = vld [vmem:[%s0 + $0x20] sm:$0xff]
  %v25 = vld [vmem:[%s0 + $0x28] sm:$0xff]
  %v26 = vld [vmem:[%s0 + $0x30] sm:$0xff]
  %v27 = vld [vmem:[%s0 + $0x38] sm:$0xff]
  %v28 = vld [vmem:[%s0 + $0x40] sm:$0xff]
  %v29 = vld [vmem:[%s0 + $0x48] sm:$0xff]
  %v30 = vld [vmem:[%s0 + $0x50] sm:$0xff]
  %v31 = vld [vmem:[%s0 + $0x58] sm:$0xff]
  %v32 = vld [vmem:[%s0 + $0x60] sm:$0xff]
  %v33 = vld [vmem:[%s0 + $0x68] sm:$0xff]
  %v34 = vld [vmem:[%s0 + $0x70] sm:$0xff]
  %v35 = vld [vmem:[%s0 + $0x78] sm:$0xff]
  %v36 = vld [vmem:[%s0 + $0x80] sm:$0xff]
  %v37 = vld [vmem:[%s0 + $0x88] sm:$0xff]
  %v38 = vld [vmem:[%s0 + $0x90] sm:$0xff]
  %v39 = vld [vmem:[%s0 + $0x98] sm:$0xff]
  %v40 = vld [vmem:[%s0 + $0xa0] sm:$0xff]
  %v41 = vld [vmem:[%s0 + $0xa8] sm:$0xff]
  %v42 = vld [vmem:[%s0 + $0xb0] sm:$0xff]
  %v43 = vld [vmem:[%s0 + $0xb8] sm:$0xff]
  %v44 = vld [vmem:[%s0 + $0xc0] sm:$0xff]
  %v45 = vld [vmem:[%s0 + $0xc8] sm:$0xff]
  %v46 = vld [vmem:[%s0 + $0xd0] sm:$0xff]
  %v47 = vld [vmem:[%s0 + $0xd8] sm:$0xff]
  %v48 = vld [vmem:[%s0 + $0xe0] sm:$0xff]
  %v49 = vld [vmem:[%s0 + $0xe8] sm:$0xff]
  %v50 = vld [vmem:[%s0 + $0xf0] sm:$0xff]
  %v51 = vld [vmem:[%s0 + $0xf8] sm:$0xff]
  %v52 = vld [vmem:[%s0 + $0x100] sm:$0xff]
  %v53 = vld [vmem:[%s0 + $0x108] sm:$0xff]
  %v54 = vld [vmem:[%s0 + $0x110] sm:$0xff]
  %v55 = vld [vmem:[%s0 + $0x118] sm:$0xff]
  %v56 = vld [vmem:[%s0 + $0x120] sm:$0xff]
  %v57 = vld [vmem:[%s0 + $0x128] sm:$0xff]
  %v58 = vld [vmem:[%s0 + $0x130] sm:$0xff]
  %v59 = vld [vmem:[%s0 + $0x138] sm:$0xff]
  %v60 = vld [vmem:[%s0 + $0x140] sm:$0xff]
  %v61 = vld [vmem:[%s0 + $0x148] sm:$0xff]
  %v62 = vld [vmem:[%s0 + $0x150] sm:$0xff]
  %v63 = vld [vmem:[%s0 + $0x158] sm:$0xff]
  %v64 = vld [vmem:[%s0 + $0x160] sm:$0xff]
  %v65 = vld [vmem:[%s0 + $0x168] sm:$0xff]
  %v66 = vld [vmem:[%s0 + $0x170] sm:$0xff]
  %v67 = vld [vmem:[%s0 + $0x178] sm:$0xff]
  %v68 = vld [vmem:[%s0 + $0x180] sm:$0xff]
  %v69 = vld [vmem:[%s1] sm:$0xff]
  %v70 = vld [vmem:[%s1 + $0x8] sm:$0xff]
  %v71 = vld [vmem:[%s1 + $0x10] sm:$0xff]
  %v72 = vld [vmem:[%s1 + $0x18] sm:$0xff]
  %v73 = vld [vmem:[%s1 + $0x20] sm:$0xff]
  %v74 = vld [vmem:[%s1 + $0x28] sm:$0xff]
  %v75 = vld [vmem:[%s1 + $0x30] sm:$0xff]
  %v76 = vld [vmem:[%s1 + $0x38] sm:$0xff]
  %v77 = vld [vmem:[%s1 + $0x40] sm:$0xff]
  %v78 = vld [vmem:[%s1 + $0x48] sm:$0xff]
  %v79 = vld [vmem:[%s1 + $0x50] sm:$0xff]
  %v80 = vld [vmem:[%s1 + $0x58] sm:$0xff]
  %v81 = vld [vmem:[%s1 + $0x60] sm:$0xff]
  %v82 = vld [vmem:[%s1 + $0x68] sm:$0xff]
  %v83 = vld [vmem:[%s1 + $0x70] sm:$0xff]
  %v84 = vld [vmem:[%s1 + $0x78] sm:$0xff]
  %v85 = vld [vmem:[%s1 + $0x80] sm:$0xff]
  %v86 = vld [vmem:[%s1 + $0x88] sm:$0xff]
  %v87 = vld [vmem:[%s1 + $0x90] sm:$0xff]
  %v88 = vld [vmem:[%s1 + $0x98] sm:$0xff]
  %v89 = vld [vmem:[%s1 + $0xa0] sm:$0xff]
  %v90 = vld [vmem:[%s1 + $0xa8] sm:$0xff]
  %v91 = vld [vmem:[%s1 + $0xb0] sm:$0xff]
  %v92 = vld [vmem:[%s1 + $0xb8] sm:$0xff]
  %v93 = vld [vmem:[%s1 + $0xc0] sm:$0xff]
  %v94 = vld [vmem:[%s1 + $0xc8] sm:$0xff]
  %v95 = vld [vmem:[%s1 + $0xd0] sm:$0xff]
  %v96 = vld [vmem:[%s1 + $0xd8] sm:$0xff]
  %v97 = vld [vmem:[%s1 + $0xe0] sm:$0xff]
  %v98 = vld [vmem:[%s1 + $0xe8] sm:$0xff]
  %v99 = vld [vmem:[%s1 + $0xf0] sm:$0xff]
  %v100 = vld [vmem:[%s1 + $0xf8] sm:$0xff]
  %v101 = vld [vmem:[%s1 + $0x100] sm:$0xff]
  %v102 = vld [vmem:[%s1 + $0x108] sm:$0xff]
  %v103 = vld [vmem:[%s1 + $0x110] sm:$0xff]
  %v104 = vld [vmem:[%s1 + $0x118] sm:$0xff]
  %v105 = vld [vmem:[%s1 + $0x120] sm:$0xff]
  %v106 = vld [vmem:[%s1 + $0x128] sm:$0xff]
  %v107 = vld [vmem:[%s1 + $0x130] sm:$0xff]
  %v108 = vld [vmem:[%s1 + $0x138] sm:$0xff]
  %v109 = vld [vmem:[%s1 + $0x140] sm:$0xff]
  %v110 = vld [vmem:[%s1 + $0x148] sm:$0xff]
  %v111 = vld [vmem:[%s1 + $0x150] sm:$0xff]
  %v112 = vld [vmem:[%s1 + $0x158] sm:$0xff]
  %v113 = vld [vmem:[%s1 + $0x160] sm:$0xff]
  %v114 = vld [vmem:[%s1 + $0x168] sm:$0xff]
  %v115 = vld [vmem:[%s1 + $0x170] sm:$0xff]
  %v116 = vld [vmem:[%s1 + $0x178] sm:$0xff]
  %v117 = vld [vmem:[%s1 + $0x180] sm:$0xff]
  %v118 = vld [vmem:[%s1 + $0x188] sm:$0xff]
  %v119 = vld [vmem:[%s1 + $0x190] sm:$0xff]
  %v120 = vld [vmem:[%s1 + $0x198] sm:$0xff]
  %v121 = vld [vmem:[%s1 + $0x1a0] sm:$0xff]
  %v122 = vld [vmem:[%s1 + $0x1a8] sm:$0xff]
  %v123 = vld [vmem:[%s1 + $0x1b0] sm:$0xff]
  %v124 = vld [vmem:[%s1 + $0x1b8] sm:$0xff]
  %v125 = vld [vmem:[%s1 + $0x1c0] sm:$0xff]
  %v126 = vld [vmem:[%s1 + $0x1c8] sm:$0xff]
  %v127 = vld [vmem:[%s1 + $0x1d0] sm:$0xff]
  %v128 = vld [vmem:[%s1 + $0x1d8] sm:$0xff]
  %v129 = vld [vmem:[%s1 + $0x1e0] sm:$0xff]
  %v130 = vld [vmem:[%s1 + $0x1e8] sm:$0xff]
  %v131 = vld [vmem:[%s1 + $0x1f0] sm:$0xff]
  %v132 = vld [vmem:[%s1 + $0x1f8] sm:$0xff]
  %v133 = vld [vmem:[%s1 + $0x200] sm:$0xff]
  %v134 = vld [vmem:[%s1 + $0x208] sm:$0xff]
  %v135 = vld [vmem:[%s1 + $0x210] sm:$0xff]
  %v136 = vld [vmem:[%s1 + $0x218] sm:$0xff]
  %v137 = vld [vmem:[%s1 + $0x220] sm:$0xff]
  %v138 = vld [vmem:[%s1 + $0x228] sm:$0xff]
  %v139 = vld [vmem:[%s1 + $0x230] sm:$0xff]
  %v140 = vld [vmem:[%s1 + $0x238] sm:$0xff]
  %v141 = vld [vmem:[%s1 + $0x240] sm:$0xff]
  %v142 = vld [vmem:[%s1 + $0x248] sm:$0xff]
  %v143 = vld [vmem:[%s1 + $0x250] sm:$0xff]
  %v144 = vld [vmem:[%s1 + $0x258] sm:$0xff]
  %v145 = vld [vmem:[%s1 + $0x260] sm:$0xff]
  %v146 = vld [vmem:[%s1 + $0x268] sm:$0xff]
  %v147 = vld [vmem:[%s1 + $0x270] sm:$0xff]
  %v148 = vld [vmem:[%s1 + $0x278] sm:$0xff]
  %v149 = vld [vmem:[%s1 + $0x280] sm:$0xff]
  %v150 = vld [vmem:[%s1 + $0x288] sm:$0xff]
  %v151 = vld [vmem:[%s1 + $0x290] sm:$0xff]
  %v152 = vld [vmem:[%s1 + $0x298] sm:$0xff]
  %v153 = vld [vmem:[%s1 + $0x2a0] sm:$0xff]
  %v154 = vld [vmem:[%s1 + $0x2a8] sm:$0xff]
  %v155 = vld [vmem:[%s1 + $0x2b0] sm:$0xff]
  %v156 = vld [vmem:[%s1 + $0x2b8] sm:$0xff]
  %v157 = vld [vmem:[%s1 + $0x2c0] sm:$0xff]
  %v158 = vld [vmem:[%s1 + $0x2c8] sm:$0xff]
  %v159 = vld [vmem:[%s1 + $0x2d0] sm:$0xff]
  %v160 = vld [vmem:[%s1 + $0x2d8] sm:$0xff]
  %v161 = vld [vmem:[%s1 + $0x2e0] sm:$0xff]
  %v162 = vld [vmem:[%s1 + $0x2e8] sm:$0xff]
  %v163 = vld [vmem:[%s1 + $0x2f0] sm:$0xff]
  %v164 = vld [vmem:[%s1 + $0x2f8] sm:$0xff]
  %v165 = vld [vmem:[%s1 + $0x300] sm:$0xff]
  %v166 = vld [vmem:[%s1 + $0x308] sm:$0xff]
  %v167 = vld [vmem:[%s1 + $0x310] sm:$0xff]
  %v168 = vld [vmem:[%s1 + $0x318] sm:$0xff]
  %v169 = vld [vmem:[%s1 + $0x320] sm:$0xff]
  %v170 = vld [vmem:[%s1 + $0x328] sm:$0xff]
  %v171 = vld [vmem:[%s1 + $0x330] sm:$0xff]
  %v172 = vld [vmem:[%s1 + $0x338] sm:$0xff]
  %v173 = vld [vmem:[%s1 + $0x340] sm:$0xff]
  %v174 = vld [vmem:[%s1 + $0x348] sm:$0xff]
  %v175 = vld [vmem:[%s1 + $0x350] sm:$0xff]
  %v176 = vld [vmem:[%s1 + $0x358] sm:$0xff]
  %v177 = vld [vmem:[%s1 + $0x360] sm:$0xff]
  %v178 = vld [vmem:[%s1 + $0x368] sm:$0xff]
  %v179 = vld [vmem:[%s1 + $0x370] sm:$0xff]
  %v180 = vld [vmem:[%s1 + $0x378] sm:$0xff]
  %v181 = vld [vmem:[%s1 + $0x380] sm:$0xff]
  %v182 = vld [vmem:[%s1 + $0x388] sm:$0xff]
  %v183 = vld [vmem:[%s1 + $0x390] sm:$0xff]
  %v184 = vld [vmem:[%s1 + $0x398] sm:$0xff]
  %v185 = vld [vmem:[%s1 + $0x3a0] sm:$0xff]
  %v186 = vld [vmem:[%s1 + $0x3a8] sm:$0xff]
  %v187 = vld [vmem:[%s1 + $0x3b0] sm:$0xff]
  %v188 = vld [vmem:[%s1 + $0x3b8] sm:$0xff]
  %v189 = vld [vmem:[%s1 + $0x3c0] sm:$0xff]
  %v190 = vld [vmem:[%s1 + $0x3c8] sm:$0xff]
  %v191 = vld [vmem:[%s1 + $0x3d0] sm:$0xff]
  %v192 = vld [vmem:[%s1 + $0x3d8] sm:$0xff]
  %v193 = vld [vmem:[%s1 + $0x3e0] sm:$0xff]
  %v194 = vld [vmem:[%s1 + $0x3e8] sm:$0xff]
  %v195 = vld [vmem:[%s1 + $0x3f0] sm:$0xff]
  %v196 = vld [vmem:[%s1 + $0x3f8] sm:$0xff]
  %v197 = vld [vmem:[%s1 + $0x400] sm:$0xff]
  %v198 = vld [vmem:[%s1 + $0x408] sm:$0xff]
  %v199 = vld [vmem:[%s1 + $0x410] sm:$0xff]
  %v200 = vld [vmem:[%s1 + $0x418] sm:$0xff]
  %v201 = vld [vmem:[%s1 + $0x420] sm:$0xff]
  %v202 = vld [vmem:[%s1 + $0x428] sm:$0xff]
  %v203 = vld [vmem:[%s1 + $0x430] sm:$0xff]
  %v204 = vld [vmem:[%s1 + $0x438] sm:$0xff]
  %v205 = vld [vmem:[%s1 + $0x440] sm:$0xff]
  %v206 = vld [vmem:[%s1 + $0x448] sm:$0xff]
  %v207 = vld [vmem:[%s1 + $0x450] sm:$0xff]
  %v208 = vld [vmem:[%s1 + $0x458] sm:$0xff]
  %v209 = vld [vmem:[%s1 + $0x460] sm:$0xff]
  %v210 = vld [vmem:[%s1 + $0x468] sm:$0xff]
  %v211 = vld [vmem:[%s1 + $0x470] sm:$0xff]
  %v212 = vld [vmem:[%s1 + $0x478] sm:$0xff]
  %v213 = vld [vmem:[%s1 + $0x480] sm:$0xff]
  %v214 = vld [vmem:[%s1 + $0x488] sm:$0xff]
  %v215 = vld [vmem:[%s1 + $0x490] sm:$0xff]
  %v216 = vld [vmem:[%s1 + $0x498] sm:$0xff]
  %v217 = vld [vmem:[%s1 + $0x4a0] sm:$0xff]
  %v218 = vld [vmem:[%s1 + $0x4a8] sm:$0xff]
  %v219 = vld [vmem:[%s1 + $0x4b0] sm:$0xff]
  %v220 = vld [vmem:[%s1 + $0x4b8] sm:$0xff]
  %v221 = vld [vmem:[%s1 + $0x4c0] sm:$0xff]
  %v222 = vld [vmem:[%s1 + $0x4c8] sm:$0xff]
  %v223 = vld [vmem:[%s1 + $0x4d0] sm:$0xff]
  %v224 = vld [vmem:[%s1 + $0x4d8] sm:$0xff]
  %v225 = vld [vmem:[%s1 + $0x4e0] sm:$0xff]
  %v226 = vld [vmem:[%s1 + $0x4e8] sm:$0xff]
  %v227 = vld [vmem:[%s1 + $0x4f0] sm:$0xff]
  %v228 = vld [vmem:[%s1 + $0x4f8] sm:$0xff]
  %v229 = vld [vmem:[%s1 + $0x500] sm:$0xff]
  %v230 = vld [vmem:[%s1 + $0x508] sm:$0xff]
  %v231 = vld [vmem:[%s1 + $0x510] sm:$0xff]
  %v232 = vld [vmem:[%s1 + $0x518] sm:$0xff]
  %v233 = vld [vmem:[%s1 + $0x520] sm:$0xff]
  %v234 = vld [vmem:[%s1 + $0x528] sm:$0xff]
  %v235 = vld [vmem:[%s1 + $0x530] sm:$0xff]
  %v236 = vld [vmem:[%s1 + $0x538] sm:$0xff]
  %v237 = vld [vmem:[%s1 + $0x540] sm:$0xff]
  %v238 = vld [vmem:[%s1 + $0x548] sm:$0xff]
  %v239 = vld [vmem:[%s1 + $0x550] sm:$0xff]
  %v240 = vld [vmem:[%s1 + $0x558] sm:$0xff]
  %v241 = vld [vmem:[%s1 + $0x560] sm:$0xff]
  %v242 = vld [vmem:[%s1 + $0x568] sm:$0xff]
  %v243 = vld [vmem:[%s1 + $0x570] sm:$0xff]
  %v244 = vld [vmem:[%s1 + $0x578] sm:$0xff]
  %v245 = vld [vmem:[%s1 + $0x580] sm:$0xff]
  %v246 = vld [vmem:[%s1 + $0x588] sm:$0xff]
  %v247 = vld [vmem:[%s1 + $0x590] sm:$0xff]
  %v248 = vld [vmem:[%s1 + $0x598] sm:$0xff]
  %v249 = vld [vmem:[%s1 + $0x5a0] sm:$0xff]
  %v250 = vld [vmem:[%s1 + $0x5a8] sm:$0xff]
  %v251 = vld [vmem:[%s1 + $0x5b0] sm:$0xff]
  %v252 = vld [vmem:[%s1 + $0x5b8] sm:$0xff]
  %v253 = vld [vmem:[%s1 + $0x5c0] sm:$0xff]
  %v254 = vld [vmem:[%s1 + $0x5c8] sm:$0xff]
  %v255 = vld [vmem:[%s1 + $0x5d0] sm:$0xff]
  %v256 = vld [vmem:[%s1 + $0x5d8] sm:$0xff]
  %v257 = vld [vmem:[%s1 + $0x5e0] sm:$0xff]
  %v258 = vld [vmem:[%s1 + $0x5e8] sm:$0xff]
  %v259 = vld [vmem:[%s1 + $0x5f0] sm:$0xff]
  %v260 = vld [vmem:[%s1 + $0x5f8] sm:$0xff]
  %v261 = vld [vmem:[%s1 + $0x600] sm:$0xff]
  %v262 = vld [vmem:[%s1 + $0x608] sm:$0xff]
  %v263 = vld [vmem:[%s1 + $0x610] sm:$0xff]
  %v264 = vld [vmem:[%s1 + $0x618] sm:$0xff]
  %v265 = vld [vmem:[%s1 + $0x620] sm:$0xff]
  %v266 = vld [vmem:[%s1 + $0x628] sm:$0xff]
  %v267 = vld [vmem:[%s1 + $0x630] sm:$0xff]
  %v268 = vld [vmem:[%s1 + $0x638] sm:$0xff]
  %v269 = vld [vmem:[%s1 + $0x640] sm:$0xff]
  %v270 = vld [vmem:[%s1 + $0x648] sm:$0xff]
  %v271 = vld [vmem:[%s1 + $0x650] sm:$0xff]
  %v272 = vld [vmem:[%s1 + $0x658] sm:$0xff]
  %v273 = vld [vmem:[%s1 + $0x660] sm:$0xff]
  %v274 = vld [vmem:[%s1 + $0x668] sm:$0xff]
  %v275 = vld [vmem:[%s1 + $0x670] sm:$0xff]
  %v276 = vld [vmem:[%s1 + $0x678] sm:$0xff]
  %v277 = vld [vmem:[%s1 + $0x680] sm:$0xff]
  %v278 = vld [vmem:[%s1 + $0x688] sm:$0xff]
  %v279 = vld [vmem:[%s1 + $0x690] sm:$0xff]
  %v280 = vld [vmem:[%s1 + $0x698] sm:$0xff]
  %v281 = vld [vmem:[%s1 + $0x6a0] sm:$0xff]
  %v282 = vld [vmem:[%s1 + $0x6a8] sm:$0xff]
  %v283 = vld [vmem:[%s1 + $0x6b0] sm:$0xff]
  %v284 = vld [vmem:[%s1 + $0x6b8] sm:$0xff]
  %v285 = vld [vmem:[%s1 + $0x6c0] sm:$0xff]
  %v286 = vld [vmem:[%s1 + $0x6c8] sm:$0xff]
  %v287 = vld [vmem:[%s1 + $0x6d0] sm:$0xff]
  %v288 = vld [vmem:[%s1 + $0x6d8] sm:$0xff]
  %v289 = vld [vmem:[%s1 + $0x6e0] sm:$0xff]
  %v290 = vld [vmem:[%s1 + $0x6e8] sm:$0xff]
  %v291 = vld [vmem:[%s1 + $0x6f0] sm:$0xff]
  %v292 = vld [vmem:[%s1 + $0x6f8] sm:$0xff]
  %v293 = vld [vmem:[%s1 + $0x700] sm:$0xff]
  %v294 = vld [vmem:[%s1 + $0x708] sm:$0xff]
  %v295 = vld [vmem:[%s1 + $0x710] sm:$0xff]
  %v296 = vld [vmem:[%s1 + $0x718] sm:$0xff]
  %v297 = vld [vmem:[%s1 + $0x720] sm:$0xff]
  %v298 = vld [vmem:[%s1 + $0x728] sm:$0xff]
  %v299 = vld [vmem:[%s1 + $0x730] sm:$0xff]
  %v300 = vld [vmem:[%s1 + $0x738] sm:$0xff]
  %v301 = vld [vmem:[%s1 + $0x740] sm:$0xff]
  %v302 = vld [vmem:[%s1 + $0x748] sm:$0xff]
  %v303 = vld [vmem:[%s1 + $0x750] sm:$0xff]
  %v304 = vld [vmem:[%s1 + $0x758] sm:$0xff]
  %v305 = vld [vmem:[%s1 + $0x760] sm:$0xff]
  %v306 = vld [vmem:[%s1 + $0x768] sm:$0xff]
  %v307 = vld [vmem:[%s1 + $0x770] sm:$0xff]
  %v308 = vld [vmem:[%s1 + $0x778] sm:$0xff]
  %v309 = vld [vmem:[%s1 + $0x780] sm:$0xff]
  %v310 = vld [vmem:[%s1 + $0x788] sm:$0xff]
  %v311 = vld [vmem:[%s1 + $0x790] sm:$0xff]
  %v312 = vld [vmem:[%s1 + $0x798] sm:$0xff]
  %v313 = vld [vmem:[%s1 + $0x7a0] sm:$0xff]
  %v314 = vld [vmem:[%s1 + $0x7a8] sm:$0xff]
  %v315 = vld [vmem:[%s1 + $0x7b0] sm:$0xff]
  %v316 = vld [vmem:[%s1 + $0x7b8] sm:$0xff]
  %v317 = vld [vmem:[%s1 + $0x7c0] sm:$0xff]
  %v318 = vld [vmem:[%s1 + $0x7c8] sm:$0xff]
  %v319 = vld [vmem:[%s1 + $0x7d0] sm:$0xff]
  %v320 = vld [vmem:[%s1 + $0x7d8] sm:$0xff]
  %v321 = vld [vmem:[%s1 + $0x7e0] sm:$0xff]
  %v322 = vld [vmem:[%s1 + $0x7e8] sm:$0xff]
  %v323 = vld [vmem:[%s1 + $0x7f0] sm:$0xff]
  %v324 = vld [vmem:[%s1 + $0x7f8] sm:$0xff]
  %v325 = vld [vmem:[%s1 + $0x800] sm:$0xff]
  %v326 = vld [vmem:[%s1 + $0x808] sm:$0xff]
  %v327 = vld [vmem:[%s1 + $0x810] sm:$0xff]
  %v328 = vld [vmem:[%s1 + $0x818] sm:$0xff]
  %v329 = vld [vmem:[%s1 + $0x820] sm:$0xff]
  %v330 = vld [vmem:[%s1 + $0x828] sm:$0xff]
  %v331 = vld [vmem:[%s1 + $0x830] sm:$0xff]
  %v332 = vld [vmem:[%s1 + $0x838] sm:$0xff]
  %v333 = vld [vmem:[%s1 + $0x840] sm:$0xff]
  %v334 = vld [vmem:[%s1 + $0x848] sm:$0xff]
  %v335 = vld [vmem:[%s1 + $0x850] sm:$0xff]
  %v336 = vld [vmem:[%s1 + $0x858] sm:$0xff]
  %v337 = vld [vmem:[%s1 + $0x860] sm:$0xff]
  %v338 = vld [vmem:[%s1 + $0x868] sm:$0xff]
  %v339 = vld [vmem:[%s1 + $0x870] sm:$0xff]
  %v340 = vld [vmem:[%s1 + $0x878] sm:$0xff]
  %v341 = vld [vmem:[%s1 + $0x880] sm:$0xff]
  %v342 = vld [vmem:[%s1 + $0x888] sm:$0xff]
  %v343 = vld [vmem:[%s1 + $0x890] sm:$0xff]
  %v344 = vld [vmem:[%s1 + $0x898] sm:$0xff]
  %v345 = vld [vmem:[%s1 + $0x8a0] sm:$0xff]
  %v346 = vld [vmem:[%s1 + $0x8a8] sm:$0xff]
  %v347 = vld [vmem:[%s1 + $0x8b0] sm:$0xff]
  %v348 = vld [vmem:[%s1 + $0x8b8] sm:$0xff]
  %v349 = vld [vmem:[%s1 + $0x8c0] sm:$0xff]
  %v350 = vld [vmem:[%s1 + $0x8c8] sm:$0xff]
  %v351 = vld [vmem:[%s1 + $0x8d0] sm:$0xff]
  %v352 = vld [vmem:[%s1 + $0x8d8] sm:$0xff]
  %v353 = vld [vmem:[%s1 + $0x8e0] sm:$0xff]
  %v354 = vld [vmem:[%s1 + $0x8e8] sm:$0xff]
  %v355 = vld [vmem:[%s1 + $0x8f0] sm:$0xff]
  %v356 = vld [vmem:[%s1 + $0x8f8] sm:$0xff]
  %v357 = vld [vmem:[%s1 + $0x900] sm:$0xff]
  %v358 = vld [vmem:[%s1 + $0x908] sm:$0xff]
  %v359 = vld [vmem:[%s1 + $0x910] sm:$0xff]
  %v360 = vld [vmem:[%s1 + $0x918] sm:$0xff]
  %v361 = vld [vmem:[%s1 + $0x920] sm:$0xff]
  %v362 = vld [vmem:[%s1 + $0x928] sm:$0xff]
  %v363 = vld [vmem:[%s1 + $0x930] sm:$0xff]
  %v364 = vld [vmem:[%s1 + $0x938] sm:$0xff]
  %v365 = vld [vmem:[%s1 + $0x940] sm:$0xff]
  %v366 = vld [vmem:[%s1 + $0x948] sm:$0xff]
  %v367 = vld [vmem:[%s1 + $0x950] sm:$0xff]
  %v368 = vld [vmem:[%s1 + $0x958] sm:$0xff]
  %v369 = vld [vmem:[%s1 + $0x960] sm:$0xff]
  %v370 = vld [vmem:[%s1 + $0x968] sm:$0xff]
  %v371 = vld [vmem:[%s1 + $0x970] sm:$0xff]
  %v372 = vld [vmem:[%s1 + $0x978] sm:$0xff]
  %v373 = vld [vmem:[%s1 + $0x980] sm:$0xff]
  %v374 = vld [vmem:[%s1 + $0x988] sm:$0xff]
  %v375 = vld [vmem:[%s1 + $0x990] sm:$0xff]
  %v376 = vld [vmem:[%s1 + $0x998] sm:$0xff]
  %v377 = vld [vmem:[%s1 + $0x9a0] sm:$0xff]
  %v378 = vld [vmem:[%s1 + $0x9a8] sm:$0xff]
  %v379 = vld [vmem:[%s1 + $0x9b0] sm:$0xff]
  %v380 = vld [vmem:[%s1 + $0x9b8] sm:$0xff]
  %v381 = vld [vmem:[%s1 + $0x9c0] sm:$0xff]
  %v382 = vld [vmem:[%s1 + $0x9c8] sm:$0xff]
  %v383 = vld [vmem:[%s1 + $0x9d0] sm:$0xff]
  %v384 = vld [vmem:[%s1 + $0x9d8] sm:$0xff]
  %v385 = vld [vmem:[%s1 + $0x9e0] sm:$0xff]
  %v386 = vld [vmem:[%s1 + $0x9e8] sm:$0xff]
  %v387 = vld [vmem:[%s1 + $0x9f0] sm:$0xff]
  %v388 = vld [vmem:[%s1 + $0x9f8] sm:$0xff]
  %v389 = vld [vmem:[%s1 + $0xa00] sm:$0xff]
  %v390 = vld [vmem:[%s1 + $0xa08] sm:$0xff]
  %v391 = vld [vmem:[%s1 + $0xa10] sm:$0xff]
  %v392 = vld [vmem:[%s1 + $0xa18] sm:$0xff]
  %v393 = vld [vmem:[%s1 + $0xa20] sm:$0xff]
  %v394 = vld [vmem:[%s1 + $0xa28] sm:$0xff]
  %v395 = vld [vmem:[%s1 + $0xa30] sm:$0xff]
  %v396 = vld [vmem:[%s1 + $0xa38] sm:$0xff]
  %v397 = vld [vmem:[%s1 + $0xa40] sm:$0xff]
  %v398 = vld [vmem:[%s1 + $0xa48] sm:$0xff]
  %v399 = vld [vmem:[%s1 + $0xa50] sm:$0xff]
  %v400 = vld [vmem:[%s1 + $0xa58] sm:$0xff]
  %v401 = vld [vmem:[%s1 + $0xa60] sm:$0xff]
  %v402 = vld [vmem:[%s1 + $0xa68] sm:$0xff]
  %v403 = vld [vmem:[%s1 + $0xa70] sm:$0xff]
  %v404 = vld [vmem:[%s1 + $0xa78] sm:$0xff]
  %v405 = vld [vmem:[%s1 + $0xa80] sm:$0xff]
  %v406 = vld [vmem:[%s1 + $0xa88] sm:$0xff]
  %v407 = vld [vmem:[%s1 + $0xa90] sm:$0xff]
  %v408 = vld [vmem:[%s1 + $0xa98] sm:$0xff]
  %v409 = vld [vmem:[%s1 + $0xaa0] sm:$0xff]
  %v410 = vld [vmem:[%s1 + $0xaa8] sm:$0xff]
  %v411 = vld [vmem:[%s1 + $0xab0] sm:$0xff]
  %v412 = vld [vmem:[%s1 + $0xab8] sm:$0xff]
  %v413 = vld [vmem:[%s1 + $0xac0] sm:$0xff]
  %v414 = vld [vmem:[%s1 + $0xac8] sm:$0xff]
  %v415 = vld [vmem:[%s1 + $0xad0] sm:$0xff]
  %v416 = vld [vmem:[%s1 + $0xad8] sm:$0xff]
  %v417 = vld [vmem:[%s1 + $0xae0] sm:$0xff]
  %v418 = vld [vmem:[%s1 + $0xae8] sm:$0xff]
  %v419 = vld [vmem:[%s1 + $0xaf0] sm:$0xff]
  %v420 = vld [vmem:[%s1 + $0xaf8] sm:$0xff]
  %v421 = vld [vmem:[%s1 + $0xb00] sm:$0xff]
  %v422 = vld [vmem:[%s1 + $0xb08] sm:$0xff]
  %v423 = vld [vmem:[%s1 + $0xb10] sm:$0xff]
  %v424 = vld [vmem:[%s1 + $0xb18] sm:$0xff]
  %v425 = vld [vmem:[%s1 + $0xb20] sm:$0xff]
  %v426 = vld [vmem:[%s1 + $0xb28] sm:$0xff]
  %v427 = vld [vmem:[%s1 + $0xb30] sm:$0xff]
  %v428 = vld [vmem:[%s1 + $0xb38] sm:$0xff]
  %v429 = vld [vmem:[%s1 + $0xb40] sm:$0xff]
  %v430 = vld [vmem:[%s1 + $0xb48] sm:$0xff]
  %v431 = vld [vmem:[%s1 + $0xb50] sm:$0xff]
  %v432 = vld [vmem:[%s1 + $0xb58] sm:$0xff]
  %v433 = vld [vmem:[%s1 + $0xb60] sm:$0xff]
  %v434 = vld [vmem:[%s1 + $0xb68] sm:$0xff]
  %v435 = vld [vmem:[%s1 + $0xb70] sm:$0xff]
  %v436 = vld [vmem:[%s1 + $0xb78] sm:$0xff]
  %v437 = vld [vmem:[%s1 + $0xb80] sm:$0xff]
  %v438 = vld [vmem:[%s1 + $0xb88] sm:$0xff]
  %v439 = vld [vmem:[%s1 + $0xb90] sm:$0xff]
  %v440 = vld [vmem:[%s1 + $0xb98] sm:$0xff]
  %v441 = vld [vmem:[%s1 + $0xba0] sm:$0xff]
  %v442 = vld [vmem:[%s1 + $0xba8] sm:$0xff]
  %v443 = vld [vmem:[%s1 + $0xbb0] sm:$0xff]
  %v444 = vld [vmem:[%s1 + $0xbb8] sm:$0xff]
  %v445 = vld [vmem:[%s1 + $0xbc0] sm:$0xff]
  %v446 = vld [vmem:[%s1 + $0xbc8] sm:$0xff]
  %v447 = vld [vmem:[%s1 + $0xbd0] sm:$0xff]
  %v448 = vld [vmem:[%s1 + $0xbd8] sm:$0xff]
  %v449 = vld [vmem:[%s1 + $0xbe0] sm:$0xff]
  %v450 = vld [vmem:[%s1 + $0xbe8] sm:$0xff]
  %v451 = vld [vmem:[%s1 + $0xbf0] sm:$0xff]
  %v452 = vld [vmem:[%s1 + $0xbf8] sm:$0xff]
  %v453 = vld [vmem:[%s1 + $0xc00] sm:$0xff]
  %v454 = vld [vmem:[%s1 + $0xc08] sm:$0xff]
  %v455 = vld [vmem:[%s1 + $0xc10] sm:$0xff]
  %v456 = vld [vmem:[%s1 + $0xc18] sm:$0xff]
  %v457 = vld [vmem:[%s1 + $0xc20] sm:$0xff]
  %v458 = vld [vmem:[%s1 + $0xc28] sm:$0xff]
  %v459 = vld [vmem:[%s1 + $0xc30] sm:$0xff]
  %v460 = vld [vmem:[%s1 + $0xc38] sm:$0xff]
  %v461 = vld [vmem:[%s1 + $0xc40] sm:$0xff]
  %v462 = vld [vmem:[%s1 + $0xc48] sm:$0xff]
  %v463 = vld [vmem:[%s1 + $0xc50] sm:$0xff]
  %v464 = vld [vmem:[%s1 + $0xc58] sm:$0xff]
  %v465 = vld [vmem:[%s1 + $0xc60] sm:$0xff]
  %v466 = vld [vmem:[%s1 + $0xc68] sm:$0xff]
  %v467 = vld [vmem:[%s1 + $0xc70] sm:$0xff]
  %v468 = vld [vmem:[%s1 + $0xc78] sm:$0xff]
  %v469 = vld [vmem:[%s1 + $0xc80] sm:$0xff]
  %v470 = vld [vmem:[%s1 + $0xc88] sm:$0xff]
  %v471 = vld [vmem:[%s1 + $0xc90] sm:$0xff]
  %v472 = vld [vmem:[%s1 + $0xc98] sm:$0xff]
  %v473 = vld [vmem:[%s1 + $0xca0] sm:$0xff]
  %v474 = vld [vmem:[%s1 + $0xca8] sm:$0xff]
  %v475 = vld [vmem:[%s1 + $0xcb0] sm:$0xff]
  %v476 = vld [vmem:[%s1 + $0xcb8] sm:$0xff]
  %v477 = vld [vmem:[%s1 + $0xcc0] sm:$0xff]
  %v478 = vld [vmem:[%s1 + $0xcc8] sm:$0xff]
  %v479 = vld [vmem:[%s1 + $0xcd0] sm:$0xff]
  %v480 = vld [vmem:[%s1 + $0xcd8] sm:$0xff]
  %v481 = vld [vmem:[%s1 + $0xce0] sm:$0xff]
  %v482 = vld [vmem:[%s1 + $0xce8] sm:$0xff]
  %v483 = vld [vmem:[%s1 + $0xcf0] sm:$0xff]
  %v484 = vld [vmem:[%s1 + $0xcf8] sm:$0xff]
  %v485 = vld [vmem:[%s1 + $0xd00] sm:$0xff]
  %v486 = vld [vmem:[%s1 + $0xd08] sm:$0xff]
  %v487 = vld [vmem:[%s1 + $0xd10] sm:$0xff]
  %v488 = vld [vmem:[%s1 + $0xd18] sm:$0xff]
  %v489 = vld [vmem:[%s1 + $0xd20] sm:$0xff]
  %v490 = vld [vmem:[%s1 + $0xd28] sm:$0xff]
  %v491 = vld [vmem:[%s1 + $0xd30] sm:$0xff]
  %v492 = vld [vmem:[%s1 + $0xd38] sm:$0xff]
  %v493 = vld [vmem:[%s1 + $0xd40] sm:$0xff]
  %v494 = vld [vmem:[%s1 + $0xd48] sm:$0xff]
  %v495 = vld [vmem:[%s1 + $0xd50] sm:$0xff]
  %v496 = vld [vmem:[%s1 + $0xd58] sm:$0xff]
  %v497 = vld [vmem:[%s1 + $0xd60] sm:$0xff]
  %v498 = vld [vmem:[%s1 + $0xd68] sm:$0xff]
  %v499 = vld [vmem:[%s1 + $0xd70] sm:$0xff]
  %v500 = vld [vmem:[%s1 + $0xd78] sm:$0xff]
  %v501 = vld [vmem:[%s1 + $0xd80] sm:$0xff]
  %v502 = vld [vmem:[%s1 + $0xd88] sm:$0xff]
  %v503 = vld [vmem:[%s1 + $0xd90] sm:$0xff]
  %v504 = vld [vmem:[%s1 + $0xd98] sm:$0xff]
  %v505 = vld [vmem:[%s1 + $0xda0] sm:$0xff]
  %v506 = vld [vmem:[%s1 + $0xda8] sm:$0xff]
  %v507 = vld [vmem:[%s1 + $0xdb0] sm:$0xff]
  %v508 = vld [vmem:[%s1 + $0xdb8] sm:$0xff]
  %v509 = vld [vmem:[%s1 + $0xdc0] sm:$0xff]
  %v510 = vld [vmem:[%s1 + $0xdc8] sm:$0xff]
  %v511 = vld [vmem:[%s1 + $0xdd0] sm:$0xff]
  %v512 = vld [vmem:[%s1 + $0xdd8] sm:$0xff]
  %v513 = vld [vmem:[%s1 + $0xde0] sm:$0xff]
  %v514 = vld [vmem:[%s1 + $0xde8] sm:$0xff]
  %v515 = vld [vmem:[%s1 + $0xdf0] sm:$0xff]
  %v516 = vld [vmem:[%s1 + $0xdf8] sm:$0xff]
  %v517 = vld [vmem:[%s1 + $0xe00] sm:$0xff]
  %v518 = vld [vmem:[%s1 + $0xe08] sm:$0xff]
  %v519 = vld [vmem:[%s1 + $0xe10] sm:$0xff]
  %v520 = vld [vmem:[%s1 + $0xe18] sm:$0xff]
  %v521 = vld [vmem:[%s1 + $0xe20] sm:$0xff]
  %v522 = vld [vmem:[%s1 + $0xe28] sm:$0xff]
  %v523 = vld [vmem:[%s1 + $0xe30] sm:$0xff]
  %v524 = vld [vmem:[%s1 + $0xe38] sm:$0xff]
  %v525 = vld [vmem:[%s1 + $0xe40] sm:$0xff]
  %v526 = vld [vmem:[%s1 + $0xe48] sm:$0xff]
  %v527 = vld [vmem:[%s1 + $0xe50] sm:$0xff]
  %v528 = vld [vmem:[%s1 + $0xe58] sm:$0xff]
  %v529 = vld [vmem:[%s1 + $0xe60] sm:$0xff]
  %v530 = vld [vmem:[%s1 + $0xe68] sm:$0xff]
  %v531 = vld [vmem:[%s1 + $0xe70] sm:$0xff]
  %v532 = vld [vmem:[%s1 + $0xe78] sm:$0xff]
  %v533 = vld [vmem:[%s1 + $0xe80] sm:$0xff]
  %v534 = vld [vmem:[%s1 + $0xe88] sm:$0xff]
  %v535 = vld [vmem:[%s1 + $0xe90] sm:$0xff]
  %v536 = vld [vmem:[%s1 + $0xe98] sm:$0xff]
  %v537 = vld [vmem:[%s1 + $0xea0] sm:$0xff]
  %v538 = vld [vmem:[%s1 + $0xea8] sm:$0xff]
  %v539 = vld [vmem:[%s1 + $0xeb0] sm:$0xff]
  %v540 = vld [vmem:[%s1 + $0xeb8] sm:$0xff]
  %v541 = vld [vmem:[%s1 + $0xec0] sm:$0xff]
  %v542 = vld [vmem:[%s1 + $0xec8] sm:$0xff]
  %v543 = vld [vmem:[%s1 + $0xed0] sm:$0xff]
  %v544 = vld [vmem:[%s1 + $0xed8] sm:$0xff]
  %v545 = vld [vmem:[%s1 + $0xee0] sm:$0xff]
  %v546 = vld [vmem:[%s1 + $0xee8] sm:$0xff]
  %v547 = vld [vmem:[%s1 + $0xef0] sm:$0xff]
  %v548 = vld [vmem:[%s1 + $0xef8] sm:$0xff]
  %v549 = vld [vmem:[%s1 + $0xf00] sm:$0xff]
  %v550 = vld [vmem:[%s1 + $0xf08] sm:$0xff]
  %v551 = vld [vmem:[%s1 + $0xf10] sm:$0xff]
  %v552 = vld [vmem:[%s1 + $0xf18] sm:$0xff]
  %v553 = vld [vmem:[%s1 + $0xf20] sm:$0xff]
  %v554 = vld [vmem:[%s1 + $0xf28] sm:$0xff]
  %v555 = vld [vmem:[%s1 + $0xf30] sm:$0xff]
  %v556 = vld [vmem:[%s1 + $0xf38] sm:$0xff]
  %v557 = vld [vmem:[%s1 + $0xf40] sm:$0xff]
  %v558 = vld [vmem:[%s1 + $0xf48] sm:$0xff]
  %v559 = vld [vmem:[%s1 + $0xf50] sm:$0xff]
  %v560 = vld [vmem:[%s1 + $0xf58] sm:$0xff]
  %v561 = vld [vmem:[%s1 + $0xf60] sm:$0xff]
  %v562 = vld [vmem:[%s1 + $0xf68] sm:$0xff]
  %v563 = vld [vmem:[%s1 + $0xf70] sm:$0xff]
  %v564 = vld [vmem:[%s1 + $0xf78] sm:$0xff]
  %v565 = vld [vmem:[%s1 + $0xf80] sm:$0xff]
  %v566 = vld [vmem:[%s1 + $0xf88] sm:$0xff]
  %v567 = vld [vmem:[%s1 + $0xf90] sm:$0xff]
  %v568 = vld [vmem:[%s1 + $0xf98] sm:$0xff]
  %v569 = vld [vmem:[%s1 + $0xfa0] sm:$0xff]
  %v570 = vld [vmem:[%s1 + $0xfa8] sm:$0xff]
  %v571 = vld [vmem:[%s1 + $0xfb0] sm:$0xff]
  %v572 = vld [vmem:[%s1 + $0xfb8] sm:$0xff]
  %v573 = vld [vmem:[%s1 + $0xfc0] sm:$0xff]
  %v574 = vld [vmem:[%s1 + $0xfc8] sm:$0xff]
  %v575 = vld [vmem:[%s1 + $0xfd0] sm:$0xff]
  %v576 = vld [vmem:[%s1 + $0xfd8] sm:$0xff]
  %v577 = vld [vmem:[%s1 + $0xfe0] sm:$0xff]
  %v578 = vld [vmem:[%s1 + $0xfe8] sm:$0xff]
  %v579 = vld [vmem:[%s1 + $0xff0] sm:$0xff]
  %v580 = vld [vmem:[%s1 + $0xff8] sm:$0xff]
  %v581 = vld [vmem:[%s1 + $0x1000] sm:$0xff]
  %v582 = vld [vmem:[%s1 + $0x1008] sm:$0xff]
  %v583 = vld [vmem:[%s1 + $0x1010] sm:$0xff]
  %v584 = vld [vmem:[%s1 + $0x1018] sm:$0xff]
  %v585 = vld [vmem:[%s1 + $0x1020] sm:$0xff]
  %v586 = vld [vmem:[%s1 + $0x1028] sm:$0xff]
  %v587 = vld [vmem:[%s1 + $0x1030] sm:$0xff]
  %v588 = vld [vmem:[%s1 + $0x1038] sm:$0xff]
  %v589 = vld [vmem:[%s1 + $0x1040] sm:$0xff]
  %v590 = vld [vmem:[%s1 + $0x1048] sm:$0xff]
  %v591 = vld [vmem:[%s1 + $0x1050] sm:$0xff]
  %v592 = vld [vmem:[%s1 + $0x1058] sm:$0xff]
  %v593 = vld [vmem:[%s1 + $0x1060] sm:$0xff]
  %v594 = vld [vmem:[%s1 + $0x1068] sm:$0xff]
  %v595 = vld [vmem:[%s1 + $0x1070] sm:$0xff]
  %v596 = vld [vmem:[%s1 + $0x1078] sm:$0xff]
  %v597 = vld [vmem:[%s1 + $0x1080] sm:$0xff]
  %v598 = vld [vmem:[%s1 + $0x1088] sm:$0xff]
  %v599 = vld [vmem:[%s1 + $0x1090] sm:$0xff]
  %v600 = vld [vmem:[%s1 + $0x1098] sm:$0xff]
  %v601 = vld [vmem:[%s1 + $0x10a0] sm:$0xff]
  %v602 = vld [vmem:[%s1 + $0x10a8] sm:$0xff]
  %v603 = vld [vmem:[%s1 + $0x10b0] sm:$0xff]
  %v604 = vld [vmem:[%s1 + $0x10b8] sm:$0xff]
  %v605 = vld [vmem:[%s1 + $0x10c0] sm:$0xff]
  %v606 = vld [vmem:[%s1 + $0x10c8] sm:$0xff]
  %v607 = vld [vmem:[%s1 + $0x10d0] sm:$0xff]
  %v608 = vld [vmem:[%s1 + $0x10d8] sm:$0xff]
  %v609 = vld [vmem:[%s1 + $0x10e0] sm:$0xff]
  %v610 = vld [vmem:[%s1 + $0x10e8] sm:$0xff]
  %v611 = vld [vmem:[%s1 + $0x10f0] sm:$0xff]
  %v612 = vld [vmem:[%s1 + $0x10f8] sm:$0xff]
  %v613 = vld [vmem:[%s1 + $0x1100] sm:$0xff]
  %v614 = vld [vmem:[%s1 + $0x1108] sm:$0xff]
  %v615 = vld [vmem:[%s1 + $0x1110] sm:$0xff]
  %v616 = vld [vmem:[%s1 + $0x1118] sm:$0xff]
  %v617 = vld [vmem:[%s1 + $0x1120] sm:$0xff]
  %v618 = vld [vmem:[%s1 + $0x1128] sm:$0xff]
  %v619 = vld [vmem:[%s1 + $0x1130] sm:$0xff]
  %v620 = vld [vmem:[%s1 + $0x1138] sm:$0xff]
  %v621 = vld [vmem:[%s1 + $0x1140] sm:$0xff]
  %v622 = vld [vmem:[%s1 + $0x1148] sm:$0xff]
  %v623 = vld [vmem:[%s1 + $0x1150] sm:$0xff]
  %v624 = vld [vmem:[%s1 + $0x1158] sm:$0xff]
  %v625 = vld [vmem:[%s1 + $0x1160] sm:$0xff]
  %v626 = vld [vmem:[%s1 + $0x1168] sm:$0xff]
  %v627 = vld [vmem:[%s1 + $0x1170] sm:$0xff]
  %v628 = vld [vmem:[%s1 + $0x1178] sm:$0xff]
  %v629 = vld [vmem:[%s1 + $0x1180] sm:$0xff]
  %v630 = vld [vmem:[%s1 + $0x1188] sm:$0xff]
  %v631 = vld [vmem:[%s1 + $0x1190] sm:$0xff]
  %v632 = vld [vmem:[%s1 + $0x1198] sm:$0xff]
  %v633 = vld [vmem:[%s1 + $0x11a0] sm:$0xff]
  %v634 = vld [vmem:[%s1 + $0x11a8] sm:$0xff]
  %v635 = vld [vmem:[%s1 + $0x11b0] sm:$0xff]
  %v636 = vld [vmem:[%s1 + $0x11b8] sm:$0xff]
  %v637 = vld [vmem:[%s1 + $0x11c0] sm:$0xff]
  %v638 = vld [vmem:[%s1 + $0x11c8] sm:$0xff]
  %v639 = vld [vmem:[%s1 + $0x11d0] sm:$0xff]
  %v640 = vld [vmem:[%s1 + $0x11d8] sm:$0xff]
  %v641 = vld [vmem:[%s1 + $0x11e0] sm:$0xff]
  %v642 = vld [vmem:[%s1 + $0x11e8] sm:$0xff]
  %v643 = vld [vmem:[%s1 + $0x11f0] sm:$0xff]
  %v644 = vld [vmem:[%s1 + $0x11f8] sm:$0xff]
  %v645 = vld [vmem:[%s1 + $0x1200] sm:$0xff]
  %v646 = vld [vmem:[%s1 + $0x1208] sm:$0xff]
  %v647 = vld [vmem:[%s1 + $0x1210] sm:$0xff]
  %v648 = vld [vmem:[%s1 + $0x1218] sm:$0xff]
  %v649 = vld [vmem:[%s1 + $0x1220] sm:$0xff]
  %v650 = vld [vmem:[%s1 + $0x1228] sm:$0xff]
  %v651 = vld [vmem:[%s1 + $0x1230] sm:$0xff]
  %v652 = vld [vmem:[%s1 + $0x1238] sm:$0xff]
  %v653 = vld [vmem:[%s1 + $0x1240] sm:$0xff]
  %v654 = vld [vmem:[%s1 + $0x1248] sm:$0xff]
  %v655 = vld [vmem:[%s1 + $0x1250] sm:$0xff]
  %v656 = vld [vmem:[%s1 + $0x1258] sm:$0xff]
  %v657 = vld [vmem:[%s1 + $0x1260] sm:$0xff]
  %v658 = vld [vmem:[%s1 + $0x1268] sm:$0xff]
  %v659 = vld [vmem:[%s1 + $0x1270] sm:$0xff]
  %v660 = vld [vmem:[%s1 + $0x1278] sm:$0xff]
  %v661 = vld [vmem:[%s1 + $0x1280] sm:$0xff]
  %v662 = vld [vmem:[%s1 + $0x1288] sm:$0xff]
  %v663 = vld [vmem:[%s1 + $0x1290] sm:$0xff]
  %v664 = vld [vmem:[%s1 + $0x1298] sm:$0xff]
  %v665 = vld [vmem:[%s1 + $0x12a0] sm:$0xff]
  %v666 = vld [vmem:[%s1 + $0x12a8] sm:$0xff]
  %v667 = vld [vmem:[%s1 + $0x12b0] sm:$0xff]
  %v668 = vld [vmem:[%s1 + $0x12b8] sm:$0xff]
  %v669 = vld [vmem:[%s1 + $0x12c0] sm:$0xff]
  %v670 = vld [vmem:[%s1 + $0x12c8] sm:$0xff]
  %v671 = vld [vmem:[%s1 + $0x12d0] sm:$0xff]
  %v672 = vld [vmem:[%s1 + $0x12d8] sm:$0xff]
  %v673 = vld [vmem:[%s1 + $0x12e0] sm:$0xff]
  %v674 = vld [vmem:[%s1 + $0x12e8] sm:$0xff]
  %v675 = vld [vmem:[%s1 + $0x12f0] sm:$0xff]
  %v676 = vld [vmem:[%s1 + $0x12f8] sm:$0xff]
  %v677 = vld [vmem:[%s1 + $0x1300] sm:$0xff]
  %v678 = vld [vmem:[%s1 + $0x1308] sm:$0xff]
  %v679 = vld [vmem:[%s1 + $0x1310] sm:$0xff]
  %v680 = vld [vmem:[%s1 + $0x1318] sm:$0xff]
  %v681 = vld [vmem:[%s1 + $0x1320] sm:$0xff]
  %v682 = vld [vmem:[%s1 + $0x1328] sm:$0xff]
  %v683 = vld [vmem:[%s1 + $0x1330] sm:$0xff]
  %v684 = vld [vmem:[%s1 + $0x1338] sm:$0xff]
  %v685 = vld [vmem:[%s1 + $0x1340] sm:$0xff]
  %v686 = vld [vmem:[%s1 + $0x1348] sm:$0xff]
  %v687 = vld [vmem:[%s1 + $0x1350] sm:$0xff]
  %v688 = vld [vmem:[%s1 + $0x1358] sm:$0xff]
  %v689 = vld [vmem:[%s1 + $0x1360] sm:$0xff]
  %v690 = vld [vmem:[%s1 + $0x1368] sm:$0xff]
  %v691 = vld [vmem:[%s1 + $0x1370] sm:$0xff]
  %v692 = vld [vmem:[%s1 + $0x1378] sm:$0xff]
  %v693 = vld [vmem:[%s1 + $0x1380] sm:$0xff]
  %v694 = vld [vmem:[%s1 + $0x1388] sm:$0xff]
  %v695 = vld [vmem:[%s1 + $0x1390] sm:$0xff]
  %v696 = vld [vmem:[%s1 + $0x1398] sm:$0xff]
  %v697 = vld [vmem:[%s1 + $0x13a0] sm:$0xff]
  %v698 = vld [vmem:[%s1 + $0x13a8] sm:$0xff]
  %v699 = vld [vmem:[%s1 + $0x13b0] sm:$0xff]
  %v700 = vld [vmem:[%s1 + $0x13b8] sm:$0xff]
  %v701 = vld [vmem:[%s1 + $0x13c0] sm:$0xff]
  %v702 = vld [vmem:[%s1 + $0x13c8] sm:$0xff]
  %v703 = vld [vmem:[%s1 + $0x13d0] sm:$0xff]
  %v704 = vld [vmem:[%s1 + $0x13d8] sm:$0xff]
  %v705 = vld [vmem:[%s1 + $0x13e0] sm:$0xff]
  %v706 = vld [vmem:[%s1 + $0x13e8] sm:$0xff]
  %v707 = vld [vmem:[%s1 + $0x13f0] sm:$0xff]
  %v708 = vld [vmem:[%s1 + $0x13f8] sm:$0xff]
  %v709 = vld [vmem:[%s1 + $0x1400] sm:$0xff]
  %v710 = vld [vmem:[%s1 + $0x1408] sm:$0xff]
  %v711 = vld [vmem:[%s1 + $0x1410] sm:$0xff]
  %v712 = vld [vmem:[%s1 + $0x1418] sm:$0xff]
  %v713 = vld [vmem:[%s1 + $0x1420] sm:$0xff]
  %v714 = vld [vmem:[%s1 + $0x1428] sm:$0xff]
  %v715 = vld [vmem:[%s1 + $0x1430] sm:$0xff]
  %v716 = vld [vmem:[%s1 + $0x1438] sm:$0xff]
  %v717 = vld [vmem:[%s1 + $0x1440] sm:$0xff]
  %v718 = vld [vmem:[%s1 + $0x1448] sm:$0xff]
  %v719 = vld [vmem:[%s1 + $0x1450] sm:$0xff]
  %v720 = vld [vmem:[%s1 + $0x1458] sm:$0xff]
  %v721 = vld [vmem:[%s1 + $0x1460] sm:$0xff]
  %v722 = vld [vmem:[%s1 + $0x1468] sm:$0xff]
  %v723 = vld [vmem:[%s1 + $0x1470] sm:$0xff]
  %v724 = vld [vmem:[%s1 + $0x1478] sm:$0xff]
  %v725 = vld [vmem:[%s1 + $0x1480] sm:$0xff]
  %v726 = vld [vmem:[%s1 + $0x1488] sm:$0xff]
  %v727 = vld [vmem:[%s1 + $0x1490] sm:$0xff]
  %v728 = vld [vmem:[%s1 + $0x1498] sm:$0xff]
  %v729 = vld [vmem:[%s1 + $0x14a0] sm:$0xff]
  %v730 = vld [vmem:[%s1 + $0x14a8] sm:$0xff]
  %v731 = vld [vmem:[%s1 + $0x14b0] sm:$0xff]
  %v732 = vld [vmem:[%s1 + $0x14b8] sm:$0xff]
  %v733 = vld [vmem:[%s1 + $0x14c0] sm:$0xff]
  %v734 = vld [vmem:[%s1 + $0x14c8] sm:$0xff]
  %v735 = vld [vmem:[%s1 + $0x14d0] sm:$0xff]
  %v736 = vld [vmem:[%s1 + $0x14d8] sm:$0xff]
  %v737 = vld [vmem:[%s1 + $0x14e0] sm:$0xff]
  %v738 = vld [vmem:[%s1 + $0x14e8] sm:$0xff]
  %v739 = vld [vmem:[%s1 + $0x14f0] sm:$0xff]
  %v740 = vld [vmem:[%s1 + $0x14f8] sm:$0xff]
  %v741 = vld [vmem:[%s1 + $0x1500] sm:$0xff]
  %v742 = vld [vmem:[%s1 + $0x1508] sm:$0xff]
  %v743 = vld [vmem:[%s1 + $0x1510] sm:$0xff]
  %v744 = vld [vmem:[%s1 + $0x1518] sm:$0xff]
  %v745 = vld [vmem:[%s1 + $0x1520] sm:$0xff]
  %v746 = vld [vmem:[%s1 + $0x1528] sm:$0xff]
  %v747 = vld [vmem:[%s1 + $0x1530] sm:$0xff]
  %v748 = vld [vmem:[%s1 + $0x1538] sm:$0xff]
  %v749 = vld [vmem:[%s1 + $0x1540] sm:$0xff]
  %v750 = vld [vmem:[%s1 + $0x1548] sm:$0xff]
  %v751 = vld [vmem:[%s1 + $0x1550] sm:$0xff]
  %v752 = vld [vmem:[%s1 + $0x1558] sm:$0xff]
  %v753 = vld [vmem:[%s1 + $0x1560] sm:$0xff]
  %v754 = vld [vmem:[%s1 + $0x1568] sm:$0xff]
  %v755 = vld [vmem:[%s1 + $0x1570] sm:$0xff]
  %v756 = vld [vmem:[%s1 + $0x1578] sm:$0xff]
  %v757 = vld [vmem:[%s1 + $0x1580] sm:$0xff]
  %v758 = vld [vmem:[%s1 + $0x1588] sm:$0xff]
  %v759 = vld [vmem:[%s1 + $0x1590] sm:$0xff]
  %v760 = vld [vmem:[%s1 + $0x1598] sm:$0xff]
  %v761 = vld [vmem:[%s1 + $0x15a0] sm:$0xff]
  %v762 = vld [vmem:[%s1 + $0x15a8] sm:$0xff]
  %v763 = vld [vmem:[%s1 + $0x15b0] sm:$0xff]
  %v764 = vld [vmem:[%s1 + $0x15b8] sm:$0xff]
  %v765 = vld [vmem:[%s1 + $0x15c0] sm:$0xff]
  %v766 = vld [vmem:[%s1 + $0x15c8] sm:$0xff]
  %v767 = vld [vmem:[%s1 + $0x15d0] sm:$0xff]
  %v768 = vld [vmem:[%s1 + $0x15d8] sm:$0xff]
  %v769 = vld [vmem:[%s1 + $0x15e0] sm:$0xff]
  %v770 = vld [vmem:[%s1 + $0x15e8] sm:$0xff]
  %v771 = vld [vmem:[%s1 + $0x15f0] sm:$0xff]
  %v772 = vld [vmem:[%s1 + $0x15f8] sm:$0xff]
  %v773 = vld [vmem:[%s1 + $0x1600] sm:$0xff]
  %v774 = vld [vmem:[%s1 + $0x1608] sm:$0xff]
  %v775 = vld [vmem:[%s1 + $0x1610] sm:$0xff]
  %v776 = vld [vmem:[%s1 + $0x1618] sm:$0xff]
  %v777 = vld [vmem:[%s1 + $0x1620] sm:$0xff]
  %v778 = vld [vmem:[%s1 + $0x1628] sm:$0xff]
  %v779 = vld [vmem:[%s1 + $0x1630] sm:$0xff]
  %v780 = vld [vmem:[%s1 + $0x1638] sm:$0xff]
  %v781 = vld [vmem:[%s1 + $0x1640] sm:$0xff]
  %v782 = vld [vmem:[%s1 + $0x1648] sm:$0xff]
  %v783 = vld [vmem:[%s1 + $0x1650] sm:$0xff]
  %v784 = vld [vmem:[%s1 + $0x1658] sm:$0xff]
  %v785 = vld [vmem:[%s1 + $0x1660] sm:$0xff]
  %v786 = vld [vmem:[%s1 + $0x1668] sm:$0xff]
  %v787 = vld [vmem:[%s1 + $0x1670] sm:$0xff]
  %v788 = vld [vmem:[%s1 + $0x1678] sm:$0xff]
  %v789 = vld [vmem:[%s1 + $0x1680] sm:$0xff]
  %v790 = vld [vmem:[%s1 + $0x1688] sm:$0xff]
  %v791 = vld [vmem:[%s1 + $0x1690] sm:$0xff]
  %v792 = vld [vmem:[%s1 + $0x1698] sm:$0xff]
  %v793 = vld [vmem:[%s1 + $0x16a0] sm:$0xff]
  %v794 = vld [vmem:[%s1 + $0x16a8] sm:$0xff]
  %v795 = vld [vmem:[%s1 + $0x16b0] sm:$0xff]
  %v796 = vld [vmem:[%s1 + $0x16b8] sm:$0xff]
  %v797 = vld [vmem:[%s1 + $0x16c0] sm:$0xff]
  %v798 = vld [vmem:[%s1 + $0x16c8] sm:$0xff]
  %v799 = vld [vmem:[%s1 + $0x16d0] sm:$0xff]
  %v800 = vld [vmem:[%s1 + $0x16d8] sm:$0xff]
  %v801 = vld [vmem:[%s1 + $0x16e0] sm:$0xff]
  %v802 = vld [vmem:[%s1 + $0x16e8] sm:$0xff]
  %v803 = vld [vmem:[%s1 + $0x16f0] sm:$0xff]
  %v804 = vld [vmem:[%s1 + $0x16f8] sm:$0xff]
  %v805 = vld [vmem:[%s1 + $0x1700] sm:$0xff]
  %v806 = vld [vmem:[%s1 + $0x1708] sm:$0xff]
  %v807 = vld [vmem:[%s1 + $0x1710] sm:$0xff]
  %v808 = vld [vmem:[%s1 + $0x1718] sm:$0xff]
  %v809 = vld [vmem:[%s1 + $0x1720] sm:$0xff]
  %v810 = vld [vmem:[%s1 + $0x1728] sm:$0xff]
  %v811 = vld [vmem:[%s1 + $0x1730] sm:$0xff]
  %v812 = vld [vmem:[%s1 + $0x1738] sm:$0xff]
  %v813 = vld [vmem:[%s1 + $0x1740] sm:$0xff]
  %v814 = vld [vmem:[%s1 + $0x1748] sm:$0xff]
  %v815 = vld [vmem:[%s1 + $0x1750] sm:$0xff]
  %v816 = vld [vmem:[%s1 + $0x1758] sm:$0xff]
  %v817 = vld [vmem:[%s1 + $0x1760] sm:$0xff]
  %v818 = vld [vmem:[%s1 + $0x1768] sm:$0xff]
  %v819 = vld [vmem:[%s1 + $0x1770] sm:$0xff]
  %v820 = vld [vmem:[%s1 + $0x1778] sm:$0xff]
  %v821 = vld [vmem:[%s1 + $0x1780] sm:$0xff]
  %v822 = vld [vmem:[%s1 + $0x1788] sm:$0xff]
  %v823 = vld [vmem:[%s1 + $0x1790] sm:$0xff]
  %v824 = vld [vmem:[%s1 + $0x1798] sm:$0xff]
  %v825 = vld [vmem:[%s1 + $0x17a0] sm:$0xff]
  %v826 = vld [vmem:[%s1 + $0x17a8] sm:$0xff]
  %v827 = vld [vmem:[%s1 + $0x17b0] sm:$0xff]
  %v828 = vld [vmem:[%s1 + $0x17b8] sm:$0xff]
  %v829 = vld [vmem:[%s1 + $0x17c0] sm:$0xff]
  %v830 = vld [vmem:[%s1 + $0x17c8] sm:$0xff]
  %v831 = vld [vmem:[%s1 + $0x17d0] sm:$0xff]
  %v832 = vld [vmem:[%s1 + $0x17d8] sm:$0xff]
  %v833 = vld [vmem:[%s1 + $0x17e0] sm:$0xff]
  %v834 = vld [vmem:[%s1 + $0x17e8] sm:$0xff]
  %v835 = vld [vmem:[%s1 + $0x17f0] sm:$0xff]
  %v836 = vld [vmem:[%s1 + $0x17f8] sm:$0xff]
  %v837 = vld [vmem:[%s1 + $0x1800] sm:$0xff]
  %v838 = vld [vmem:[%s1 + $0x1808] sm:$0xff]
  %v839 = vld [vmem:[%s1 + $0x1810] sm:$0xff]
  %v840 = vld [vmem:[%s1 + $0x1818] sm:$0xff]
  %v841 = vld [vmem:[%s1 + $0x1820] sm:$0xff]
  %v842 = vld [vmem:[%s1 + $0x1828] sm:$0xff]
  %v843 = vld [vmem:[%s1 + $0x1830] sm:$0xff]
  %v844 = vld [vmem:[%s1 + $0x1838] sm:$0xff]
  %v845 = vld [vmem:[%s1 + $0x1840] sm:$0xff]
  %v846 = vld [vmem:[%s1 + $0x1848] sm:$0xff]
  %v847 = vld [vmem:[%s1 + $0x1850] sm:$0xff]
  %v848 = vld [vmem:[%s1 + $0x1858] sm:$0xff]
  %v849 = vld [vmem:[%s1 + $0x1860] sm:$0xff]
  %v850 = vld [vmem:[%s1 + $0x1868] sm:$0xff]
  %v851 = vld [vmem:[%s1 + $0x1870] sm:$0xff]
  %v852 = vld [vmem:[%s1 + $0x1878] sm:$0xff]
  %v853 = vld [vmem:[%s2] sm:$0x1]
  %v855 = vlaneseq
  %v856 = vshrl.u32 %v855, 7
  %v857 = vsub.s32 0, %v856
  %v858 = vrot.slane %v853, %v857
  %860 = vmatprep.subr.mxu0 0.0
  %861 = vmatpush1.msra.mxu0 %v84
  %862 = vmatprep.subr.mxu0 0.0
  %863 = vmatpush1.msra.mxu0 %v83
  %864 = vmatprep.subr.mxu0 0.0
  %865 = vmatpush1.msra.mxu0 %v82
  %866 = vmatprep.subr.mxu0 0.0
  %867 = vmatpush1.msra.mxu0 %v81
  %868 = vmatprep.subr.mxu0 0.0
  %869 = vmatpush1.msra.mxu0 %v80
  %870 = vmatprep.subr.mxu0 0.0
  %871 = vmatpush1.msra.mxu0 %v79
  %872 = vmatprep.subr.mxu0 0.0
  %873 = vmatpush1.msra.mxu0 %v78
  %874 = vmatprep.subr.mxu0 0.0
  %875 = vmatpush1.msra.mxu0 %v77
  %876 = vmatprep.subr.mxu0 0.0
  %877 = vmatpush1.msra.mxu0 %v76
  %878 = vmatprep.subr.mxu0 0.0
  %879 = vmatpush1.msra.mxu0 %v75
  %880 = vmatprep.subr.mxu0 0.0
  %881 = vmatpush1.msra.mxu0 %v74
  %882 = vmatprep.subr.mxu0 0.0
  %883 = vmatpush1.msra.mxu0 %v73
  %884 = vmatprep.subr.mxu0 0.0
  %885 = vmatpush1.msra.mxu0 %v72
  %886 = vmatprep.subr.mxu0 0.0
  %887 = vmatpush1.msra.mxu0 %v71
  %888 = vmatprep.subr.mxu0 0.0
  %889 = vmatpush1.msra.mxu0 %v70
  %890 = vmatprep.subr.mxu0 0.0
  %891 = vmatpush1.msra.mxu0 %v69
  %892 = vmatprep.subr.mxu0 0.0
  %893 = vmatpush2.msra.mxu0 %v100
  %894 = vmatprep.subr.mxu0 0.0
  %895 = vmatpush2.msra.mxu0 %v99
  %896 = vmatprep.subr.mxu0 0.0
  %897 = vmatpush2.msra.mxu0 %v98
  %898 = vmatprep.subr.mxu0 0.0
  %899 = vmatpush2.msra.mxu0 %v97
  %900 = vmatprep.subr.mxu0 0.0
  %901 = vmatpush2.msra.mxu0 %v96
  %902 = vmatprep.subr.mxu0 0.0
  %903 = vmatpush2.msra.mxu0 %v95
  %904 = vmatprep.subr.mxu0 0.0
  %905 = vmatpush2.msra.mxu0 %v94
  %906 = vmatprep.subr.mxu0 0.0
  %907 = vmatpush2.msra.mxu0 %v93
  %908 = vmatprep.subr.mxu0 0.0
  %909 = vmatpush2.msra.mxu0 %v92
  %910 = vmatprep.subr.mxu0 0.0
  %911 = vmatpush2.msra.mxu0 %v91
  %912 = vmatprep.subr.mxu0 0.0
  %913 = vmatpush2.msra.mxu0 %v90
  %914 = vmatprep.subr.mxu0 0.0
  %915 = vmatpush2.msra.mxu0 %v89
  %916 = vmatprep.subr.mxu0 0.0
  %917 = vmatpush2.msra.mxu0 %v88
  %918 = vmatprep.subr.mxu0 0.0
  %919 = vmatpush2.msra.mxu0 %v87
  %920 = vmatprep.subr.mxu0 0.0
  %921 = vmatpush2.msra.mxu0 %v86
  %922 = vmatprep.subr.mxu0 0.0
  %923 = vmatpush2.msra.mxu0 %v85
  %924 = vmatprep.mubr.f32.mxu0 %v21
  %925 = vmatmul.mubr.f32.gmra.mxu0 %v20
  %v926 = vpop.f32.mrf.mxu0
  %v927 = vadd.f32 %v858, %v926
  %v928 = vpop.f32.mrf.mxu0
  %929 = vdwg.mxu0
  %930 = vmatprep.subr.mxu0 0.0
  %931 = vmatpush1.msra.mxu0 %v116
  %932 = vmatprep.subr.mxu0 0.0
  %933 = vmatpush1.msra.mxu0 %v115
  %934 = vmatprep.subr.mxu0 0.0
  %935 = vmatpush1.msra.mxu0 %v114
  %936 = vmatprep.subr.mxu0 0.0
  %937 = vmatpush1.msra.mxu0 %v113
  %938 = vmatprep.subr.mxu0 0.0
  %939 = vmatpush1.msra.mxu0 %v112
  %940 = vmatprep.subr.mxu0 0.0
  %941 = vmatpush1.msra.mxu0 %v111
  %942 = vmatprep.subr.mxu0 0.0
  %943 = vmatpush1.msra.mxu0 %v110
  %944 = vmatprep.subr.mxu0 0.0
  %945 = vmatpush1.msra.mxu0 %v109
  %946 = vmatprep.subr.mxu0 0.0
  %947 = vmatpush1.msra.mxu0 %v108
  %948 = vmatprep.subr.mxu0 0.0
  %949 = vmatpush1.msra.mxu0 %v107
  %950 = vmatprep.subr.mxu0 0.0
  %951 = vmatpush1.msra.mxu0 %v106
  %952 = vmatprep.subr.mxu0 0.0
  %953 = vmatpush1.msra.mxu0 %v105
  %954 = vmatprep.subr.mxu0 0.0
  %955 = vmatpush1.msra.mxu0 %v104
  %956 = vmatprep.subr.mxu0 0.0
  %957 = vmatpush1.msra.mxu0 %v103
  %958 = vmatprep.subr.mxu0 0.0
  %959 = vmatpush1.msra.mxu0 %v102
  %960 = vmatprep.subr.mxu0 0.0
  %961 = vmatpush1.msra.mxu0 %v101
  %962 = vmatprep.subr.mxu0 0.0
  %963 = vmatpush2.msra.mxu0 %v132
  %964 = vmatprep.subr.mxu0 0.0
  %965 = vmatpush2.msra.mxu0 %v131
  %966 = vmatprep.subr.mxu0 0.0
  %967 = vmatpush2.msra.mxu0 %v130
  %968 = vmatprep.subr.mxu0 0.0
  %969 = vmatpush2.msra.mxu0 %v129
  %970 = vmatprep.subr.mxu0 0.0
  %971 = vmatpush2.msra.mxu0 %v128
  %972 = vmatprep.subr.mxu0 0.0
  %973 = vmatpush2.msra.mxu0 %v127
  %974 = vmatprep.subr.mxu0 0.0
  %975 = vmatpush2.msra.mxu0 %v126
  %976 = vmatprep.subr.mxu0 0.0
  %977 = vmatpush2.msra.mxu0 %v125
  %978 = vmatprep.subr.mxu0 0.0
  %979 = vmatpush2.msra.mxu0 %v124
  %980 = vmatprep.subr.mxu0 0.0
  %981 = vmatpush2.msra.mxu0 %v123
  %982 = vmatprep.subr.mxu0 0.0
  %983 = vmatpush2.msra.mxu0 %v122
  %984 = vmatprep.subr.mxu0 0.0
  %985 = vmatpush2.msra.mxu0 %v121
  %986 = vmatprep.subr.mxu0 0.0
  %987 = vmatpush2.msra.mxu0 %v120
  %988 = vmatprep.subr.mxu0 0.0
  %989 = vmatpush2.msra.mxu0 %v119
  %990 = vmatprep.subr.mxu0 0.0
  %991 = vmatpush2.msra.mxu0 %v118
  %992 = vmatprep.subr.mxu0 0.0
  %993 = vmatpush2.msra.mxu0 %v117
  %994 = vmatprep.mubr.f32.mxu0 %v23
  %995 = vmatmul.mubr.f32.gmra.mxu0 %v22
  %v996 = vpop.f32.mrf.mxu0
  %v997 = vadd.f32 %v927, %v996
  %v998 = vpop.f32.mrf.mxu0
  %999 = vdwg.mxu0
  %1000 = vmatprep.subr.mxu0 0.0
  %1001 = vmatpush1.msra.mxu0 %v148
  %1002 = vmatprep.subr.mxu0 0.0
  %1003 = vmatpush1.msra.mxu0 %v147
  %1004 = vmatprep.subr.mxu0 0.0
  %1005 = vmatpush1.msra.mxu0 %v146
  %1006 = vmatprep.subr.mxu0 0.0
  %1007 = vmatpush1.msra.mxu0 %v145
  %1008 = vmatprep.subr.mxu0 0.0
  %1009 = vmatpush1.msra.mxu0 %v144
  %1010 = vmatprep.subr.mxu0 0.0
  %1011 = vmatpush1.msra.mxu0 %v143
  %1012 = vmatprep.subr.mxu0 0.0
  %1013 = vmatpush1.msra.mxu0 %v142
  %1014 = vmatprep.subr.mxu0 0.0
  %1015 = vmatpush1.msra.mxu0 %v141
  %1016 = vmatprep.subr.mxu0 0.0
  %1017 = vmatpush1.msra.mxu0 %v140
  %1018 = vmatprep.subr.mxu0 0.0
  %1019 = vmatpush1.msra.mxu0 %v139
  %1020 = vmatprep.subr.mxu0 0.0
  %1021 = vmatpush1.msra.mxu0 %v138
  %1022 = vmatprep.subr.mxu0 0.0
  %1023 = vmatpush1.msra.mxu0 %v137
  %1024 = vmatprep.subr.mxu0 0.0
  %1025 = vmatpush1.msra.mxu0 %v136
  %1026 = vmatprep.subr.mxu0 0.0
  %1027 = vmatpush1.msra.mxu0 %v135
  %1028 = vmatprep.subr.mxu0 0.0
  %1029 = vmatpush1.msra.mxu0 %v134
  %1030 = vmatprep.subr.mxu0 0.0
  %1031 = vmatpush1.msra.mxu0 %v133
  %1032 = vmatprep.subr.mxu0 0.0
  %1033 = vmatpush2.msra.mxu0 %v164
  %1034 = vmatprep.subr.mxu0 0.0
  %1035 = vmatpush2.msra.mxu0 %v163
  %1036 = vmatprep.subr.mxu0 0.0
  %1037 = vmatpush2.msra.mxu0 %v162
  %1038 = vmatprep.subr.mxu0 0.0
  %1039 = vmatpush2.msra.mxu0 %v161
  %1040 = vmatprep.subr.mxu0 0.0
  %1041 = vmatpush2.msra.mxu0 %v160
  %1042 = vmatprep.subr.mxu0 0.0
  %1043 = vmatpush2.msra.mxu0 %v159
  %1044 = vmatprep.subr.mxu0 0.0
  %1045 = vmatpush2.msra.mxu0 %v158
  %1046 = vmatprep.subr.mxu0 0.0
  %1047 = vmatpush2.msra.mxu0 %v157
  %1048 = vmatprep.subr.mxu0 0.0
  %1049 = vmatpush2.msra.mxu0 %v156
  %1050 = vmatprep.subr.mxu0 0.0
  %1051 = vmatpush2.msra.mxu0 %v155
  %1052 = vmatprep.subr.mxu0 0.0
  %1053 = vmatpush2.msra.mxu0 %v154
  %1054 = vmatprep.subr.mxu0 0.0
  %1055 = vmatpush2.msra.mxu0 %v153
  %1056 = vmatprep.subr.mxu0 0.0
  %1057 = vmatpush2.msra.mxu0 %v152
  %1058 = vmatprep.subr.mxu0 0.0
  %1059 = vmatpush2.msra.mxu0 %v151
  %1060 = vmatprep.subr.mxu0 0.0
  %1061 = vmatpush2.msra.mxu0 %v150
  %1062 = vmatprep.subr.mxu0 0.0
  %1063 = vmatpush2.msra.mxu0 %v149
  %1064 = vmatprep.mubr.f32.mxu0 %v25
  %1065 = vmatmul.mubr.f32.gmra.mxu0 %v24
  %v1066 = vpop.f32.mrf.mxu0
  %v1067 = vadd.f32 %v997, %v1066
  %v1068 = vpop.f32.mrf.mxu0
  %1069 = vdwg.mxu0
  %1070 = vmatprep.subr.mxu0 0.0
  %1071 = vmatpush1.msra.mxu0 %v180
  %1072 = vmatprep.subr.mxu0 0.0
  %1073 = vmatpush1.msra.mxu0 %v179
  %1074 = vmatprep.subr.mxu0 0.0
  %1075 = vmatpush1.msra.mxu0 %v178
  %1076 = vmatprep.subr.mxu0 0.0
  %1077 = vmatpush1.msra.mxu0 %v177
  %1078 = vmatprep.subr.mxu0 0.0
  %1079 = vmatpush1.msra.mxu0 %v176
  %1080 = vmatprep.subr.mxu0 0.0
  %1081 = vmatpush1.msra.mxu0 %v175
  %1082 = vmatprep.subr.mxu0 0.0
  %1083 = vmatpush1.msra.mxu0 %v174
  %1084 = vmatprep.subr.mxu0 0.0
  %1085 = vmatpush1.msra.mxu0 %v173
  %1086 = vmatprep.subr.mxu0 0.0
  %1087 = vmatpush1.msra.mxu0 %v172
  %1088 = vmatprep.subr.mxu0 0.0
  %1089 = vmatpush1.msra.mxu0 %v171
  %1090 = vmatprep.subr.mxu0 0.0
  %1091 = vmatpush1.msra.mxu0 %v170
  %1092 = vmatprep.subr.mxu0 0.0
  %1093 = vmatpush1.msra.mxu0 %v169
  %1094 = vmatprep.subr.mxu0 0.0
  %1095 = vmatpush1.msra.mxu0 %v168
  %1096 = vmatprep.subr.mxu0 0.0
  %1097 = vmatpush1.msra.mxu0 %v167
  %1098 = vmatprep.subr.mxu0 0.0
  %1099 = vmatpush1.msra.mxu0 %v166
  %1100 = vmatprep.subr.mxu0 0.0
  %1101 = vmatpush1.msra.mxu0 %v165
  %1102 = vmatprep.subr.mxu0 0.0
  %1103 = vmatpush2.msra.mxu0 %v196
  %1104 = vmatprep.subr.mxu0 0.0
  %1105 = vmatpush2.msra.mxu0 %v195
  %1106 = vmatprep.subr.mxu0 0.0
  %1107 = vmatpush2.msra.mxu0 %v194
  %1108 = vmatprep.subr.mxu0 0.0
  %1109 = vmatpush2.msra.mxu0 %v193
  %1110 = vmatprep.subr.mxu0 0.0
  %1111 = vmatpush2.msra.mxu0 %v192
  %1112 = vmatprep.subr.mxu0 0.0
  %1113 = vmatpush2.msra.mxu0 %v191
  %1114 = vmatprep.subr.mxu0 0.0
  %1115 = vmatpush2.msra.mxu0 %v190
  %1116 = vmatprep.subr.mxu0 0.0
  %1117 = vmatpush2.msra.mxu0 %v189
  %1118 = vmatprep.subr.mxu0 0.0
  %1119 = vmatpush2.msra.mxu0 %v188
  %1120 = vmatprep.subr.mxu0 0.0
  %1121 = vmatpush2.msra.mxu0 %v187
  %1122 = vmatprep.subr.mxu0 0.0
  %1123 = vmatpush2.msra.mxu0 %v186
  %1124 = vmatprep.subr.mxu0 0.0
  %1125 = vmatpush2.msra.mxu0 %v185
  %1126 = vmatprep.subr.mxu0 0.0
  %1127 = vmatpush2.msra.mxu0 %v184
  %1128 = vmatprep.subr.mxu0 0.0
  %1129 = vmatpush2.msra.mxu0 %v183
  %1130 = vmatprep.subr.mxu0 0.0
  %1131 = vmatpush2.msra.mxu0 %v182
  %1132 = vmatprep.subr.mxu0 0.0
  %1133 = vmatpush2.msra.mxu0 %v181
  %1134 = vmatprep.mubr.f32.mxu0 %v27
  %1135 = vmatmul.mubr.f32.gmra.mxu0 %v26
  %v1136 = vpop.f32.mrf.mxu0
  %v1137 = vadd.f32 %v1067, %v1136
  %v1138 = vpop.f32.mrf.mxu0
  %1139 = vdwg.mxu0
  %1140 = vmatprep.subr.mxu0 0.0
  %1141 = vmatpush1.msra.mxu0 %v212
  %1142 = vmatprep.subr.mxu0 0.0
  %1143 = vmatpush1.msra.mxu0 %v211
  %1144 = vmatprep.subr.mxu0 0.0
  %1145 = vmatpush1.msra.mxu0 %v210
  %1146 = vmatprep.subr.mxu0 0.0
  %1147 = vmatpush1.msra.mxu0 %v209
  %1148 = vmatprep.subr.mxu0 0.0
  %1149 = vmatpush1.msra.mxu0 %v208
  %1150 = vmatprep.subr.mxu0 0.0
  %1151 = vmatpush1.msra.mxu0 %v207
  %1152 = vmatprep.subr.mxu0 0.0
  %1153 = vmatpush1.msra.mxu0 %v206
  %1154 = vmatprep.subr.mxu0 0.0
  %1155 = vmatpush1.msra.mxu0 %v205
  %1156 = vmatprep.subr.mxu0 0.0
  %1157 = vmatpush1.msra.mxu0 %v204
  %1158 = vmatprep.subr.mxu0 0.0
  %1159 = vmatpush1.msra.mxu0 %v203
  %1160 = vmatprep.subr.mxu0 0.0
  %1161 = vmatpush1.msra.mxu0 %v202
  %1162 = vmatprep.subr.mxu0 0.0
  %1163 = vmatpush1.msra.mxu0 %v201
  %1164 = vmatprep.subr.mxu0 0.0
  %1165 = vmatpush1.msra.mxu0 %v200
  %1166 = vmatprep.subr.mxu0 0.0
  %1167 = vmatpush1.msra.mxu0 %v199
  %1168 = vmatprep.subr.mxu0 0.0
  %1169 = vmatpush1.msra.mxu0 %v198
  %1170 = vmatprep.subr.mxu0 0.0
  %1171 = vmatpush1.msra.mxu0 %v197
  %1172 = vmatprep.subr.mxu0 0.0
  %1173 = vmatpush2.msra.mxu0 %v228
  %1174 = vmatprep.subr.mxu0 0.0
  %1175 = vmatpush2.msra.mxu0 %v227
  %1176 = vmatprep.subr.mxu0 0.0
  %1177 = vmatpush2.msra.mxu0 %v226
  %1178 = vmatprep.subr.mxu0 0.0
  %1179 = vmatpush2.msra.mxu0 %v225
  %1180 = vmatprep.subr.mxu0 0.0
  %1181 = vmatpush2.msra.mxu0 %v224
  %1182 = vmatprep.subr.mxu0 0.0
  %1183 = vmatpush2.msra.mxu0 %v223
  %1184 = vmatprep.subr.mxu0 0.0
  %1185 = vmatpush2.msra.mxu0 %v222
  %1186 = vmatprep.subr.mxu0 0.0
  %1187 = vmatpush2.msra.mxu0 %v221
  %1188 = vmatprep.subr.mxu0 0.0
  %1189 = vmatpush2.msra.mxu0 %v220
  %1190 = vmatprep.subr.mxu0 0.0
  %1191 = vmatpush2.msra.mxu0 %v219
  %1192 = vmatprep.subr.mxu0 0.0
  %1193 = vmatpush2.msra.mxu0 %v218
  %1194 = vmatprep.subr.mxu0 0.0
  %1195 = vmatpush2.msra.mxu0 %v217
  %1196 = vmatprep.subr.mxu0 0.0
  %1197 = vmatpush2.msra.mxu0 %v216
  %1198 = vmatprep.subr.mxu0 0.0
  %1199 = vmatpush2.msra.mxu0 %v215
  %1200 = vmatprep.subr.mxu0 0.0
  %1201 = vmatpush2.msra.mxu0 %v214
  %1202 = vmatprep.subr.mxu0 0.0
  %1203 = vmatpush2.msra.mxu0 %v213
  %1204 = vmatprep.mubr.f32.mxu0 %v29
  %1205 = vmatmul.mubr.f32.gmra.mxu0 %v28
  %v1206 = vpop.f32.mrf.mxu0
  %v1207 = vadd.f32 %v1137, %v1206
  %v1208 = vpop.f32.mrf.mxu0
  %1209 = vdwg.mxu0
  %1210 = vmatprep.subr.mxu0 0.0
  %1211 = vmatpush1.msra.mxu0 %v244
  %1212 = vmatprep.subr.mxu0 0.0
  %1213 = vmatpush1.msra.mxu0 %v243
  %1214 = vmatprep.subr.mxu0 0.0
  %1215 = vmatpush1.msra.mxu0 %v242
  %1216 = vmatprep.subr.mxu0 0.0
  %1217 = vmatpush1.msra.mxu0 %v241
  %1218 = vmatprep.subr.mxu0 0.0
  %1219 = vmatpush1.msra.mxu0 %v240
  %1220 = vmatprep.subr.mxu0 0.0
  %1221 = vmatpush1.msra.mxu0 %v239
  %1222 = vmatprep.subr.mxu0 0.0
  %1223 = vmatpush1.msra.mxu0 %v238
  %1224 = vmatprep.subr.mxu0 0.0
  %1225 = vmatpush1.msra.mxu0 %v237
  %1226 = vmatprep.subr.mxu0 0.0
  %1227 = vmatpush1.msra.mxu0 %v236
  %1228 = vmatprep.subr.mxu0 0.0
  %1229 = vmatpush1.msra.mxu0 %v235
  %1230 = vmatprep.subr.mxu0 0.0
  %1231 = vmatpush1.msra.mxu0 %v234
  %1232 = vmatprep.subr.mxu0 0.0
  %1233 = vmatpush1.msra.mxu0 %v233
  %1234 = vmatprep.subr.mxu0 0.0
  %1235 = vmatpush1.msra.mxu0 %v232
  %1236 = vmatprep.subr.mxu0 0.0
  %1237 = vmatpush1.msra.mxu0 %v231
  %1238 = vmatprep.subr.mxu0 0.0
  %1239 = vmatpush1.msra.mxu0 %v230
  %1240 = vmatprep.subr.mxu0 0.0
  %1241 = vmatpush1.msra.mxu0 %v229
  %1242 = vmatprep.subr.mxu0 0.0
  %1243 = vmatpush2.msra.mxu0 %v260
  %1244 = vmatprep.subr.mxu0 0.0
  %1245 = vmatpush2.msra.mxu0 %v259
  %1246 = vmatprep.subr.mxu0 0.0
  %1247 = vmatpush2.msra.mxu0 %v258
  %1248 = vmatprep.subr.mxu0 0.0
  %1249 = vmatpush2.msra.mxu0 %v257
  %1250 = vmatprep.subr.mxu0 0.0
  %1251 = vmatpush2.msra.mxu0 %v256
  %1252 = vmatprep.subr.mxu0 0.0
  %1253 = vmatpush2.msra.mxu0 %v255
  %1254 = vmatprep.subr.mxu0 0.0
  %1255 = vmatpush2.msra.mxu0 %v254
  %1256 = vmatprep.subr.mxu0 0.0
  %1257 = vmatpush2.msra.mxu0 %v253
  %1258 = vmatprep.subr.mxu0 0.0
  %1259 = vmatpush2.msra.mxu0 %v252
  %1260 = vmatprep.subr.mxu0 0.0
  %1261 = vmatpush2.msra.mxu0 %v251
  %1262 = vmatprep.subr.mxu0 0.0
  %1263 = vmatpush2.msra.mxu0 %v250
  %1264 = vmatprep.subr.mxu0 0.0
  %1265 = vmatpush2.msra.mxu0 %v249
  %1266 = vmatprep.subr.mxu0 0.0
  %1267 = vmatpush2.msra.mxu0 %v248
  %1268 = vmatprep.subr.mxu0 0.0
  %1269 = vmatpush2.msra.mxu0 %v247
  %1270 = vmatprep.subr.mxu0 0.0
  %1271 = vmatpush2.msra.mxu0 %v246
  %1272 = vmatprep.subr.mxu0 0.0
  %1273 = vmatpush2.msra.mxu0 %v245
  %1274 = vmatprep.mubr.f32.mxu0 %v31
  %1275 = vmatmul.mubr.f32.gmra.mxu0 %v30
  %v1276 = vpop.f32.mrf.mxu0
  %v1277 = vadd.f32 %v1207, %v1276
  %v1278 = vpop.f32.mrf.mxu0
  %1279 = vdwg.mxu0
  %1280 = vmatprep.subr.mxu0 0.0
  %1281 = vmatpush1.msra.mxu0 %v276
  %1282 = vmatprep.subr.mxu0 0.0
  %1283 = vmatpush1.msra.mxu0 %v275
  %1284 = vmatprep.subr.mxu0 0.0
  %1285 = vmatpush1.msra.mxu0 %v274
  %1286 = vmatprep.subr.mxu0 0.0
  %1287 = vmatpush1.msra.mxu0 %v273
  %1288 = vmatprep.subr.mxu0 0.0
  %1289 = vmatpush1.msra.mxu0 %v272
  %1290 = vmatprep.subr.mxu0 0.0
  %1291 = vmatpush1.msra.mxu0 %v271
  %1292 = vmatprep.subr.mxu0 0.0
  %1293 = vmatpush1.msra.mxu0 %v270
  %1294 = vmatprep.subr.mxu0 0.0
  %1295 = vmatpush1.msra.mxu0 %v269
  %1296 = vmatprep.subr.mxu0 0.0
  %1297 = vmatpush1.msra.mxu0 %v268
  %1298 = vmatprep.subr.mxu0 0.0
  %1299 = vmatpush1.msra.mxu0 %v267
  %1300 = vmatprep.subr.mxu0 0.0
  %1301 = vmatpush1.msra.mxu0 %v266
  %1302 = vmatprep.subr.mxu0 0.0
  %1303 = vmatpush1.msra.mxu0 %v265
  %1304 = vmatprep.subr.mxu0 0.0
  %1305 = vmatpush1.msra.mxu0 %v264
  %1306 = vmatprep.subr.mxu0 0.0
  %1307 = vmatpush1.msra.mxu0 %v263
  %1308 = vmatprep.subr.mxu0 0.0
  %1309 = vmatpush1.msra.mxu0 %v262
  %1310 = vmatprep.subr.mxu0 0.0
  %1311 = vmatpush1.msra.mxu0 %v261
  %1312 = vmatprep.subr.mxu0 0.0
  %1313 = vmatpush2.msra.mxu0 %v292
  %1314 = vmatprep.subr.mxu0 0.0
  %1315 = vmatpush2.msra.mxu0 %v291
  %1316 = vmatprep.subr.mxu0 0.0
  %1317 = vmatpush2.msra.mxu0 %v290
  %1318 = vmatprep.subr.mxu0 0.0
  %1319 = vmatpush2.msra.mxu0 %v289
  %1320 = vmatprep.subr.mxu0 0.0
  %1321 = vmatpush2.msra.mxu0 %v288
  %1322 = vmatprep.subr.mxu0 0.0
  %1323 = vmatpush2.msra.mxu0 %v287
  %1324 = vmatprep.subr.mxu0 0.0
  %1325 = vmatpush2.msra.mxu0 %v286
  %1326 = vmatprep.subr.mxu0 0.0
  %1327 = vmatpush2.msra.mxu0 %v285
  %1328 = vmatprep.subr.mxu0 0.0
  %1329 = vmatpush2.msra.mxu0 %v284
  %1330 = vmatprep.subr.mxu0 0.0
  %1331 = vmatpush2.msra.mxu0 %v283
  %1332 = vmatprep.subr.mxu0 0.0
  %1333 = vmatpush2.msra.mxu0 %v282
  %1334 = vmatprep.subr.mxu0 0.0
  %1335 = vmatpush2.msra.mxu0 %v281
  %1336 = vmatprep.subr.mxu0 0.0
  %1337 = vmatpush2.msra.mxu0 %v280
  %1338 = vmatprep.subr.mxu0 0.0
  %1339 = vmatpush2.msra.mxu0 %v279
  %1340 = vmatprep.subr.mxu0 0.0
  %1341 = vmatpush2.msra.mxu0 %v278
  %1342 = vmatprep.subr.mxu0 0.0
  %1343 = vmatpush2.msra.mxu0 %v277
  %1344 = vmatprep.mubr.f32.mxu0 %v33
  %1345 = vmatmul.mubr.f32.gmra.mxu0 %v32
  %v1346 = vpop.f32.mrf.mxu0
  %v1347 = vadd.f32 %v1277, %v1346
  %v1348 = vpop.f32.mrf.mxu0
  %1349 = vdwg.mxu0
  %1350 = vmatprep.subr.mxu0 0.0
  %1351 = vmatpush1.msra.mxu0 %v308
  %1352 = vmatprep.subr.mxu0 0.0
  %1353 = vmatpush1.msra.mxu0 %v307
  %1354 = vmatprep.subr.mxu0 0.0
  %1355 = vmatpush1.msra.mxu0 %v306
  %1356 = vmatprep.subr.mxu0 0.0
  %1357 = vmatpush1.msra.mxu0 %v305
  %1358 = vmatprep.subr.mxu0 0.0
  %1359 = vmatpush1.msra.mxu0 %v304
  %1360 = vmatprep.subr.mxu0 0.0
  %1361 = vmatpush1.msra.mxu0 %v303
  %1362 = vmatprep.subr.mxu0 0.0
  %1363 = vmatpush1.msra.mxu0 %v302
  %1364 = vmatprep.subr.mxu0 0.0
  %1365 = vmatpush1.msra.mxu0 %v301
  %1366 = vmatprep.subr.mxu0 0.0
  %1367 = vmatpush1.msra.mxu0 %v300
  %1368 = vmatprep.subr.mxu0 0.0
  %1369 = vmatpush1.msra.mxu0 %v299
  %1370 = vmatprep.subr.mxu0 0.0
  %1371 = vmatpush1.msra.mxu0 %v298
  %1372 = vmatprep.subr.mxu0 0.0
  %1373 = vmatpush1.msra.mxu0 %v297
  %1374 = vmatprep.subr.mxu0 0.0
  %1375 = vmatpush1.msra.mxu0 %v296
  %1376 = vmatprep.subr.mxu0 0.0
  %1377 = vmatpush1.msra.mxu0 %v295
  %1378 = vmatprep.subr.mxu0 0.0
  %1379 = vmatpush1.msra.mxu0 %v294
  %1380 = vmatprep.subr.mxu0 0.0
  %1381 = vmatpush1.msra.mxu0 %v293
  %1382 = vmatprep.subr.mxu0 0.0
  %1383 = vmatpush2.msra.mxu0 %v324
  %1384 = vmatprep.subr.mxu0 0.0
  %1385 = vmatpush2.msra.mxu0 %v323
  %1386 = vmatprep.subr.mxu0 0.0
  %1387 = vmatpush2.msra.mxu0 %v322
  %1388 = vmatprep.subr.mxu0 0.0
  %1389 = vmatpush2.msra.mxu0 %v321
  %1390 = vmatprep.subr.mxu0 0.0
  %1391 = vmatpush2.msra.mxu0 %v320
  %1392 = vmatprep.subr.mxu0 0.0
  %1393 = vmatpush2.msra.mxu0 %v319
  %1394 = vmatprep.subr.mxu0 0.0
  %1395 = vmatpush2.msra.mxu0 %v318
  %1396 = vmatprep.subr.mxu0 0.0
  %1397 = vmatpush2.msra.mxu0 %v317
  %1398 = vmatprep.subr.mxu0 0.0
  %1399 = vmatpush2.msra.mxu0 %v316
  %1400 = vmatprep.subr.mxu0 0.0
  %1401 = vmatpush2.msra.mxu0 %v315
  %1402 = vmatprep.subr.mxu0 0.0
  %1403 = vmatpush2.msra.mxu0 %v314
  %1404 = vmatprep.subr.mxu0 0.0
  %1405 = vmatpush2.msra.mxu0 %v313
  %1406 = vmatprep.subr.mxu0 0.0
  %1407 = vmatpush2.msra.mxu0 %v312
  %1408 = vmatprep.subr.mxu0 0.0
  %1409 = vmatpush2.msra.mxu0 %v311
  %1410 = vmatprep.subr.mxu0 0.0
  %1411 = vmatpush2.msra.mxu0 %v310
  %1412 = vmatprep.subr.mxu0 0.0
  %1413 = vmatpush2.msra.mxu0 %v309
  %1414 = vmatprep.mubr.f32.mxu0 %v35
  %1415 = vmatmul.mubr.f32.gmra.mxu0 %v34
  %v1416 = vpop.f32.mrf.mxu0
  %v1417 = vadd.f32 %v1347, %v1416
  %v1418 = vpop.f32.mrf.mxu0
  %1419 = vdwg.mxu0
  %1420 = vmatprep.subr.mxu0 0.0
  %1421 = vmatpush1.msra.mxu0 %v340
  %1422 = vmatprep.subr.mxu0 0.0
  %1423 = vmatpush1.msra.mxu0 %v339
  %1424 = vmatprep.subr.mxu0 0.0
  %1425 = vmatpush1.msra.mxu0 %v338
  %1426 = vmatprep.subr.mxu0 0.0
  %1427 = vmatpush1.msra.mxu0 %v337
  %1428 = vmatprep.subr.mxu0 0.0
  %1429 = vmatpush1.msra.mxu0 %v336
  %1430 = vmatprep.subr.mxu0 0.0
  %1431 = vmatpush1.msra.mxu0 %v335
  %1432 = vmatprep.subr.mxu0 0.0
  %1433 = vmatpush1.msra.mxu0 %v334
  %1434 = vmatprep.subr.mxu0 0.0
  %1435 = vmatpush1.msra.mxu0 %v333
  %1436 = vmatprep.subr.mxu0 0.0
  %1437 = vmatpush1.msra.mxu0 %v332
  %1438 = vmatprep.subr.mxu0 0.0
  %1439 = vmatpush1.msra.mxu0 %v331
  %1440 = vmatprep.subr.mxu0 0.0
  %1441 = vmatpush1.msra.mxu0 %v330
  %1442 = vmatprep.subr.mxu0 0.0
  %1443 = vmatpush1.msra.mxu0 %v329
  %1444 = vmatprep.subr.mxu0 0.0
  %1445 = vmatpush1.msra.mxu0 %v328
  %1446 = vmatprep.subr.mxu0 0.0
  %1447 = vmatpush1.msra.mxu0 %v327
  %1448 = vmatprep.subr.mxu0 0.0
  %1449 = vmatpush1.msra.mxu0 %v326
  %1450 = vmatprep.subr.mxu0 0.0
  %1451 = vmatpush1.msra.mxu0 %v325
  %1452 = vmatprep.subr.mxu0 0.0
  %1453 = vmatpush2.msra.mxu0 %v356
  %1454 = vmatprep.subr.mxu0 0.0
  %1455 = vmatpush2.msra.mxu0 %v355
  %1456 = vmatprep.subr.mxu0 0.0
  %1457 = vmatpush2.msra.mxu0 %v354
  %1458 = vmatprep.subr.mxu0 0.0
  %1459 = vmatpush2.msra.mxu0 %v353
  %1460 = vmatprep.subr.mxu0 0.0
  %1461 = vmatpush2.msra.mxu0 %v352
  %1462 = vmatprep.subr.mxu0 0.0
  %1463 = vmatpush2.msra.mxu0 %v351
  %1464 = vmatprep.subr.mxu0 0.0
  %1465 = vmatpush2.msra.mxu0 %v350
  %1466 = vmatprep.subr.mxu0 0.0
  %1467 = vmatpush2.msra.mxu0 %v349
  %1468 = vmatprep.subr.mxu0 0.0
  %1469 = vmatpush2.msra.mxu0 %v348
  %1470 = vmatprep.subr.mxu0 0.0
  %1471 = vmatpush2.msra.mxu0 %v347
  %1472 = vmatprep.subr.mxu0 0.0
  %1473 = vmatpush2.msra.mxu0 %v346
  %1474 = vmatprep.subr.mxu0 0.0
  %1475 = vmatpush2.msra.mxu0 %v345
  %1476 = vmatprep.subr.mxu0 0.0
  %1477 = vmatpush2.msra.mxu0 %v344
  %1478 = vmatprep.subr.mxu0 0.0
  %1479 = vmatpush2.msra.mxu0 %v343
  %1480 = vmatprep.subr.mxu0 0.0
  %1481 = vmatpush2.msra.mxu0 %v342
  %1482 = vmatprep.subr.mxu0 0.0
  %1483 = vmatpush2.msra.mxu0 %v341
  %1484 = vmatprep.mubr.f32.mxu0 %v37
  %1485 = vmatmul.mubr.f32.gmra.mxu0 %v36
  %v1486 = vpop.f32.mrf.mxu0
  %v1487 = vadd.f32 %v1417, %v1486
  %v1488 = vpop.f32.mrf.mxu0
  %1489 = vdwg.mxu0
  %1490 = vmatprep.subr.mxu0 0.0
  %1491 = vmatpush1.msra.mxu0 %v372
  %1492 = vmatprep.subr.mxu0 0.0
  %1493 = vmatpush1.msra.mxu0 %v371
  %1494 = vmatprep.subr.mxu0 0.0
  %1495 = vmatpush1.msra.mxu0 %v370
  %1496 = vmatprep.subr.mxu0 0.0
  %1497 = vmatpush1.msra.mxu0 %v369
  %1498 = vmatprep.subr.mxu0 0.0
  %1499 = vmatpush1.msra.mxu0 %v368
  %1500 = vmatprep.subr.mxu0 0.0
  %1501 = vmatpush1.msra.mxu0 %v367
  %1502 = vmatprep.subr.mxu0 0.0
  %1503 = vmatpush1.msra.mxu0 %v366
  %1504 = vmatprep.subr.mxu0 0.0
  %1505 = vmatpush1.msra.mxu0 %v365
  %1506 = vmatprep.subr.mxu0 0.0
  %1507 = vmatpush1.msra.mxu0 %v364
  %1508 = vmatprep.subr.mxu0 0.0
  %1509 = vmatpush1.msra.mxu0 %v363
  %1510 = vmatprep.subr.mxu0 0.0
  %1511 = vmatpush1.msra.mxu0 %v362
  %1512 = vmatprep.subr.mxu0 0.0
  %1513 = vmatpush1.msra.mxu0 %v361
  %1514 = vmatprep.subr.mxu0 0.0
  %1515 = vmatpush1.msra.mxu0 %v360
  %1516 = vmatprep.subr.mxu0 0.0
  %1517 = vmatpush1.msra.mxu0 %v359
  %1518 = vmatprep.subr.mxu0 0.0
  %1519 = vmatpush1.msra.mxu0 %v358
  %1520 = vmatprep.subr.mxu0 0.0
  %1521 = vmatpush1.msra.mxu0 %v357
  %1522 = vmatprep.subr.mxu0 0.0
  %1523 = vmatpush2.msra.mxu0 %v388
  %1524 = vmatprep.subr.mxu0 0.0
  %1525 = vmatpush2.msra.mxu0 %v387
  %1526 = vmatprep.subr.mxu0 0.0
  %1527 = vmatpush2.msra.mxu0 %v386
  %1528 = vmatprep.subr.mxu0 0.0
  %1529 = vmatpush2.msra.mxu0 %v385
  %1530 = vmatprep.subr.mxu0 0.0
  %1531 = vmatpush2.msra.mxu0 %v384
  %1532 = vmatprep.subr.mxu0 0.0
  %1533 = vmatpush2.msra.mxu0 %v383
  %1534 = vmatprep.subr.mxu0 0.0
  %1535 = vmatpush2.msra.mxu0 %v382
  %1536 = vmatprep.subr.mxu0 0.0
  %1537 = vmatpush2.msra.mxu0 %v381
  %1538 = vmatprep.subr.mxu0 0.0
  %1539 = vmatpush2.msra.mxu0 %v380
  %1540 = vmatprep.subr.mxu0 0.0
  %1541 = vmatpush2.msra.mxu0 %v379
  %1542 = vmatprep.subr.mxu0 0.0
  %1543 = vmatpush2.msra.mxu0 %v378
  %1544 = vmatprep.subr.mxu0 0.0
  %1545 = vmatpush2.msra.mxu0 %v377
  %1546 = vmatprep.subr.mxu0 0.0
  %1547 = vmatpush2.msra.mxu0 %v376
  %1548 = vmatprep.subr.mxu0 0.0
  %1549 = vmatpush2.msra.mxu0 %v375
  %1550 = vmatprep.subr.mxu0 0.0
  %1551 = vmatpush2.msra.mxu0 %v374
  %1552 = vmatprep.subr.mxu0 0.0
  %1553 = vmatpush2.msra.mxu0 %v373
  %1554 = vmatprep.mubr.f32.mxu0 %v39
  %1555 = vmatmul.mubr.f32.gmra.mxu0 %v38
  %v1556 = vpop.f32.mrf.mxu0
  %v1557 = vadd.f32 %v1487, %v1556
  %v1558 = vpop.f32.mrf.mxu0
  %1559 = vdwg.mxu0
  %1560 = vmatprep.subr.mxu0 0.0
  %1561 = vmatpush1.msra.mxu0 %v404
  %1562 = vmatprep.subr.mxu0 0.0
  %1563 = vmatpush1.msra.mxu0 %v403
  %1564 = vmatprep.subr.mxu0 0.0
  %1565 = vmatpush1.msra.mxu0 %v402
  %1566 = vmatprep.subr.mxu0 0.0
  %1567 = vmatpush1.msra.mxu0 %v401
  %1568 = vmatprep.subr.mxu0 0.0
  %1569 = vmatpush1.msra.mxu0 %v400
  %1570 = vmatprep.subr.mxu0 0.0
  %1571 = vmatpush1.msra.mxu0 %v399
  %1572 = vmatprep.subr.mxu0 0.0
  %1573 = vmatpush1.msra.mxu0 %v398
  %1574 = vmatprep.subr.mxu0 0.0
  %1575 = vmatpush1.msra.mxu0 %v397
  %1576 = vmatprep.subr.mxu0 0.0
  %1577 = vmatpush1.msra.mxu0 %v396
  %1578 = vmatprep.subr.mxu0 0.0
  %1579 = vmatpush1.msra.mxu0 %v395
  %1580 = vmatprep.subr.mxu0 0.0
  %1581 = vmatpush1.msra.mxu0 %v394
  %1582 = vmatprep.subr.mxu0 0.0
  %1583 = vmatpush1.msra.mxu0 %v393
  %1584 = vmatprep.subr.mxu0 0.0
  %1585 = vmatpush1.msra.mxu0 %v392
  %1586 = vmatprep.subr.mxu0 0.0
  %1587 = vmatpush1.msra.mxu0 %v391
  %1588 = vmatprep.subr.mxu0 0.0
  %1589 = vmatpush1.msra.mxu0 %v390
  %1590 = vmatprep.subr.mxu0 0.0
  %1591 = vmatpush1.msra.mxu0 %v389
  %1592 = vmatprep.subr.mxu0 0.0
  %1593 = vmatpush2.msra.mxu0 %v420
  %1594 = vmatprep.subr.mxu0 0.0
  %1595 = vmatpush2.msra.mxu0 %v419
  %1596 = vmatprep.subr.mxu0 0.0
  %1597 = vmatpush2.msra.mxu0 %v418
  %1598 = vmatprep.subr.mxu0 0.0
  %1599 = vmatpush2.msra.mxu0 %v417
  %1600 = vmatprep.subr.mxu0 0.0
  %1601 = vmatpush2.msra.mxu0 %v416
  %1602 = vmatprep.subr.mxu0 0.0
  %1603 = vmatpush2.msra.mxu0 %v415
  %1604 = vmatprep.subr.mxu0 0.0
  %1605 = vmatpush2.msra.mxu0 %v414
  %1606 = vmatprep.subr.mxu0 0.0
  %1607 = vmatpush2.msra.mxu0 %v413
  %1608 = vmatprep.subr.mxu0 0.0
  %1609 = vmatpush2.msra.mxu0 %v412
  %1610 = vmatprep.subr.mxu0 0.0
  %1611 = vmatpush2.msra.mxu0 %v411
  %1612 = vmatprep.subr.mxu0 0.0
  %1613 = vmatpush2.msra.mxu0 %v410
  %1614 = vmatprep.subr.mxu0 0.0
  %1615 = vmatpush2.msra.mxu0 %v409
  %1616 = vmatprep.subr.mxu0 0.0
  %1617 = vmatpush2.msra.mxu0 %v408
  %1618 = vmatprep.subr.mxu0 0.0
  %1619 = vmatpush2.msra.mxu0 %v407
  %1620 = vmatprep.subr.mxu0 0.0
  %1621 = vmatpush2.msra.mxu0 %v406
  %1622 = vmatprep.subr.mxu0 0.0
  %1623 = vmatpush2.msra.mxu0 %v405
  %1624 = vmatprep.mubr.f32.mxu0 %v41
  %1625 = vmatmul.mubr.f32.gmra.mxu0 %v40
  %v1626 = vpop.f32.mrf.mxu0
  %v1627 = vadd.f32 %v1557, %v1626
  %v1628 = vpop.f32.mrf.mxu0
  %1629 = vdwg.mxu0
  %1630 = vmatprep.subr.mxu0 0.0
  %1631 = vmatpush1.msra.mxu0 %v436
  %1632 = vmatprep.subr.mxu0 0.0
  %1633 = vmatpush1.msra.mxu0 %v435
  %1634 = vmatprep.subr.mxu0 0.0
  %1635 = vmatpush1.msra.mxu0 %v434
  %1636 = vmatprep.subr.mxu0 0.0
  %1637 = vmatpush1.msra.mxu0 %v433
  %1638 = vmatprep.subr.mxu0 0.0
  %1639 = vmatpush1.msra.mxu0 %v432
  %1640 = vmatprep.subr.mxu0 0.0
  %1641 = vmatpush1.msra.mxu0 %v431
  %1642 = vmatprep.subr.mxu0 0.0
  %1643 = vmatpush1.msra.mxu0 %v430
  %1644 = vmatprep.subr.mxu0 0.0
  %1645 = vmatpush1.msra.mxu0 %v429
  %1646 = vmatprep.subr.mxu0 0.0
  %1647 = vmatpush1.msra.mxu0 %v428
  %1648 = vmatprep.subr.mxu0 0.0
  %1649 = vmatpush1.msra.mxu0 %v427
  %1650 = vmatprep.subr.mxu0 0.0
  %1651 = vmatpush1.msra.mxu0 %v426
  %1652 = vmatprep.subr.mxu0 0.0
  %1653 = vmatpush1.msra.mxu0 %v425
  %1654 = vmatprep.subr.mxu0 0.0
  %1655 = vmatpush1.msra.mxu0 %v424
  %1656 = vmatprep.subr.mxu0 0.0
  %1657 = vmatpush1.msra.mxu0 %v423
  %1658 = vmatprep.subr.mxu0 0.0
  %1659 = vmatpush1.msra.mxu0 %v422
  %1660 = vmatprep.subr.mxu0 0.0
  %1661 = vmatpush1.msra.mxu0 %v421
  %1662 = vmatprep.subr.mxu0 0.0
  %1663 = vmatpush2.msra.mxu0 %v452
  %1664 = vmatprep.subr.mxu0 0.0
  %1665 = vmatpush2.msra.mxu0 %v451
  %1666 = vmatprep.subr.mxu0 0.0
  %1667 = vmatpush2.msra.mxu0 %v450
  %1668 = vmatprep.subr.mxu0 0.0
  %1669 = vmatpush2.msra.mxu0 %v449
  %1670 = vmatprep.subr.mxu0 0.0
  %1671 = vmatpush2.msra.mxu0 %v448
  %1672 = vmatprep.subr.mxu0 0.0
  %1673 = vmatpush2.msra.mxu0 %v447
  %1674 = vmatprep.subr.mxu0 0.0
  %1675 = vmatpush2.msra.mxu0 %v446
  %1676 = vmatprep.subr.mxu0 0.0
  %1677 = vmatpush2.msra.mxu0 %v445
  %1678 = vmatprep.subr.mxu0 0.0
  %1679 = vmatpush2.msra.mxu0 %v444
  %1680 = vmatprep.subr.mxu0 0.0
  %1681 = vmatpush2.msra.mxu0 %v443
  %1682 = vmatprep.subr.mxu0 0.0
  %1683 = vmatpush2.msra.mxu0 %v442
  %1684 = vmatprep.subr.mxu0 0.0
  %1685 = vmatpush2.msra.mxu0 %v441
  %1686 = vmatprep.subr.mxu0 0.0
  %1687 = vmatpush2.msra.mxu0 %v440
  %1688 = vmatprep.subr.mxu0 0.0
  %1689 = vmatpush2.msra.mxu0 %v439
  %1690 = vmatprep.subr.mxu0 0.0
  %1691 = vmatpush2.msra.mxu0 %v438
  %1692 = vmatprep.subr.mxu0 0.0
  %1693 = vmatpush2.msra.mxu0 %v437
  %1694 = vmatprep.mubr.f32.mxu0 %v43
  %1695 = vmatmul.mubr.f32.gmra.mxu0 %v42
  %v1696 = vpop.f32.mrf.mxu0
  %v1697 = vadd.f32 %v1627, %v1696
  %v1698 = vpop.f32.mrf.mxu0
  %1699 = vdwg.mxu0
  %1700 = vmatprep.subr.mxu0 0.0
  %1701 = vmatpush1.msra.mxu0 %v468
  %1702 = vmatprep.subr.mxu0 0.0
  %1703 = vmatpush1.msra.mxu0 %v467
  %1704 = vmatprep.subr.mxu0 0.0
  %1705 = vmatpush1.msra.mxu0 %v466
  %1706 = vmatprep.subr.mxu0 0.0
  %1707 = vmatpush1.msra.mxu0 %v465
  %1708 = vmatprep.subr.mxu0 0.0
  %1709 = vmatpush1.msra.mxu0 %v464
  %1710 = vmatprep.subr.mxu0 0.0
  %1711 = vmatpush1.msra.mxu0 %v463
  %1712 = vmatprep.subr.mxu0 0.0
  %1713 = vmatpush1.msra.mxu0 %v462
  %1714 = vmatprep.subr.mxu0 0.0
  %1715 = vmatpush1.msra.mxu0 %v461
  %1716 = vmatprep.subr.mxu0 0.0
  %1717 = vmatpush1.msra.mxu0 %v460
  %1718 = vmatprep.subr.mxu0 0.0
  %1719 = vmatpush1.msra.mxu0 %v459
  %1720 = vmatprep.subr.mxu0 0.0
  %1721 = vmatpush1.msra.mxu0 %v458
  %1722 = vmatprep.subr.mxu0 0.0
  %1723 = vmatpush1.msra.mxu0 %v457
  %1724 = vmatprep.subr.mxu0 0.0
  %1725 = vmatpush1.msra.mxu0 %v456
  %1726 = vmatprep.subr.mxu0 0.0
  %1727 = vmatpush1.msra.mxu0 %v455
  %1728 = vmatprep.subr.mxu0 0.0
  %1729 = vmatpush1.msra.mxu0 %v454
  %1730 = vmatprep.subr.mxu0 0.0
  %1731 = vmatpush1.msra.mxu0 %v453
  %1732 = vmatprep.subr.mxu0 0.0
  %1733 = vmatpush2.msra.mxu0 %v484
  %1734 = vmatprep.subr.mxu0 0.0
  %1735 = vmatpush2.msra.mxu0 %v483
  %1736 = vmatprep.subr.mxu0 0.0
  %1737 = vmatpush2.msra.mxu0 %v482
  %1738 = vmatprep.subr.mxu0 0.0
  %1739 = vmatpush2.msra.mxu0 %v481
  %1740 = vmatprep.subr.mxu0 0.0
  %1741 = vmatpush2.msra.mxu0 %v480
  %1742 = vmatprep.subr.mxu0 0.0
  %1743 = vmatpush2.msra.mxu0 %v479
  %1744 = vmatprep.subr.mxu0 0.0
  %1745 = vmatpush2.msra.mxu0 %v478
  %1746 = vmatprep.subr.mxu0 0.0
  %1747 = vmatpush2.msra.mxu0 %v477
  %1748 = vmatprep.subr.mxu0 0.0
  %1749 = vmatpush2.msra.mxu0 %v476
  %1750 = vmatprep.subr.mxu0 0.0
  %1751 = vmatpush2.msra.mxu0 %v475
  %1752 = vmatprep.subr.mxu0 0.0
  %1753 = vmatpush2.msra.mxu0 %v474
  %1754 = vmatprep.subr.mxu0 0.0
  %1755 = vmatpush2.msra.mxu0 %v473
  %1756 = vmatprep.subr.mxu0 0.0
  %1757 = vmatpush2.msra.mxu0 %v472
  %1758 = vmatprep.subr.mxu0 0.0
  %1759 = vmatpush2.msra.mxu0 %v471
  %1760 = vmatprep.subr.mxu0 0.0
  %1761 = vmatpush2.msra.mxu0 %v470
  %1762 = vmatprep.subr.mxu0 0.0
  %1763 = vmatpush2.msra.mxu0 %v469
  %1764 = vmatprep.mubr.f32.mxu0 %v45
  %1765 = vmatmul.mubr.f32.gmra.mxu0 %v44
  %v1766 = vpop.f32.mrf.mxu0
  %v1767 = vadd.f32 %v1697, %v1766
  %v1768 = vpop.f32.mrf.mxu0
  %1769 = vdwg.mxu0
  %1770 = vmatprep.subr.mxu0 0.0
  %1771 = vmatpush1.msra.mxu0 %v500
  %1772 = vmatprep.subr.mxu0 0.0
  %1773 = vmatpush1.msra.mxu0 %v499
  %1774 = vmatprep.subr.mxu0 0.0
  %1775 = vmatpush1.msra.mxu0 %v498
  %1776 = vmatprep.subr.mxu0 0.0
  %1777 = vmatpush1.msra.mxu0 %v497
  %1778 = vmatprep.subr.mxu0 0.0
  %1779 = vmatpush1.msra.mxu0 %v496
  %1780 = vmatprep.subr.mxu0 0.0
  %1781 = vmatpush1.msra.mxu0 %v495
  %1782 = vmatprep.subr.mxu0 0.0
  %1783 = vmatpush1.msra.mxu0 %v494
  %1784 = vmatprep.subr.mxu0 0.0
  %1785 = vmatpush1.msra.mxu0 %v493
  %1786 = vmatprep.subr.mxu0 0.0
  %1787 = vmatpush1.msra.mxu0 %v492
  %1788 = vmatprep.subr.mxu0 0.0
  %1789 = vmatpush1.msra.mxu0 %v491
  %1790 = vmatprep.subr.mxu0 0.0
  %1791 = vmatpush1.msra.mxu0 %v490
  %1792 = vmatprep.subr.mxu0 0.0
  %1793 = vmatpush1.msra.mxu0 %v489
  %1794 = vmatprep.subr.mxu0 0.0
  %1795 = vmatpush1.msra.mxu0 %v488
  %1796 = vmatprep.subr.mxu0 0.0
  %1797 = vmatpush1.msra.mxu0 %v487
  %1798 = vmatprep.subr.mxu0 0.0
  %1799 = vmatpush1.msra.mxu0 %v486
  %1800 = vmatprep.subr.mxu0 0.0
  %1801 = vmatpush1.msra.mxu0 %v485
  %1802 = vmatprep.subr.mxu0 0.0
  %1803 = vmatpush2.msra.mxu0 %v516
  %1804 = vmatprep.subr.mxu0 0.0
  %1805 = vmatpush2.msra.mxu0 %v515
  %1806 = vmatprep.subr.mxu0 0.0
  %1807 = vmatpush2.msra.mxu0 %v514
  %1808 = vmatprep.subr.mxu0 0.0
  %1809 = vmatpush2.msra.mxu0 %v513
  %1810 = vmatprep.subr.mxu0 0.0
  %1811 = vmatpush2.msra.mxu0 %v512
  %1812 = vmatprep.subr.mxu0 0.0
  %1813 = vmatpush2.msra.mxu0 %v511
  %1814 = vmatprep.subr.mxu0 0.0
  %1815 = vmatpush2.msra.mxu0 %v510
  %1816 = vmatprep.subr.mxu0 0.0
  %1817 = vmatpush2.msra.mxu0 %v509
  %1818 = vmatprep.subr.mxu0 0.0
  %1819 = vmatpush2.msra.mxu0 %v508
  %1820 = vmatprep.subr.mxu0 0.0
  %1821 = vmatpush2.msra.mxu0 %v507
  %1822 = vmatprep.subr.mxu0 0.0
  %1823 = vmatpush2.msra.mxu0 %v506
  %1824 = vmatprep.subr.mxu0 0.0
  %1825 = vmatpush2.msra.mxu0 %v505
  %1826 = vmatprep.subr.mxu0 0.0
  %1827 = vmatpush2.msra.mxu0 %v504
  %1828 = vmatprep.subr.mxu0 0.0
  %1829 = vmatpush2.msra.mxu0 %v503
  %1830 = vmatprep.subr.mxu0 0.0
  %1831 = vmatpush2.msra.mxu0 %v502
  %1832 = vmatprep.subr.mxu0 0.0
  %1833 = vmatpush2.msra.mxu0 %v501
  %1834 = vmatprep.mubr.f32.mxu0 %v47
  %1835 = vmatmul.mubr.f32.gmra.mxu0 %v46
  %v1836 = vpop.f32.mrf.mxu0
  %v1837 = vadd.f32 %v1767, %v1836
  %v1838 = vpop.f32.mrf.mxu0
  %1839 = vdwg.mxu0
  %1840 = vmatprep.subr.mxu0 0.0
  %1841 = vmatpush1.msra.mxu0 %v532
  %1842 = vmatprep.subr.mxu0 0.0
  %1843 = vmatpush1.msra.mxu0 %v531
  %1844 = vmatprep.subr.mxu0 0.0
  %1845 = vmatpush1.msra.mxu0 %v530
  %1846 = vmatprep.subr.mxu0 0.0
  %1847 = vmatpush1.msra.mxu0 %v529
  %1848 = vmatprep.subr.mxu0 0.0
  %1849 = vmatpush1.msra.mxu0 %v528
  %1850 = vmatprep.subr.mxu0 0.0
  %1851 = vmatpush1.msra.mxu0 %v527
  %1852 = vmatprep.subr.mxu0 0.0
  %1853 = vmatpush1.msra.mxu0 %v526
  %1854 = vmatprep.subr.mxu0 0.0
  %1855 = vmatpush1.msra.mxu0 %v525
  %1856 = vmatprep.subr.mxu0 0.0
  %1857 = vmatpush1.msra.mxu0 %v524
  %1858 = vmatprep.subr.mxu0 0.0
  %1859 = vmatpush1.msra.mxu0 %v523
  %1860 = vmatprep.subr.mxu0 0.0
  %1861 = vmatpush1.msra.mxu0 %v522
  %1862 = vmatprep.subr.mxu0 0.0
  %1863 = vmatpush1.msra.mxu0 %v521
  %1864 = vmatprep.subr.mxu0 0.0
  %1865 = vmatpush1.msra.mxu0 %v520
  %1866 = vmatprep.subr.mxu0 0.0
  %1867 = vmatpush1.msra.mxu0 %v519
  %1868 = vmatprep.subr.mxu0 0.0
  %1869 = vmatpush1.msra.mxu0 %v518
  %1870 = vmatprep.subr.mxu0 0.0
  %1871 = vmatpush1.msra.mxu0 %v517
  %1872 = vmatprep.subr.mxu0 0.0
  %1873 = vmatpush2.msra.mxu0 %v548
  %1874 = vmatprep.subr.mxu0 0.0
  %1875 = vmatpush2.msra.mxu0 %v547
  %1876 = vmatprep.subr.mxu0 0.0
  %1877 = vmatpush2.msra.mxu0 %v546
  %1878 = vmatprep.subr.mxu0 0.0
  %1879 = vmatpush2.msra.mxu0 %v545
  %1880 = vmatprep.subr.mxu0 0.0
  %1881 = vmatpush2.msra.mxu0 %v544
  %1882 = vmatprep.subr.mxu0 0.0
  %1883 = vmatpush2.msra.mxu0 %v543
  %1884 = vmatprep.subr.mxu0 0.0
  %1885 = vmatpush2.msra.mxu0 %v542
  %1886 = vmatprep.subr.mxu0 0.0
  %1887 = vmatpush2.msra.mxu0 %v541
  %1888 = vmatprep.subr.mxu0 0.0
  %1889 = vmatpush2.msra.mxu0 %v540
  %1890 = vmatprep.subr.mxu0 0.0
  %1891 = vmatpush2.msra.mxu0 %v539
  %1892 = vmatprep.subr.mxu0 0.0
  %1893 = vmatpush2.msra.mxu0 %v538
  %1894 = vmatprep.subr.mxu0 0.0
  %1895 = vmatpush2.msra.mxu0 %v537
  %1896 = vmatprep.subr.mxu0 0.0
  %1897 = vmatpush2.msra.mxu0 %v536
  %1898 = vmatprep.subr.mxu0 0.0
  %1899 = vmatpush2.msra.mxu0 %v535
  %1900 = vmatprep.subr.mxu0 0.0
  %1901 = vmatpush2.msra.mxu0 %v534
  %1902 = vmatprep.subr.mxu0 0.0
  %1903 = vmatpush2.msra.mxu0 %v533
  %1904 = vmatprep.mubr.f32.mxu0 %v49
  %1905 = vmatmul.mubr.f32.gmra.mxu0 %v48
  %v1906 = vpop.f32.mrf.mxu0
  %v1907 = vadd.f32 %v1837, %v1906
  %v1908 = vpop.f32.mrf.mxu0
  %1909 = vdwg.mxu0
  %1910 = vmatprep.subr.mxu0 0.0
  %1911 = vmatpush1.msra.mxu0 %v564
  %1912 = vmatprep.subr.mxu0 0.0
  %1913 = vmatpush1.msra.mxu0 %v563
  %1914 = vmatprep.subr.mxu0 0.0
  %1915 = vmatpush1.msra.mxu0 %v562
  %1916 = vmatprep.subr.mxu0 0.0
  %1917 = vmatpush1.msra.mxu0 %v561
  %1918 = vmatprep.subr.mxu0 0.0
  %1919 = vmatpush1.msra.mxu0 %v560
  %1920 = vmatprep.subr.mxu0 0.0
  %1921 = vmatpush1.msra.mxu0 %v559
  %1922 = vmatprep.subr.mxu0 0.0
  %1923 = vmatpush1.msra.mxu0 %v558
  %1924 = vmatprep.subr.mxu0 0.0
  %1925 = vmatpush1.msra.mxu0 %v557
  %1926 = vmatprep.subr.mxu0 0.0
  %1927 = vmatpush1.msra.mxu0 %v556
  %1928 = vmatprep.subr.mxu0 0.0
  %1929 = vmatpush1.msra.mxu0 %v555
  %1930 = vmatprep.subr.mxu0 0.0
  %1931 = vmatpush1.msra.mxu0 %v554
  %1932 = vmatprep.subr.mxu0 0.0
  %1933 = vmatpush1.msra.mxu0 %v553
  %1934 = vmatprep.subr.mxu0 0.0
  %1935 = vmatpush1.msra.mxu0 %v552
  %1936 = vmatprep.subr.mxu0 0.0
  %1937 = vmatpush1.msra.mxu0 %v551
  %1938 = vmatprep.subr.mxu0 0.0
  %1939 = vmatpush1.msra.mxu0 %v550
  %1940 = vmatprep.subr.mxu0 0.0
  %1941 = vmatpush1.msra.mxu0 %v549
  %1942 = vmatprep.subr.mxu0 0.0
  %1943 = vmatpush2.msra.mxu0 %v580
  %1944 = vmatprep.subr.mxu0 0.0
  %1945 = vmatpush2.msra.mxu0 %v579
  %1946 = vmatprep.subr.mxu0 0.0
  %1947 = vmatpush2.msra.mxu0 %v578
  %1948 = vmatprep.subr.mxu0 0.0
  %1949 = vmatpush2.msra.mxu0 %v577
  %1950 = vmatprep.subr.mxu0 0.0
  %1951 = vmatpush2.msra.mxu0 %v576
  %1952 = vmatprep.subr.mxu0 0.0
  %1953 = vmatpush2.msra.mxu0 %v575
  %1954 = vmatprep.subr.mxu0 0.0
  %1955 = vmatpush2.msra.mxu0 %v574
  %1956 = vmatprep.subr.mxu0 0.0
  %1957 = vmatpush2.msra.mxu0 %v573
  %1958 = vmatprep.subr.mxu0 0.0
  %1959 = vmatpush2.msra.mxu0 %v572
  %1960 = vmatprep.subr.mxu0 0.0
  %1961 = vmatpush2.msra.mxu0 %v571
  %1962 = vmatprep.subr.mxu0 0.0
  %1963 = vmatpush2.msra.mxu0 %v570
  %1964 = vmatprep.subr.mxu0 0.0
  %1965 = vmatpush2.msra.mxu0 %v569
  %1966 = vmatprep.subr.mxu0 0.0
  %1967 = vmatpush2.msra.mxu0 %v568
  %1968 = vmatprep.subr.mxu0 0.0
  %1969 = vmatpush2.msra.mxu0 %v567
  %1970 = vmatprep.subr.mxu0 0.0
  %1971 = vmatpush2.msra.mxu0 %v566
  %1972 = vmatprep.subr.mxu0 0.0
  %1973 = vmatpush2.msra.mxu0 %v565
  %1974 = vmatprep.mubr.f32.mxu0 %v51
  %1975 = vmatmul.mubr.f32.gmra.mxu0 %v50
  %v1976 = vpop.f32.mrf.mxu0
  %v1977 = vadd.f32 %v1907, %v1976
  %v1978 = vpop.f32.mrf.mxu0
  %1979 = vdwg.mxu0
  %1980 = vmatprep.subr.mxu0 0.0
  %1981 = vmatpush1.msra.mxu0 %v596
  %1982 = vmatprep.subr.mxu0 0.0
  %1983 = vmatpush1.msra.mxu0 %v595
  %1984 = vmatprep.subr.mxu0 0.0
  %1985 = vmatpush1.msra.mxu0 %v594
  %1986 = vmatprep.subr.mxu0 0.0
  %1987 = vmatpush1.msra.mxu0 %v593
  %1988 = vmatprep.subr.mxu0 0.0
  %1989 = vmatpush1.msra.mxu0 %v592
  %1990 = vmatprep.subr.mxu0 0.0
  %1991 = vmatpush1.msra.mxu0 %v591
  %1992 = vmatprep.subr.mxu0 0.0
  %1993 = vmatpush1.msra.mxu0 %v590
  %1994 = vmatprep.subr.mxu0 0.0
  %1995 = vmatpush1.msra.mxu0 %v589
  %1996 = vmatprep.subr.mxu0 0.0
  %1997 = vmatpush1.msra.mxu0 %v588
  %1998 = vmatprep.subr.mxu0 0.0
  %1999 = vmatpush1.msra.mxu0 %v587
  %2000 = vmatprep.subr.mxu0 0.0
  %2001 = vmatpush1.msra.mxu0 %v586
  %2002 = vmatprep.subr.mxu0 0.0
  %2003 = vmatpush1.msra.mxu0 %v585
  %2004 = vmatprep.subr.mxu0 0.0
  %2005 = vmatpush1.msra.mxu0 %v584
  %2006 = vmatprep.subr.mxu0 0.0
  %2007 = vmatpush1.msra.mxu0 %v583
  %2008 = vmatprep.subr.mxu0 0.0
  %2009 = vmatpush1.msra.mxu0 %v582
  %2010 = vmatprep.subr.mxu0 0.0
  %2011 = vmatpush1.msra.mxu0 %v581
  %2012 = vmatprep.subr.mxu0 0.0
  %2013 = vmatpush2.msra.mxu0 %v612
  %2014 = vmatprep.subr.mxu0 0.0
  %2015 = vmatpush2.msra.mxu0 %v611
  %2016 = vmatprep.subr.mxu0 0.0
  %2017 = vmatpush2.msra.mxu0 %v610
  %2018 = vmatprep.subr.mxu0 0.0
  %2019 = vmatpush2.msra.mxu0 %v609
  %2020 = vmatprep.subr.mxu0 0.0
  %2021 = vmatpush2.msra.mxu0 %v608
  %2022 = vmatprep.subr.mxu0 0.0
  %2023 = vmatpush2.msra.mxu0 %v607
  %2024 = vmatprep.subr.mxu0 0.0
  %2025 = vmatpush2.msra.mxu0 %v606
  %2026 = vmatprep.subr.mxu0 0.0
  %2027 = vmatpush2.msra.mxu0 %v605
  %2028 = vmatprep.subr.mxu0 0.0
  %2029 = vmatpush2.msra.mxu0 %v604
  %2030 = vmatprep.subr.mxu0 0.0
  %2031 = vmatpush2.msra.mxu0 %v603
  %2032 = vmatprep.subr.mxu0 0.0
  %2033 = vmatpush2.msra.mxu0 %v602
  %2034 = vmatprep.subr.mxu0 0.0
  %2035 = vmatpush2.msra.mxu0 %v601
  %2036 = vmatprep.subr.mxu0 0.0
  %2037 = vmatpush2.msra.mxu0 %v600
  %2038 = vmatprep.subr.mxu0 0.0
  %2039 = vmatpush2.msra.mxu0 %v599
  %2040 = vmatprep.subr.mxu0 0.0
  %2041 = vmatpush2.msra.mxu0 %v598
  %2042 = vmatprep.subr.mxu0 0.0
  %2043 = vmatpush2.msra.mxu0 %v597
  %2044 = vmatprep.mubr.f32.mxu0 %v53
  %2045 = vmatmul.mubr.f32.gmra.mxu0 %v52
  %v2046 = vpop.f32.mrf.mxu0
  %v2047 = vadd.f32 %v1977, %v2046
  %v2048 = vpop.f32.mrf.mxu0
  %2049 = vdwg.mxu0
  %2050 = vmatprep.subr.mxu0 0.0
  %2051 = vmatpush1.msra.mxu0 %v628
  %2052 = vmatprep.subr.mxu0 0.0
  %2053 = vmatpush1.msra.mxu0 %v627
  %2054 = vmatprep.subr.mxu0 0.0
  %2055 = vmatpush1.msra.mxu0 %v626
  %2056 = vmatprep.subr.mxu0 0.0
  %2057 = vmatpush1.msra.mxu0 %v625
  %2058 = vmatprep.subr.mxu0 0.0
  %2059 = vmatpush1.msra.mxu0 %v624
  %2060 = vmatprep.subr.mxu0 0.0
  %2061 = vmatpush1.msra.mxu0 %v623
  %2062 = vmatprep.subr.mxu0 0.0
  %2063 = vmatpush1.msra.mxu0 %v622
  %2064 = vmatprep.subr.mxu0 0.0
  %2065 = vmatpush1.msra.mxu0 %v621
  %2066 = vmatprep.subr.mxu0 0.0
  %2067 = vmatpush1.msra.mxu0 %v620
  %2068 = vmatprep.subr.mxu0 0.0
  %2069 = vmatpush1.msra.mxu0 %v619
  %2070 = vmatprep.subr.mxu0 0.0
  %2071 = vmatpush1.msra.mxu0 %v618
  %2072 = vmatprep.subr.mxu0 0.0
  %2073 = vmatpush1.msra.mxu0 %v617
  %2074 = vmatprep.subr.mxu0 0.0
  %2075 = vmatpush1.msra.mxu0 %v616
  %2076 = vmatprep.subr.mxu0 0.0
  %2077 = vmatpush1.msra.mxu0 %v615
  %2078 = vmatprep.subr.mxu0 0.0
  %2079 = vmatpush1.msra.mxu0 %v614
  %2080 = vmatprep.subr.mxu0 0.0
  %2081 = vmatpush1.msra.mxu0 %v613
  %2082 = vmatprep.subr.mxu0 0.0
  %2083 = vmatpush2.msra.mxu0 %v644
  %2084 = vmatprep.subr.mxu0 0.0
  %2085 = vmatpush2.msra.mxu0 %v643
  %2086 = vmatprep.subr.mxu0 0.0
  %2087 = vmatpush2.msra.mxu0 %v642
  %2088 = vmatprep.subr.mxu0 0.0
  %2089 = vmatpush2.msra.mxu0 %v641
  %2090 = vmatprep.subr.mxu0 0.0
  %2091 = vmatpush2.msra.mxu0 %v640
  %2092 = vmatprep.subr.mxu0 0.0
  %2093 = vmatpush2.msra.mxu0 %v639
  %2094 = vmatprep.subr.mxu0 0.0
  %2095 = vmatpush2.msra.mxu0 %v638
  %2096 = vmatprep.subr.mxu0 0.0
  %2097 = vmatpush2.msra.mxu0 %v637
  %2098 = vmatprep.subr.mxu0 0.0
  %2099 = vmatpush2.msra.mxu0 %v636
  %2100 = vmatprep.subr.mxu0 0.0
  %2101 = vmatpush2.msra.mxu0 %v635
  %2102 = vmatprep.subr.mxu0 0.0
  %2103 = vmatpush2.msra.mxu0 %v634
  %2104 = vmatprep.subr.mxu0 0.0
  %2105 = vmatpush2.msra.mxu0 %v633
  %2106 = vmatprep.subr.mxu0 0.0
  %2107 = vmatpush2.msra.mxu0 %v632
  %2108 = vmatprep.subr.mxu0 0.0
  %2109 = vmatpush2.msra.mxu0 %v631
  %2110 = vmatprep.subr.mxu0 0.0
  %2111 = vmatpush2.msra.mxu0 %v630
  %2112 = vmatprep.subr.mxu0 0.0
  %2113 = vmatpush2.msra.mxu0 %v629
  %2114 = vmatprep.mubr.f32.mxu0 %v55
  %2115 = vmatmul.mubr.f32.gmra.mxu0 %v54
  %v2116 = vpop.f32.mrf.mxu0
  %v2117 = vadd.f32 %v2047, %v2116
  %v2118 = vpop.f32.mrf.mxu0
  %2119 = vdwg.mxu0
  %2120 = vmatprep.subr.mxu0 0.0
  %2121 = vmatpush1.msra.mxu0 %v660
  %2122 = vmatprep.subr.mxu0 0.0
  %2123 = vmatpush1.msra.mxu0 %v659
  %2124 = vmatprep.subr.mxu0 0.0
  %2125 = vmatpush1.msra.mxu0 %v658
  %2126 = vmatprep.subr.mxu0 0.0
  %2127 = vmatpush1.msra.mxu0 %v657
  %2128 = vmatprep.subr.mxu0 0.0
  %2129 = vmatpush1.msra.mxu0 %v656
  %2130 = vmatprep.subr.mxu0 0.0
  %2131 = vmatpush1.msra.mxu0 %v655
  %2132 = vmatprep.subr.mxu0 0.0
  %2133 = vmatpush1.msra.mxu0 %v654
  %2134 = vmatprep.subr.mxu0 0.0
  %2135 = vmatpush1.msra.mxu0 %v653
  %2136 = vmatprep.subr.mxu0 0.0
  %2137 = vmatpush1.msra.mxu0 %v652
  %2138 = vmatprep.subr.mxu0 0.0
  %2139 = vmatpush1.msra.mxu0 %v651
  %2140 = vmatprep.subr.mxu0 0.0
  %2141 = vmatpush1.msra.mxu0 %v650
  %2142 = vmatprep.subr.mxu0 0.0
  %2143 = vmatpush1.msra.mxu0 %v649
  %2144 = vmatprep.subr.mxu0 0.0
  %2145 = vmatpush1.msra.mxu0 %v648
  %2146 = vmatprep.subr.mxu0 0.0
  %2147 = vmatpush1.msra.mxu0 %v647
  %2148 = vmatprep.subr.mxu0 0.0
  %2149 = vmatpush1.msra.mxu0 %v646
  %2150 = vmatprep.subr.mxu0 0.0
  %2151 = vmatpush1.msra.mxu0 %v645
  %2152 = vmatprep.subr.mxu0 0.0
  %2153 = vmatpush2.msra.mxu0 %v676
  %2154 = vmatprep.subr.mxu0 0.0
  %2155 = vmatpush2.msra.mxu0 %v675
  %2156 = vmatprep.subr.mxu0 0.0
  %2157 = vmatpush2.msra.mxu0 %v674
  %2158 = vmatprep.subr.mxu0 0.0
  %2159 = vmatpush2.msra.mxu0 %v673
  %2160 = vmatprep.subr.mxu0 0.0
  %2161 = vmatpush2.msra.mxu0 %v672
  %2162 = vmatprep.subr.mxu0 0.0
  %2163 = vmatpush2.msra.mxu0 %v671
  %2164 = vmatprep.subr.mxu0 0.0
  %2165 = vmatpush2.msra.mxu0 %v670
  %2166 = vmatprep.subr.mxu0 0.0
  %2167 = vmatpush2.msra.mxu0 %v669
  %2168 = vmatprep.subr.mxu0 0.0
  %2169 = vmatpush2.msra.mxu0 %v668
  %2170 = vmatprep.subr.mxu0 0.0
  %2171 = vmatpush2.msra.mxu0 %v667
  %2172 = vmatprep.subr.mxu0 0.0
  %2173 = vmatpush2.msra.mxu0 %v666
  %2174 = vmatprep.subr.mxu0 0.0
  %2175 = vmatpush2.msra.mxu0 %v665
  %2176 = vmatprep.subr.mxu0 0.0
  %2177 = vmatpush2.msra.mxu0 %v664
  %2178 = vmatprep.subr.mxu0 0.0
  %2179 = vmatpush2.msra.mxu0 %v663
  %2180 = vmatprep.subr.mxu0 0.0
  %2181 = vmatpush2.msra.mxu0 %v662
  %2182 = vmatprep.subr.mxu0 0.0
  %2183 = vmatpush2.msra.mxu0 %v661
  %2184 = vmatprep.mubr.f32.mxu0 %v57
  %2185 = vmatmul.mubr.f32.gmra.mxu0 %v56
  %v2186 = vpop.f32.mrf.mxu0
  %v2187 = vadd.f32 %v2117, %v2186
  %v2188 = vpop.f32.mrf.mxu0
  %2189 = vdwg.mxu0
  %2190 = vmatprep.subr.mxu0 0.0
  %2191 = vmatpush1.msra.mxu0 %v692
  %2192 = vmatprep.subr.mxu0 0.0
  %2193 = vmatpush1.msra.mxu0 %v691
  %2194 = vmatprep.subr.mxu0 0.0
  %2195 = vmatpush1.msra.mxu0 %v690
  %2196 = vmatprep.subr.mxu0 0.0
  %2197 = vmatpush1.msra.mxu0 %v689
  %2198 = vmatprep.subr.mxu0 0.0
  %2199 = vmatpush1.msra.mxu0 %v688
  %2200 = vmatprep.subr.mxu0 0.0
  %2201 = vmatpush1.msra.mxu0 %v687
  %2202 = vmatprep.subr.mxu0 0.0
  %2203 = vmatpush1.msra.mxu0 %v686
  %2204 = vmatprep.subr.mxu0 0.0
  %2205 = vmatpush1.msra.mxu0 %v685
  %2206 = vmatprep.subr.mxu0 0.0
  %2207 = vmatpush1.msra.mxu0 %v684
  %2208 = vmatprep.subr.mxu0 0.0
  %2209 = vmatpush1.msra.mxu0 %v683
  %2210 = vmatprep.subr.mxu0 0.0
  %2211 = vmatpush1.msra.mxu0 %v682
  %2212 = vmatprep.subr.mxu0 0.0
  %2213 = vmatpush1.msra.mxu0 %v681
  %2214 = vmatprep.subr.mxu0 0.0
  %2215 = vmatpush1.msra.mxu0 %v680
  %2216 = vmatprep.subr.mxu0 0.0
  %2217 = vmatpush1.msra.mxu0 %v679
  %2218 = vmatprep.subr.mxu0 0.0
  %2219 = vmatpush1.msra.mxu0 %v678
  %2220 = vmatprep.subr.mxu0 0.0
  %2221 = vmatpush1.msra.mxu0 %v677
  %2222 = vmatprep.subr.mxu0 0.0
  %2223 = vmatpush2.msra.mxu0 %v708
  %2224 = vmatprep.subr.mxu0 0.0
  %2225 = vmatpush2.msra.mxu0 %v707
  %2226 = vmatprep.subr.mxu0 0.0
  %2227 = vmatpush2.msra.mxu0 %v706
  %2228 = vmatprep.subr.mxu0 0.0
  %2229 = vmatpush2.msra.mxu0 %v705
  %2230 = vmatprep.subr.mxu0 0.0
  %2231 = vmatpush2.msra.mxu0 %v704
  %2232 = vmatprep.subr.mxu0 0.0
  %2233 = vmatpush2.msra.mxu0 %v703
  %2234 = vmatprep.subr.mxu0 0.0
  %2235 = vmatpush2.msra.mxu0 %v702
  %2236 = vmatprep.subr.mxu0 0.0
  %2237 = vmatpush2.msra.mxu0 %v701
  %2238 = vmatprep.subr.mxu0 0.0
  %2239 = vmatpush2.msra.mxu0 %v700
  %2240 = vmatprep.subr.mxu0 0.0
  %2241 = vmatpush2.msra.mxu0 %v699
  %2242 = vmatprep.subr.mxu0 0.0
  %2243 = vmatpush2.msra.mxu0 %v698
  %2244 = vmatprep.subr.mxu0 0.0
  %2245 = vmatpush2.msra.mxu0 %v697
  %2246 = vmatprep.subr.mxu0 0.0
  %2247 = vmatpush2.msra.mxu0 %v696
  %2248 = vmatprep.subr.mxu0 0.0
  %2249 = vmatpush2.msra.mxu0 %v695
  %2250 = vmatprep.subr.mxu0 0.0
  %2251 = vmatpush2.msra.mxu0 %v694
  %2252 = vmatprep.subr.mxu0 0.0
  %2253 = vmatpush2.msra.mxu0 %v693
  %2254 = vmatprep.mubr.f32.mxu0 %v59
  %2255 = vmatmul.mubr.f32.gmra.mxu0 %v58
  %v2256 = vpop.f32.mrf.mxu0
  %v2257 = vadd.f32 %v2187, %v2256
  %v2258 = vpop.f32.mrf.mxu0
  %2259 = vdwg.mxu0
  %2260 = vmatprep.subr.mxu0 0.0
  %2261 = vmatpush1.msra.mxu0 %v724
  %2262 = vmatprep.subr.mxu0 0.0
  %2263 = vmatpush1.msra.mxu0 %v723
  %2264 = vmatprep.subr.mxu0 0.0
  %2265 = vmatpush1.msra.mxu0 %v722
  %2266 = vmatprep.subr.mxu0 0.0
  %2267 = vmatpush1.msra.mxu0 %v721
  %2268 = vmatprep.subr.mxu0 0.0
  %2269 = vmatpush1.msra.mxu0 %v720
  %2270 = vmatprep.subr.mxu0 0.0
  %2271 = vmatpush1.msra.mxu0 %v719
  %2272 = vmatprep.subr.mxu0 0.0
  %2273 = vmatpush1.msra.mxu0 %v718
  %2274 = vmatprep.subr.mxu0 0.0
  %2275 = vmatpush1.msra.mxu0 %v717
  %2276 = vmatprep.subr.mxu0 0.0
  %2277 = vmatpush1.msra.mxu0 %v716
  %2278 = vmatprep.subr.mxu0 0.0
  %2279 = vmatpush1.msra.mxu0 %v715
  %2280 = vmatprep.subr.mxu0 0.0
  %2281 = vmatpush1.msra.mxu0 %v714
  %2282 = vmatprep.subr.mxu0 0.0
  %2283 = vmatpush1.msra.mxu0 %v713
  %2284 = vmatprep.subr.mxu0 0.0
  %2285 = vmatpush1.msra.mxu0 %v712
  %2286 = vmatprep.subr.mxu0 0.0
  %2287 = vmatpush1.msra.mxu0 %v711
  %2288 = vmatprep.subr.mxu0 0.0
  %2289 = vmatpush1.msra.mxu0 %v710
  %2290 = vmatprep.subr.mxu0 0.0
  %2291 = vmatpush1.msra.mxu0 %v709
  %2292 = vmatprep.subr.mxu0 0.0
  %2293 = vmatpush2.msra.mxu0 %v740
  %2294 = vmatprep.subr.mxu0 0.0
  %2295 = vmatpush2.msra.mxu0 %v739
  %2296 = vmatprep.subr.mxu0 0.0
  %2297 = vmatpush2.msra.mxu0 %v738
  %2298 = vmatprep.subr.mxu0 0.0
  %2299 = vmatpush2.msra.mxu0 %v737
  %2300 = vmatprep.subr.mxu0 0.0
  %2301 = vmatpush2.msra.mxu0 %v736
  %2302 = vmatprep.subr.mxu0 0.0
  %2303 = vmatpush2.msra.mxu0 %v735
  %2304 = vmatprep.subr.mxu0 0.0
  %2305 = vmatpush2.msra.mxu0 %v734
  %2306 = vmatprep.subr.mxu0 0.0
  %2307 = vmatpush2.msra.mxu0 %v733
  %2308 = vmatprep.subr.mxu0 0.0
  %2309 = vmatpush2.msra.mxu0 %v732
  %2310 = vmatprep.subr.mxu0 0.0
  %2311 = vmatpush2.msra.mxu0 %v731
  %2312 = vmatprep.subr.mxu0 0.0
  %2313 = vmatpush2.msra.mxu0 %v730
  %2314 = vmatprep.subr.mxu0 0.0
  %2315 = vmatpush2.msra.mxu0 %v729
  %2316 = vmatprep.subr.mxu0 0.0
  %2317 = vmatpush2.msra.mxu0 %v728
  %2318 = vmatprep.subr.mxu0 0.0
  %2319 = vmatpush2.msra.mxu0 %v727
  %2320 = vmatprep.subr.mxu0 0.0
  %2321 = vmatpush2.msra.mxu0 %v726
  %2322 = vmatprep.subr.mxu0 0.0
  %2323 = vmatpush2.msra.mxu0 %v725
  %2324 = vmatprep.mubr.f32.mxu0 %v61
  %2325 = vmatmul.mubr.f32.gmra.mxu0 %v60
  %v2326 = vpop.f32.mrf.mxu0
  %v2327 = vadd.f32 %v2257, %v2326
  %v2328 = vpop.f32.mrf.mxu0
  %2329 = vdwg.mxu0
  %2330 = vmatprep.subr.mxu0 0.0
  %2331 = vmatpush1.msra.mxu0 %v756
  %2332 = vmatprep.subr.mxu0 0.0
  %2333 = vmatpush1.msra.mxu0 %v755
  %2334 = vmatprep.subr.mxu0 0.0
  %2335 = vmatpush1.msra.mxu0 %v754
  %2336 = vmatprep.subr.mxu0 0.0
  %2337 = vmatpush1.msra.mxu0 %v753
  %2338 = vmatprep.subr.mxu0 0.0
  %2339 = vmatpush1.msra.mxu0 %v752
  %2340 = vmatprep.subr.mxu0 0.0
  %2341 = vmatpush1.msra.mxu0 %v751
  %2342 = vmatprep.subr.mxu0 0.0
  %2343 = vmatpush1.msra.mxu0 %v750
  %2344 = vmatprep.subr.mxu0 0.0
  %2345 = vmatpush1.msra.mxu0 %v749
  %2346 = vmatprep.subr.mxu0 0.0
  %2347 = vmatpush1.msra.mxu0 %v748
  %2348 = vmatprep.subr.mxu0 0.0
  %2349 = vmatpush1.msra.mxu0 %v747
  %2350 = vmatprep.subr.mxu0 0.0
  %2351 = vmatpush1.msra.mxu0 %v746
  %2352 = vmatprep.subr.mxu0 0.0
  %2353 = vmatpush1.msra.mxu0 %v745
  %2354 = vmatprep.subr.mxu0 0.0
  %2355 = vmatpush1.msra.mxu0 %v744
  %2356 = vmatprep.subr.mxu0 0.0
  %2357 = vmatpush1.msra.mxu0 %v743
  %2358 = vmatprep.subr.mxu0 0.0
  %2359 = vmatpush1.msra.mxu0 %v742
  %2360 = vmatprep.subr.mxu0 0.0
  %2361 = vmatpush1.msra.mxu0 %v741
  %2362 = vmatprep.subr.mxu0 0.0
  %2363 = vmatpush2.msra.mxu0 %v772
  %2364 = vmatprep.subr.mxu0 0.0
  %2365 = vmatpush2.msra.mxu0 %v771
  %2366 = vmatprep.subr.mxu0 0.0
  %2367 = vmatpush2.msra.mxu0 %v770
  %2368 = vmatprep.subr.mxu0 0.0
  %2369 = vmatpush2.msra.mxu0 %v769
  %2370 = vmatprep.subr.mxu0 0.0
  %2371 = vmatpush2.msra.mxu0 %v768
  %2372 = vmatprep.subr.mxu0 0.0
  %2373 = vmatpush2.msra.mxu0 %v767
  %2374 = vmatprep.subr.mxu0 0.0
  %2375 = vmatpush2.msra.mxu0 %v766
  %2376 = vmatprep.subr.mxu0 0.0
  %2377 = vmatpush2.msra.mxu0 %v765
  %2378 = vmatprep.subr.mxu0 0.0
  %2379 = vmatpush2.msra.mxu0 %v764
  %2380 = vmatprep.subr.mxu0 0.0
  %2381 = vmatpush2.msra.mxu0 %v763
  %2382 = vmatprep.subr.mxu0 0.0
  %2383 = vmatpush2.msra.mxu0 %v762
  %2384 = vmatprep.subr.mxu0 0.0
  %2385 = vmatpush2.msra.mxu0 %v761
  %2386 = vmatprep.subr.mxu0 0.0
  %2387 = vmatpush2.msra.mxu0 %v760
  %2388 = vmatprep.subr.mxu0 0.0
  %2389 = vmatpush2.msra.mxu0 %v759
  %2390 = vmatprep.subr.mxu0 0.0
  %2391 = vmatpush2.msra.mxu0 %v758
  %2392 = vmatprep.subr.mxu0 0.0
  %2393 = vmatpush2.msra.mxu0 %v757
  %2394 = vmatprep.mubr.f32.mxu0 %v63
  %2395 = vmatmul.mubr.f32.gmra.mxu0 %v62
  %v2396 = vpop.f32.mrf.mxu0
  %v2397 = vadd.f32 %v2327, %v2396
  %v2398 = vpop.f32.mrf.mxu0
  %2399 = vdwg.mxu0
  %2400 = vmatprep.subr.mxu0 0.0
  %2401 = vmatpush1.msra.mxu0 %v788
  %2402 = vmatprep.subr.mxu0 0.0
  %2403 = vmatpush1.msra.mxu0 %v787
  %2404 = vmatprep.subr.mxu0 0.0
  %2405 = vmatpush1.msra.mxu0 %v786
  %2406 = vmatprep.subr.mxu0 0.0
  %2407 = vmatpush1.msra.mxu0 %v785
  %2408 = vmatprep.subr.mxu0 0.0
  %2409 = vmatpush1.msra.mxu0 %v784
  %2410 = vmatprep.subr.mxu0 0.0
  %2411 = vmatpush1.msra.mxu0 %v783
  %2412 = vmatprep.subr.mxu0 0.0
  %2413 = vmatpush1.msra.mxu0 %v782
  %2414 = vmatprep.subr.mxu0 0.0
  %2415 = vmatpush1.msra.mxu0 %v781
  %2416 = vmatprep.subr.mxu0 0.0
  %2417 = vmatpush1.msra.mxu0 %v780
  %2418 = vmatprep.subr.mxu0 0.0
  %2419 = vmatpush1.msra.mxu0 %v779
  %2420 = vmatprep.subr.mxu0 0.0
  %2421 = vmatpush1.msra.mxu0 %v778
  %2422 = vmatprep.subr.mxu0 0.0
  %2423 = vmatpush1.msra.mxu0 %v777
  %2424 = vmatprep.subr.mxu0 0.0
  %2425 = vmatpush1.msra.mxu0 %v776
  %2426 = vmatprep.subr.mxu0 0.0
  %2427 = vmatpush1.msra.mxu0 %v775
  %2428 = vmatprep.subr.mxu0 0.0
  %2429 = vmatpush1.msra.mxu0 %v774
  %2430 = vmatprep.subr.mxu0 0.0
  %2431 = vmatpush1.msra.mxu0 %v773
  %2432 = vmatprep.subr.mxu0 0.0
  %2433 = vmatpush2.msra.mxu0 %v804
  %2434 = vmatprep.subr.mxu0 0.0
  %2435 = vmatpush2.msra.mxu0 %v803
  %2436 = vmatprep.subr.mxu0 0.0
  %2437 = vmatpush2.msra.mxu0 %v802
  %2438 = vmatprep.subr.mxu0 0.0
  %2439 = vmatpush2.msra.mxu0 %v801
  %2440 = vmatprep.subr.mxu0 0.0
  %2441 = vmatpush2.msra.mxu0 %v800
  %2442 = vmatprep.subr.mxu0 0.0
  %2443 = vmatpush2.msra.mxu0 %v799
  %2444 = vmatprep.subr.mxu0 0.0
  %2445 = vmatpush2.msra.mxu0 %v798
  %2446 = vmatprep.subr.mxu0 0.0
  %2447 = vmatpush2.msra.mxu0 %v797
  %2448 = vmatprep.subr.mxu0 0.0
  %2449 = vmatpush2.msra.mxu0 %v796
  %2450 = vmatprep.subr.mxu0 0.0
  %2451 = vmatpush2.msra.mxu0 %v795
  %2452 = vmatprep.subr.mxu0 0.0
  %2453 = vmatpush2.msra.mxu0 %v794
  %2454 = vmatprep.subr.mxu0 0.0
  %2455 = vmatpush2.msra.mxu0 %v793
  %2456 = vmatprep.subr.mxu0 0.0
  %2457 = vmatpush2.msra.mxu0 %v792
  %2458 = vmatprep.subr.mxu0 0.0
  %2459 = vmatpush2.msra.mxu0 %v791
  %2460 = vmatprep.subr.mxu0 0.0
  %2461 = vmatpush2.msra.mxu0 %v790
  %2462 = vmatprep.subr.mxu0 0.0
  %2463 = vmatpush2.msra.mxu0 %v789
  %2464 = vmatprep.mubr.f32.mxu0 %v65
  %2465 = vmatmul.mubr.f32.gmra.mxu0 %v64
  %v2466 = vpop.f32.mrf.mxu0
  %v2467 = vadd.f32 %v2397, %v2466
  %v2468 = vpop.f32.mrf.mxu0
  %2469 = vdwg.mxu0
  %2470 = vmatprep.subr.mxu0 0.0
  %2471 = vmatpush1.msra.mxu0 %v820
  %2472 = vmatprep.subr.mxu0 0.0
  %2473 = vmatpush1.msra.mxu0 %v819
  %2474 = vmatprep.subr.mxu0 0.0
  %2475 = vmatpush1.msra.mxu0 %v818
  %2476 = vmatprep.subr.mxu0 0.0
  %2477 = vmatpush1.msra.mxu0 %v817
  %2478 = vmatprep.subr.mxu0 0.0
  %2479 = vmatpush1.msra.mxu0 %v816
  %2480 = vmatprep.subr.mxu0 0.0
  %2481 = vmatpush1.msra.mxu0 %v815
  %2482 = vmatprep.subr.mxu0 0.0
  %2483 = vmatpush1.msra.mxu0 %v814
  %2484 = vmatprep.subr.mxu0 0.0
  %2485 = vmatpush1.msra.mxu0 %v813
  %2486 = vmatprep.subr.mxu0 0.0
  %2487 = vmatpush1.msra.mxu0 %v812
  %2488 = vmatprep.subr.mxu0 0.0
  %2489 = vmatpush1.msra.mxu0 %v811
  %2490 = vmatprep.subr.mxu0 0.0
  %2491 = vmatpush1.msra.mxu0 %v810
  %2492 = vmatprep.subr.mxu0 0.0
  %2493 = vmatpush1.msra.mxu0 %v809
  %2494 = vmatprep.subr.mxu0 0.0
  %2495 = vmatpush1.msra.mxu0 %v808
  %2496 = vmatprep.subr.mxu0 0.0
  %2497 = vmatpush1.msra.mxu0 %v807
  %2498 = vmatprep.subr.mxu0 0.0
  %2499 = vmatpush1.msra.mxu0 %v806
  %2500 = vmatprep.subr.mxu0 0.0
  %2501 = vmatpush1.msra.mxu0 %v805
  %2502 = vmatprep.subr.mxu0 0.0
  %2503 = vmatpush2.msra.mxu0 %v836
  %2504 = vmatprep.subr.mxu0 0.0
  %2505 = vmatpush2.msra.mxu0 %v835
  %2506 = vmatprep.subr.mxu0 0.0
  %2507 = vmatpush2.msra.mxu0 %v834
  %2508 = vmatprep.subr.mxu0 0.0
  %2509 = vmatpush2.msra.mxu0 %v833
  %2510 = vmatprep.subr.mxu0 0.0
  %2511 = vmatpush2.msra.mxu0 %v832
  %2512 = vmatprep.subr.mxu0 0.0
  %2513 = vmatpush2.msra.mxu0 %v831
  %2514 = vmatprep.subr.mxu0 0.0
  %2515 = vmatpush2.msra.mxu0 %v830
  %2516 = vmatprep.subr.mxu0 0.0
  %2517 = vmatpush2.msra.mxu0 %v829
  %2518 = vmatprep.subr.mxu0 0.0
  %2519 = vmatpush2.msra.mxu0 %v828
  %2520 = vmatprep.subr.mxu0 0.0
  %2521 = vmatpush2.msra.mxu0 %v827
  %2522 = vmatprep.subr.mxu0 0.0
  %2523 = vmatpush2.msra.mxu0 %v826
  %2524 = vmatprep.subr.mxu0 0.0
  %2525 = vmatpush2.msra.mxu0 %v825
  %2526 = vmatprep.subr.mxu0 0.0
  %2527 = vmatpush2.msra.mxu0 %v824
  %2528 = vmatprep.subr.mxu0 0.0
  %2529 = vmatpush2.msra.mxu0 %v823
  %2530 = vmatprep.subr.mxu0 0.0
  %2531 = vmatpush2.msra.mxu0 %v822
  %2532 = vmatprep.subr.mxu0 0.0
  %2533 = vmatpush2.msra.mxu0 %v821
  %2534 = vmatprep.mubr.f32.mxu0 %v67
  %2535 = vmatmul.mubr.f32.gmra.mxu0 %v66
  %v2536 = vpop.f32.mrf.mxu0
  %v2537 = vadd.f32 %v2467, %v2536
  %v2538 = vpop.f32.mrf.mxu0
  %2539 = vdwg.mxu0
  %2540 = vmatprep.subr.mxu0 0.0
  %2541 = vmatpush1.msra.mxu0 %v852
  %2542 = vmatprep.subr.mxu0 0.0
  %2543 = vmatpush1.msra.mxu0 %v851
  %2544 = vmatprep.subr.mxu0 0.0
  %2545 = vmatpush1.msra.mxu0 %v850
  %2546 = vmatprep.subr.mxu0 0.0
  %2547 = vmatpush1.msra.mxu0 %v849
  %2548 = vmatprep.subr.mxu0 0.0
  %2549 = vmatpush1.msra.mxu0 %v848
  %2550 = vmatprep.subr.mxu0 0.0
  %2551 = vmatpush1.msra.mxu0 %v847
  %2552 = vmatprep.subr.mxu0 0.0
  %2553 = vmatpush1.msra.mxu0 %v846
  %2554 = vmatprep.subr.mxu0 0.0
  %2555 = vmatpush1.msra.mxu0 %v845
  %2556 = vmatprep.subr.mxu0 0.0
  %2557 = vmatpush1.msra.mxu0 %v844
  %2558 = vmatprep.subr.mxu0 0.0
  %2559 = vmatpush1.msra.mxu0 %v843
  %2560 = vmatprep.subr.mxu0 0.0
  %2561 = vmatpush1.msra.mxu0 %v842
  %2562 = vmatprep.subr.mxu0 0.0
  %2563 = vmatpush1.msra.mxu0 %v841
  %2564 = vmatprep.subr.mxu0 0.0
  %2565 = vmatpush1.msra.mxu0 %v840
  %2566 = vmatprep.subr.mxu0 0.0
  %2567 = vmatpush1.msra.mxu0 %v839
  %2568 = vmatprep.subr.mxu0 0.0
  %2569 = vmatpush1.msra.mxu0 %v838
  %2570 = vmatprep.subr.mxu0 0.0
  %2571 = vmatpush1.msra.mxu0 %v837
  %2572 = vmatprep.subr.mxu0 0.0
  %2573 = vmatpush2.msra.mxu0 0.0
  %2574 = vmatprep.subr.mxu0 0.0
  %2575 = vmatpush2.msra.mxu0 0.0
  %2576 = vmatprep.subr.mxu0 0.0
  %2577 = vmatpush2.msra.mxu0 0.0
  %2578 = vmatprep.subr.mxu0 0.0
  %2579 = vmatpush2.msra.mxu0 0.0
  %2580 = vmatprep.subr.mxu0 0.0
  %2581 = vmatpush2.msra.mxu0 0.0
  %2582 = vmatprep.subr.mxu0 0.0
  %2583 = vmatpush2.msra.mxu0 0.0
  %2584 = vmatprep.subr.mxu0 0.0
  %2585 = vmatpush2.msra.mxu0 0.0
  %2586 = vmatprep.subr.mxu0 0.0
  %2587 = vmatpush2.msra.mxu0 0.0
  %2588 = vmatprep.subr.mxu0 0.0
  %2589 = vmatpush2.msra.mxu0 0.0
  %2590 = vmatprep.subr.mxu0 0.0
  %2591 = vmatpush2.msra.mxu0 0.0
  %2592 = vmatprep.subr.mxu0 0.0
  %2593 = vmatpush2.msra.mxu0 0.0
  %2594 = vmatprep.subr.mxu0 0.0
  %2595 = vmatpush2.msra.mxu0 0.0
  %2596 = vmatprep.subr.mxu0 0.0
  %2597 = vmatpush2.msra.mxu0 0.0
  %2598 = vmatprep.subr.mxu0 0.0
  %2599 = vmatpush2.msra.mxu0 0.0
  %2600 = vmatprep.subr.mxu0 0.0
  %2601 = vmatpush2.msra.mxu0 0.0
  %2602 = vmatprep.subr.mxu0 0.0
  %2603 = vmatpush2.msra.mxu0 0.0
  %2604 = vmatprep.mubr.f32.mxu0 0.0
  %2605 = vmatmul.mubr.f32.gmra.mxu0 %v68
  %v2606 = vpop.f32.mrf.mxu0
  %v2607 = vadd.f32 %v2537, %v2606
  %v2608 = vpop.f32.mrf.mxu0
  %2609 = vdwg.mxu0
  %v2610 = vmax.f32 %v2607, 0.0
  %v2611 = vld [vmem:[%s3] sm:$0xff]
  %v2612 = vld [vmem:[%s3 + $0x8] sm:$0xff]
  %v2613 = vld [vmem:[%s3 + $0x10] sm:$0xff]
  %v2614 = vld [vmem:[%s3 + $0x18] sm:$0xff]
  %v2615 = vld [vmem:[%s3 + $0x20] sm:$0xff]
  %v2616 = vld [vmem:[%s3 + $0x28] sm:$0xff]
  %v2617 = vld [vmem:[%s3 + $0x30] sm:$0xff]
  %v2618 = vld [vmem:[%s3 + $0x38] sm:$0xff]
  %v2619 = vld [vmem:[%s3 + $0x40] sm:$0xff]
  %v2620 = vld [vmem:[%s3 + $0x48] sm:$0xff]
  %v2621 = vld [vmem:[%s3 + $0x50] sm:$0xff]
  %v2622 = vld [vmem:[%s3 + $0x58] sm:$0xff]
  %v2623 = vld [vmem:[%s3 + $0x60] sm:$0xff]
  %v2624 = vld [vmem:[%s3 + $0x68] sm:$0xff]
  %v2625 = vld [vmem:[%s3 + $0x70] sm:$0xff]
  %v2626 = vld [vmem:[%s3 + $0x78] sm:$0xff]
  %v2627 = vld [vmem:[%s4] sm:$0x1]
  %v2629 = vlaneseq
  %v2630 = vshrl.u32 %v2629, 7
  %v2631 = vsub.s32 0, %v2630
  %v2632 = vrot.slane %v2627, %v2631
  %2634 = vmatprep.subr.mxu0 0.0
  %2635 = vmatpush1.msra.mxu0 %v2626
  %2636 = vmatprep.subr.mxu0 0.0
  %2637 = vmatpush1.msra.mxu0 %v2625
  %2638 = vmatprep.subr.mxu0 0.0
  %2639 = vmatpush1.msra.mxu0 %v2624
  %2640 = vmatprep.subr.mxu0 0.0
  %2641 = vmatpush1.msra.mxu0 %v2623
  %2642 = vmatprep.subr.mxu0 0.0
  %2643 = vmatpush1.msra.mxu0 %v2622
  %2644 = vmatprep.subr.mxu0 0.0
  %2645 = vmatpush1.msra.mxu0 %v2621
  %2646 = vmatprep.subr.mxu0 0.0
  %2647 = vmatpush1.msra.mxu0 %v2620
  %2648 = vmatprep.subr.mxu0 0.0
  %2649 = vmatpush1.msra.mxu0 %v2619
  %2650 = vmatprep.subr.mxu0 0.0
  %2651 = vmatpush1.msra.mxu0 %v2618
  %2652 = vmatprep.subr.mxu0 0.0
  %2653 = vmatpush1.msra.mxu0 %v2617
  %2654 = vmatprep.subr.mxu0 0.0
  %2655 = vmatpush1.msra.mxu0 %v2616
  %2656 = vmatprep.subr.mxu0 0.0
  %2657 = vmatpush1.msra.mxu0 %v2615
  %2658 = vmatprep.subr.mxu0 0.0
  %2659 = vmatpush1.msra.mxu0 %v2614
  %2660 = vmatprep.subr.mxu0 0.0
  %2661 = vmatpush1.msra.mxu0 %v2613
  %2662 = vmatprep.subr.mxu0 0.0
  %2663 = vmatpush1.msra.mxu0 %v2612
  %2664 = vmatprep.subr.mxu0 0.0
  %2665 = vmatpush1.msra.mxu0 %v2611
  %2666 = vmatprep.subr.mxu0 0.0
  %2667 = vmatpush2.msra.mxu0 0.0
  %2668 = vmatprep.subr.mxu0 0.0
  %2669 = vmatpush2.msra.mxu0 0.0
  %2670 = vmatprep.subr.mxu0 0.0
  %2671 = vmatpush2.msra.mxu0 0.0
  %2672 = vmatprep.subr.mxu0 0.0
  %2673 = vmatpush2.msra.mxu0 0.0
  %2674 = vmatprep.subr.mxu0 0.0
  %2675 = vmatpush2.msra.mxu0 0.0
  %2676 = vmatprep.subr.mxu0 0.0
  %2677 = vmatpush2.msra.mxu0 0.0
  %2678 = vmatprep.subr.mxu0 0.0
  %2679 = vmatpush2.msra.mxu0 0.0
  %2680 = vmatprep.subr.mxu0 0.0
  %2681 = vmatpush2.msra.mxu0 0.0
  %2682 = vmatprep.subr.mxu0 0.0
  %2683 = vmatpush2.msra.mxu0 0.0
  %2684 = vmatprep.subr.mxu0 0.0
  %2685 = vmatpush2.msra.mxu0 0.0
  %2686 = vmatprep.subr.mxu0 0.0
  %2687 = vmatpush2.msra.mxu0 0.0
  %2688 = vmatprep.subr.mxu0 0.0
  %2689 = vmatpush2.msra.mxu0 0.0
  %2690 = vmatprep.subr.mxu0 0.0
  %2691 = vmatpush2.msra.mxu0 0.0
  %2692 = vmatprep.subr.mxu0 0.0
  %2693 = vmatpush2.msra.mxu0 0.0
  %2694 = vmatprep.subr.mxu0 0.0
  %2695 = vmatpush2.msra.mxu0 0.0
  %2696 = vmatprep.subr.mxu0 0.0
  %2697 = vmatpush2.msra.mxu0 0.0
  %2698 = vmatprep.mubr.f32.mxu0 0.0
  %2699 = vmatmul.mubr.f32.gmra.mxu0 %v2610
  %v2700 = vpop.f32.mrf.mxu0
  %v2701 = vadd.f32 %v2632, %v2700
  %v2702 = vpop.f32.mrf.mxu0
  %2703 = vdwg.mxu0
  %2704 = vst [vmem:[%s5] sm:$0xff] %v2701
  // Predicated region
  $region22: #{clf_img_forward.5} parent=0 // pred_check
    _
  $region23: #{clf_img_forward.5} parent=0 // pred_check_branch
    %2706 = sbr.rel (0) target = $region25
  $region24: #{clf_img_forward.5} parent=0 // pred_region
    _
  $region25: #{clf_img_forward.5} parent=0 // pred_fallthru
    _
  // Predicated region
  $region26: #{clf_img_forward.5} parent=0 // pred_check
    _
  $region27: #{clf_img_forward.5} parent=0 // pred_check_branch
    %2708 = sbr.rel (0) target = $region29
  $region28: #{clf_img_forward.5} parent=0 // pred_region
    _
  $region29: #{clf_img_forward.5} parent=0 // pred_fallthru
    _

</llo_original>
